<compile_context>
chip_gen: v7x
topology: tpu7x:2x2x1
jax: 0.10.0
libtpu: 0.0.40
codegen_flags: <defaults>
</compile_context>

<pallas_src>
import jax
import jax.numpy as jnp
from jax.experimental import pallas as pl
from jax.experimental.pallas import tpu as pltpu

BN_EPS = 1e-5
_VMEM_LIMIT = 32 * 1024 * 1024   # explicit scoped-VMEM budget (safe on v7x 64 MiB/TC)


# ----------------------------- Pallas kernels ------------------------------

def _make_conv3x3_stats_kernel(stride, ho, wo):
    """3x3 conv (pad=1, stride 1 or 2) + per-channel sum / sum-of-squares.

    Per grid step (one image tile):
      stride 1 : x_ref (1, H+2, W+2, Cin)   spatially padded NHWC tile
      stride 2 : x_ref (4, Hp/2, Wp/2, Cin) parity planes (ee, eo, oe, oo) so
                  every tap slice below is a plain stride-1 window
      w_ref    (9, Cin, Cout)  one (Cin, Cout) slab per tap, bf16
    Outputs:
      y_ref     (Ho*Wo, Cout)  raw (pre-BN) conv result for this tile, bf16
      stats_ref (2, Cout) f32  running [sum; sum_sq] over ALL tiles
                               (revisited accumulator, grid axis "arbitrary")
    The taps are applied in-kernel, so no 9x im2col patch matrix hits HBM.
    """

    def kernel(x_ref, w_ref, y_ref, stats_ref):
        acc = None
        for kh in range(3):
            for kw in range(3):
                if stride == 1:
                    xs = x_ref[0, kh:kh + ho, kw:kw + wo, :]
                else:  # stride == 2: pick parity plane, then a stride-1 window
                    plane = (kh % 2) * 2 + (kw % 2)
                    r0, c0 = kh // 2, kw // 2
                    xs = x_ref[plane, r0:r0 + ho, c0:c0 + wo, :]
                lhs = xs.reshape(ho * wo, xs.shape[-1])          # (M_tile, Cin)
                contrib = jnp.dot(lhs, w_ref[kh * 3 + kw],        # bf16 MXU
                                  preferred_element_type=jnp.float32)
                acc = contrib if acc is None else acc + contrib   # f32 accumulate

        # NOTE: this store is Cout-wide (lane-sparse); the BN/skip/ReLU
        # epilogue kernel below is fully 128-lane dense instead.
        y_ref[...] = acc.astype(y_ref.dtype)

        @pl.when(pl.program_id(0) == 0)
        def _init():
            stats_ref[...] = jnp.zeros_like(stats_ref)

        stats_ref[0:1, :] += jnp.sum(acc, axis=0, keepdims=True)
        stats_ref[1:2, :] += jnp.sum(acc * acc, axis=0, keepdims=True)

    return kernel


def _affine_relu_kernel(y_ref, sb_ref, o_ref):
    # y_ref/o_ref: (rows, 128) lane-dense packing of (pixels, channels)
    # sb_ref: (2, 128) = [scale; bias] tiled across the packed pixels.
    y = y_ref[...].astype(jnp.float32)
    o_ref[...] = jnp.maximum(y * sb_ref[0:1, :] + sb_ref[1:2, :],
                             0.0).astype(o_ref.dtype)


def _affine_skip_relu_kernel(y_ref, sb_ref, xs_ref, wpb_ref, o_ref):
    # Fused BN-affine + 1x1 pointwise skip + add + ReLU, all lane-dense.
    # xs_ref : (rows, P*Cin) packed strided-input pixels
    # wpb_ref: block-diagonal kron(I_P, Wp) of shape (P*Cin, 128) so the skip
    #          matmul lands directly in the packed layout (no HBM round trip).
    y = y_ref[...].astype(jnp.float32)
    skip = jnp.dot(xs_ref[...], wpb_ref[...], preferred_element_type=jnp.float32)
    o_ref[...] = jnp.maximum(y * sb_ref[0:1, :] + sb_ref[1:2, :] + skip,
                             0.0).astype(o_ref.dtype)


# ------------------------------- JAX glue ----------------------------------

def _row_tile(rows):
    for t in (1024, 512, 256, 128, 64, 32, 16, 8):
        if rows % t == 0:
            return t
    return rows


def conv3x3_stats(x_nhwc, w_hwio, *, stride):
    """Raw 3x3 conv (pad=1) + batch stats. Returns (y_raw, mean, var, (n,ho,wo))."""
    n, h, w, cin = x_nhwc.shape
    cout = w_hwio.shape[-1]
    ho = (h + 2 - 3) // stride + 1
    wo = (w + 2 - 3) // stride + 1
    xb = x_nhwc.astype(jnp.bfloat16)
    xp = jnp.pad(xb, ((0, 0), (1, 1), (1, 1), (0, 0)))

    if stride == 1:
        x_in = xp                                            # (N, H+2, W+2, Cin)
        x_blk = (1, h + 2, w + 2, cin)
    elif stride == 2:
        # Parity-split the padded image so in-kernel tap slices are stride-1
        # (avoids strided loads on the sublane/lane dims).
        assert (h + 2) % 2 == 0 and (w + 2) % 2 == 0
        hpp, wpp = (h + 2) // 2, (w + 2) // 2
        x_in = jnp.stack([xp[:, 0::2, 0::2], xp[:, 0::2, 1::2],
                          xp[:, 1::2, 0::2], xp[:, 1::2, 1::2]], axis=1)
        x_in = x_in.reshape(n * 4, hpp, wpp, cin)
        x_blk = (4, hpp, wpp, cin)
    else:
        raise NotImplementedError("stride must be 1 or 2")

    w9 = w_hwio.reshape(9, cin, cout).astype(jnp.bfloat16)
    mt = ho * wo                                             # conv rows per step

    # TODO(synk): for large spatial extents, additionally tile output rows
    # (with a 1-row halo) instead of one whole image per grid step.
    y_raw, stats = pl.pallas_call(
        _make_conv3x3_stats_kernel(stride, ho, wo),
        out_shape=(jax.ShapeDtypeStruct((n * mt, cout), jnp.bfloat16),
                   jax.ShapeDtypeStruct((2, cout), jnp.float32)),
        grid=(n,),
        in_specs=[pl.BlockSpec(x_blk, lambda i: (i, 0, 0, 0)),
                  pl.BlockSpec((9, cin, cout), lambda i: (0, 0, 0))],
        out_specs=(pl.BlockSpec((mt, cout), lambda i: (i, 0)),
                   pl.BlockSpec((2, cout), lambda i: (0, 0))),
        compiler_params=pltpu.CompilerParams(
            # stats are accumulated across the grid -> reduction axis.
            dimension_semantics=("arbitrary",),
            vmem_limit_bytes=_VMEM_LIMIT),
    )(x_in, w9)

    m = n * mt
    mean = stats[0] / m
    var = jnp.maximum(stats[1] / m - mean * mean, 0.0)       # biased var (BN fwd)
    return y_raw, mean, var, (n, ho, wo)


def bn_apply_relu(y_raw, scale, bias, nhw, out_dtype, *, skip_x=None, wp=None):
    """Lane-dense epilogue: out = relu(y*scale + bias [+ (1x1 skip)])."""
    m, cout = y_raw.shape
    n, ho, wo = nhw
    assert 128 % cout == 0, "Cout must divide 128 for lane packing"
    p = 128 // cout
    assert m % p == 0
    rows = m // p

    y_d = y_raw.reshape(rows, 128)                  # free row-major repack
    sb = jnp.stack([jnp.tile(scale.astype(jnp.float32), p),
                    jnp.tile(bias.astype(jnp.float32), p)], axis=0)   # (2, 128)

    rt = _row_tile(rows)
    grid = (rows // rt,)
    in_specs = [pl.BlockSpec((rt, 128), lambda i: (i, 0)),
                pl.BlockSpec((2, 128), lambda i: (0, 0))]
    args = [y_d, sb]
    kernel = _affine_relu_kernel
    if skip_x is not None:
        cin = skip_x.shape[-1]
        xs_d = skip_x.astype(jnp.bfloat16).reshape(m, cin).reshape(rows, p * cin)
        wp2d = wp.reshape(cin, cout) if wp is not None else jnp.eye(cin, cout)
        wpb = jnp.kron(jnp.eye(p, dtype=jnp.float32), wp2d).astype(jnp.bfloat16)
        in_specs += [pl.BlockSpec((rt, p * cin), lambda i: (i, 0)),
                     pl.BlockSpec((p * cin, 128), lambda i: (0, 0))]
        args += [xs_d, wpb]
        kernel = _affine_skip_relu_kernel

    out = pl.pallas_call(
        kernel,
        out_shape=jax.ShapeDtypeStruct((rows, 128), out_dtype),
        grid=grid,
        in_specs=in_specs,
        out_specs=pl.BlockSpec((rt, 128), lambda i: (i, 0)),
        compiler_params=pltpu.CompilerParams(
            dimension_semantics=("parallel",),     # elementwise -> megacore OK
            vmem_limit_bytes=_VMEM_LIMIT),
    )(*args)
    return out.reshape(n, ho, wo, cout)


def wy_residual(x_nhwc, p, *, stride, out_dtype):
    # y = relu(bn1(conv1(x)))
    y1, mean1, var1, nhw = conv3x3_stats(x_nhwc, p["w1"], stride=stride)
    scale1 = p["gamma1"] * jax.lax.rsqrt(var1 + BN_EPS)
    bias1 = p["beta1"] - mean1 * scale1
    h1 = bn_apply_relu(y1, scale1, bias1, nhw, jnp.bfloat16)

    # out = relu(bn2(conv2(y)) + pointwise(x))   (skip fused into the epilogue)
    y2, mean2, var2, _ = conv3x3_stats(h1, p["w2"], stride=1)
    scale2 = p["gamma2"] * jax.lax.rsqrt(var2 + BN_EPS)
    bias2 = p["beta2"] - mean2 * scale2
    x_s = x_nhwc[:, ::stride, ::stride, :]               # 1x1-conv stride offsets
    return bn_apply_relu(y2, scale2, bias2, nhw, out_dtype,
                         skip_x=x_s, wp=p.get("wp"))


def wy_block(x_nchw, params, *, strides=2, usepool=False):
    x = jnp.transpose(x_nchw, (0, 2, 3, 1)).astype(jnp.bfloat16)   # NCHW -> NHWC
    for r, p in enumerate(params):
        s = strides if r == 0 else 1
        last = r == len(params) - 1
        x = wy_residual(x, p, stride=s,
                        out_dtype=jnp.float32 if last else jnp.bfloat16)
    if usepool:
        pass  # TODO(synk): usepool=False in this config; MaxPool2d(2,2) not exercised.
    return jnp.transpose(x, (0, 3, 1, 2))                          # NHWC -> NCHW


wy_block_jit = jax.jit(wy_block, static_argnames=("strides", "usepool"))


def init_wy_block_params(key, input_size, output_size, repetations=2, use1x1=True):
    params = []
    for r in range(repetations):
        cin = input_size if r == 0 else output_size
        key, k1, k2, k3 = jax.random.split(key, 4)
        p = {
            # weights stored HWIO (kh, kw, Cin, Cout)
            "w1": 0.1 * jax.random.normal(k1, (3, 3, cin, output_size), jnp.float32),
            "gamma1": jnp.ones((output_size,), jnp.float32),
            "beta1": jnp.zeros((output_size,), jnp.float32),
            "w2": 0.1 * jax.random.normal(k2, (3, 3, output_size, output_size),
                                          jnp.float32),
            "gamma2": jnp.ones((output_size,), jnp.float32),
            "beta2": jnp.zeros((output_size,), jnp.float32),
        }
        if use1x1:
            p["wp"] = 0.1 * jax.random.normal(k3, (1, 1, cin, output_size),
                                              jnp.float32)
        params.append(p)
    return params


# ------------------------- pure-JAX reference ------------------------------

def _ref_bn(x, gamma, beta):
    mean = x.mean(axis=(0, 1, 2), keepdims=True)
    var = ((x - mean) ** 2).mean(axis=(0, 1, 2), keepdims=True)
    return (x - mean) * jax.lax.rsqrt(var + BN_EPS) * gamma + beta


def _ref_conv(x_nhwc, w_hwio, stride, pad):
    return jax.lax.conv_general_dilated(
        x_nhwc, w_hwio, window_strides=(stride, stride),
        padding=[(pad, pad), (pad, pad)],
        dimension_numbers=("NHWC", "HWIO", "NHWC"))


def ref_wy_block(x_nchw, params, strides=2):
    x = jnp.transpose(x_nchw, (0, 2, 3, 1))
    for r, p in enumerate(params):
        s = strides if r == 0 else 1
        y = jnp.maximum(_ref_bn(_ref_conv(x, p["w1"], s, 1),
                                p["gamma1"], p["beta1"]), 0.0)
        y = _ref_bn(_ref_conv(y, p["w2"], 1, 1), p["gamma2"], p["beta2"])
        skip = _ref_conv(x, p["wp"], s, 0) if "wp" in p else x[:, ::s, ::s, :]
        x = jnp.maximum(y + skip, 0.0)
    return jnp.transpose(x, (0, 3, 1, 2))


# --------------------------------- main -------------------------------------

if __name__ == "__main__":
    N, C_IN, H, W = 2, 4, 16, 16
    C_OUT = 8
    key = jax.random.PRNGKey(0)
    kx, kp = jax.random.split(key)
    x = jax.random.normal(kx, (N, C_IN, H, W), jnp.float32)   # NCHW, like PyTorch
    params = init_wy_block_params(kp, C_IN, C_OUT, repetations=2, use1x1=True)

    out = wy_block_jit(x, params, strides=2, usepool=False)
    out = jax.block_until_ready(out)

    assert out.shape == (N, C_OUT, H // 2, W // 2), out.shape
    ref = ref_wy_block(x, params, strides=2)
    max_err = float(jnp.max(jnp.abs(out - ref)))
    assert bool(jnp.allclose(out, ref, rtol=5e-2, atol=5e-2)), max_err
    print("KERNEL_OK")
</pallas_src>

<mosaic_0001>
module attributes {stable_mosaic.version = 11 : i64} {
  func.func @kernel(%arg0: i32, %arg1: memref<4x9x9x4xbf16, #tpu.memory_space<vmem>>, %arg2: memref<9x4x8xbf16, #tpu.memory_space<vmem>>, %arg3: memref<64x8xbf16, #tpu.memory_space<vmem>>, %arg4: memref<2x8xf32, #tpu.memory_space<vmem>>) attributes {dimension_semantics = [#tpu.dimension_semantics<arbitrary>], iteration_bounds = array<i64: 2>, scalar_prefetch = 0 : i64, scratch_operands = 0 : i64, tpu.core_type = #tpu.core_type<tc>, window_params = [{transform_indices = @transform_0, window_bounds = array<i64: 4, 9, 9, 4>}, {pipeline_mode = #tpu.pipeline_mode<synchronous>, transform_indices = @transform_1, window_bounds = array<i64: 9, 4, 8>}, {transform_indices = @transform_2, window_bounds = array<i64: 64, 8>}, {pipeline_mode = #tpu.pipeline_mode<synchronous>, transform_indices = @transform_3, window_bounds = array<i64: 2, 8>}]} {
    %c0 = arith.constant 0 : index
    %c0_0 = arith.constant 0 : index
    %c0_1 = arith.constant 0 : index
    %c0_2 = arith.constant 0 : index
    %0 = vector.load %arg1[%c0, %c0_0, %c0_1, %c0_2] : memref<4x9x9x4xbf16, #tpu.memory_space<vmem>>, vector<1x8x8x4xbf16>
    %1 = vector.shape_cast %0 : vector<1x8x8x4xbf16> to vector<8x8x4xbf16>
    %2 = vector.shape_cast %1 : vector<8x8x4xbf16> to vector<64x4xbf16>
    %c0_3 = arith.constant 0 : index
    %c0_4 = arith.constant 0 : index
    %c0_5 = arith.constant 0 : index
    %3 = vector.load %arg2[%c0_3, %c0_4, %c0_5] : memref<9x4x8xbf16, #tpu.memory_space<vmem>>, vector<1x4x8xbf16>
    %4 = vector.shape_cast %3 : vector<1x4x8xbf16> to vector<4x8xbf16>
    %cst = arith.constant dense<0.000000e+00> : vector<64x8xf32>
    %5 = tpu.matmul %2, %4, %cst {dimension_numbers = #tpu.dot_dimension_numbers<[1], [0], [0], [1], [0, 0, 1, 1], [], []>} : vector<64x4xbf16>, vector<4x8xbf16>, vector<64x8xf32> -> vector<64x8xf32>
    %c1 = arith.constant 1 : index
    %c0_6 = arith.constant 0 : index
    %c0_7 = arith.constant 0 : index
    %c0_8 = arith.constant 0 : index
    %6 = vector.load %arg1[%c1, %c0_6, %c0_7, %c0_8] : memref<4x9x9x4xbf16, #tpu.memory_space<vmem>>, vector<1x8x8x4xbf16>
    %7 = vector.shape_cast %6 : vector<1x8x8x4xbf16> to vector<8x8x4xbf16>
    %8 = vector.shape_cast %7 : vector<8x8x4xbf16> to vector<64x4xbf16>
    %c1_9 = arith.constant 1 : index
    %c0_10 = arith.constant 0 : index
    %c0_11 = arith.constant 0 : index
    %9 = vector.load %arg2[%c1_9, %c0_10, %c0_11] : memref<9x4x8xbf16, #tpu.memory_space<vmem>>, vector<1x4x8xbf16>
    %10 = vector.shape_cast %9 : vector<1x4x8xbf16> to vector<4x8xbf16>
    %cst_12 = arith.constant dense<0.000000e+00> : vector<64x8xf32>
    %11 = tpu.matmul %8, %10, %cst_12 {dimension_numbers = #tpu.dot_dimension_numbers<[1], [0], [0], [1], [0, 0, 1, 1], [], []>} : vector<64x4xbf16>, vector<4x8xbf16>, vector<64x8xf32> -> vector<64x8xf32>
    %12 = arith.addf %5, %11 : vector<64x8xf32>
    %c0_13 = arith.constant 0 : index
    %c0_14 = arith.constant 0 : index
    %c1_15 = arith.constant 1 : index
    %c0_16 = arith.constant 0 : index
    %13 = vector.load %arg1[%c0_13, %c0_14, %c1_15, %c0_16] : memref<4x9x9x4xbf16, #tpu.memory_space<vmem>>, vector<1x8x8x4xbf16>
    %14 = vector.shape_cast %13 : vector<1x8x8x4xbf16> to vector<8x8x4xbf16>
    %15 = vector.shape_cast %14 : vector<8x8x4xbf16> to vector<64x4xbf16>
    %c2 = arith.constant 2 : index
    %c0_17 = arith.constant 0 : index
    %c0_18 = arith.constant 0 : index
    %16 = vector.load %arg2[%c2, %c0_17, %c0_18] : memref<9x4x8xbf16, #tpu.memory_space<vmem>>, vector<1x4x8xbf16>
    %17 = vector.shape_cast %16 : vector<1x4x8xbf16> to vector<4x8xbf16>
    %cst_19 = arith.constant dense<0.000000e+00> : vector<64x8xf32>
    %18 = tpu.matmul %15, %17, %cst_19 {dimension_numbers = #tpu.dot_dimension_numbers<[1], [0], [0], [1], [0, 0, 1, 1], [], []>} : vector<64x4xbf16>, vector<4x8xbf16>, vector<64x8xf32> -> vector<64x8xf32>
    %19 = arith.addf %12, %18 : vector<64x8xf32>
    %c2_20 = arith.constant 2 : index
    %c0_21 = arith.constant 0 : index
    %c0_22 = arith.constant 0 : index
    %c0_23 = arith.constant 0 : index
    %20 = vector.load %arg1[%c2_20, %c0_21, %c0_22, %c0_23] : memref<4x9x9x4xbf16, #tpu.memory_space<vmem>>, vector<1x8x8x4xbf16>
    %21 = vector.shape_cast %20 : vector<1x8x8x4xbf16> to vector<8x8x4xbf16>
    %22 = vector.shape_cast %21 : vector<8x8x4xbf16> to vector<64x4xbf16>
    %c3 = arith.constant 3 : index
    %c0_24 = arith.constant 0 : index
    %c0_25 = arith.constant 0 : index
    %23 = vector.load %arg2[%c3, %c0_24, %c0_25] : memref<9x4x8xbf16, #tpu.memory_space<vmem>>, vector<1x4x8xbf16>
    %24 = vector.shape_cast %23 : vector<1x4x8xbf16> to vector<4x8xbf16>
    %cst_26 = arith.constant dense<0.000000e+00> : vector<64x8xf32>
    %25 = tpu.matmul %22, %24, %cst_26 {dimension_numbers = #tpu.dot_dimension_numbers<[1], [0], [0], [1], [0, 0, 1, 1], [], []>} : vector<64x4xbf16>, vector<4x8xbf16>, vector<64x8xf32> -> vector<64x8xf32>
    %26 = arith.addf %19, %25 : vector<64x8xf32>
    %c3_27 = arith.constant 3 : index
    %c0_28 = arith.constant 0 : index
    %c0_29 = arith.constant 0 : index
    %c0_30 = arith.constant 0 : index
    %27 = vector.load %arg1[%c3_27, %c0_28, %c0_29, %c0_30] : memref<4x9x9x4xbf16, #tpu.memory_space<vmem>>, vector<1x8x8x4xbf16>
    %28 = vector.shape_cast %27 : vector<1x8x8x4xbf16> to vector<8x8x4xbf16>
    %29 = vector.shape_cast %28 : vector<8x8x4xbf16> to vector<64x4xbf16>
    %c4 = arith.constant 4 : index
    %c0_31 = arith.constant 0 : index
    %c0_32 = arith.constant 0 : index
    %30 = vector.load %arg2[%c4, %c0_31, %c0_32] : memref<9x4x8xbf16, #tpu.memory_space<vmem>>, vector<1x4x8xbf16>
    %31 = vector.shape_cast %30 : vector<1x4x8xbf16> to vector<4x8xbf16>
    %cst_33 = arith.constant dense<0.000000e+00> : vector<64x8xf32>
    %32 = tpu.matmul %29, %31, %cst_33 {dimension_numbers = #tpu.dot_dimension_numbers<[1], [0], [0], [1], [0, 0, 1, 1], [], []>} : vector<64x4xbf16>, vector<4x8xbf16>, vector<64x8xf32> -> vector<64x8xf32>
    %33 = arith.addf %26, %32 : vector<64x8xf32>
    %c2_34 = arith.constant 2 : index
    %c0_35 = arith.constant 0 : index
    %c1_36 = arith.constant 1 : index
    %c0_37 = arith.constant 0 : index
    %34 = vector.load %arg1[%c2_34, %c0_35, %c1_36, %c0_37] : memref<4x9x9x4xbf16, #tpu.memory_space<vmem>>, vector<1x8x8x4xbf16>
    %35 = vector.shape_cast %34 : vector<1x8x8x4xbf16> to vector<8x8x4xbf16>
    %36 = vector.shape_cast %35 : vector<8x8x4xbf16> to vector<64x4xbf16>
    %c5 = arith.constant 5 : index
    %c0_38 = arith.constant 0 : index
    %c0_39 = arith.constant 0 : index
    %37 = vector.load %arg2[%c5, %c0_38, %c0_39] : memref<9x4x8xbf16, #tpu.memory_space<vmem>>, vector<1x4x8xbf16>
    %38 = vector.shape_cast %37 : vector<1x4x8xbf16> to vector<4x8xbf16>
    %cst_40 = arith.constant dense<0.000000e+00> : vector<64x8xf32>
    %39 = tpu.matmul %36, %38, %cst_40 {dimension_numbers = #tpu.dot_dimension_numbers<[1], [0], [0], [1], [0, 0, 1, 1], [], []>} : vector<64x4xbf16>, vector<4x8xbf16>, vector<64x8xf32> -> vector<64x8xf32>
    %40 = arith.addf %33, %39 : vector<64x8xf32>
    %c0_41 = arith.constant 0 : index
    %c1_42 = arith.constant 1 : index
    %c0_43 = arith.constant 0 : index
    %c0_44 = arith.constant 0 : index
    %41 = vector.load %arg1[%c0_41, %c1_42, %c0_43, %c0_44] : memref<4x9x9x4xbf16, #tpu.memory_space<vmem>>, vector<1x8x8x4xbf16>
    %42 = vector.shape_cast %41 : vector<1x8x8x4xbf16> to vector<8x8x4xbf16>
    %43 = vector.shape_cast %42 : vector<8x8x4xbf16> to vector<64x4xbf16>
    %c6 = arith.constant 6 : index
    %c0_45 = arith.constant 0 : index
    %c0_46 = arith.constant 0 : index
    %44 = vector.load %arg2[%c6, %c0_45, %c0_46] : memref<9x4x8xbf16, #tpu.memory_space<vmem>>, vector<1x4x8xbf16>
    %45 = vector.shape_cast %44 : vector<1x4x8xbf16> to vector<4x8xbf16>
    %cst_47 = arith.constant dense<0.000000e+00> : vector<64x8xf32>
    %46 = tpu.matmul %43, %45, %cst_47 {dimension_numbers = #tpu.dot_dimension_numbers<[1], [0], [0], [1], [0, 0, 1, 1], [], []>} : vector<64x4xbf16>, vector<4x8xbf16>, vector<64x8xf32> -> vector<64x8xf32>
    %47 = arith.addf %40, %46 : vector<64x8xf32>
    %c1_48 = arith.constant 1 : index
    %c1_49 = arith.constant 1 : index
    %c0_50 = arith.constant 0 : index
    %c0_51 = arith.constant 0 : index
    %48 = vector.load %arg1[%c1_48, %c1_49, %c0_50, %c0_51] : memref<4x9x9x4xbf16, #tpu.memory_space<vmem>>, vector<1x8x8x4xbf16>
    %49 = vector.shape_cast %48 : vector<1x8x8x4xbf16> to vector<8x8x4xbf16>
    %50 = vector.shape_cast %49 : vector<8x8x4xbf16> to vector<64x4xbf16>
    %c7 = arith.constant 7 : index
    %c0_52 = arith.constant 0 : index
    %c0_53 = arith.constant 0 : index
    %51 = vector.load %arg2[%c7, %c0_52, %c0_53] : memref<9x4x8xbf16, #tpu.memory_space<vmem>>, vector<1x4x8xbf16>
    %52 = vector.shape_cast %51 : vector<1x4x8xbf16> to vector<4x8xbf16>
    %cst_54 = arith.constant dense<0.000000e+00> : vector<64x8xf32>
    %53 = tpu.matmul %50, %52, %cst_54 {dimension_numbers = #tpu.dot_dimension_numbers<[1], [0], [0], [1], [0, 0, 1, 1], [], []>} : vector<64x4xbf16>, vector<4x8xbf16>, vector<64x8xf32> -> vector<64x8xf32>
    %54 = arith.addf %47, %53 : vector<64x8xf32>
    %c0_55 = arith.constant 0 : index
    %c1_56 = arith.constant 1 : index
    %c1_57 = arith.constant 1 : index
    %c0_58 = arith.constant 0 : index
    %55 = vector.load %arg1[%c0_55, %c1_56, %c1_57, %c0_58] : memref<4x9x9x4xbf16, #tpu.memory_space<vmem>>, vector<1x8x8x4xbf16>
    %56 = vector.shape_cast %55 : vector<1x8x8x4xbf16> to vector<8x8x4xbf16>
    %57 = vector.shape_cast %56 : vector<8x8x4xbf16> to vector<64x4xbf16>
    %c8 = arith.constant 8 : index
    %c0_59 = arith.constant 0 : index
    %c0_60 = arith.constant 0 : index
    %58 = vector.load %arg2[%c8, %c0_59, %c0_60] : memref<9x4x8xbf16, #tpu.memory_space<vmem>>, vector<1x4x8xbf16>
    %59 = vector.shape_cast %58 : vector<1x4x8xbf16> to vector<4x8xbf16>
    %cst_61 = arith.constant dense<0.000000e+00> : vector<64x8xf32>
    %60 = tpu.matmul %57, %59, %cst_61 {dimension_numbers = #tpu.dot_dimension_numbers<[1], [0], [0], [1], [0, 0, 1, 1], [], []>} : vector<64x4xbf16>, vector<4x8xbf16>, vector<64x8xf32> -> vector<64x8xf32>
    %61 = arith.addf %54, %60 : vector<64x8xf32>
    %62 = arith.truncf %61 : vector<64x8xf32> to vector<64x8xbf16>
    %c0_62 = arith.constant 0 : index
    %c0_63 = arith.constant 0 : index
    %63 = vector.load %arg3[%c0_62, %c0_63] : memref<64x8xbf16, #tpu.memory_space<vmem>>, vector<64x8xbf16>
    tpu.vector_store %arg3[%c0_62, %c0_63], %62 {strides = array<i32>} : memref<64x8xbf16, #tpu.memory_space<vmem>>, vector<64x8xbf16>,
    %c0_i32 = arith.constant 0 : i32
    %64 = arith.cmpi eq, %arg0, %c0_i32 : i32
    %65 = arith.extui %64 : i1 to i32
    %c0_i32_64 = arith.constant 0 : i32
    %66 = arith.cmpi ne, %65, %c0_i32_64 : i32
    scf.if %66 {
      %cst_75 = arith.constant 0.000000e+00 : f32
      %78 = vector.broadcast %cst_75 : f32 to vector<2x8xf32>
      %c0_76 = arith.constant 0 : index
      %c0_77 = arith.constant 0 : index
      %79 = vector.load %arg4[%c0_76, %c0_77] : memref<2x8xf32, #tpu.memory_space<vmem>>, vector<2x8xf32>
      tpu.vector_store %arg4[%c0_76, %c0_77], %78 {strides = array<i32>} : memref<2x8xf32, #tpu.memory_space<vmem>>, vector<2x8xf32>,
    } else {
    }
    %c0_65 = arith.constant 0 : index
    %c0_66 = arith.constant 0 : index
    %67 = vector.load %arg4[%c0_65, %c0_66] : memref<2x8xf32, #tpu.memory_space<vmem>>, vector<1x8xf32>
    %cst_67 = arith.constant dense<0.000000e+00> : vector<8xf32>
    %68 = vector.multi_reduction <add>, %61, %cst_67 [0] : vector<64x8xf32> to vector<8xf32>
    %69 = vector.shape_cast %68 : vector<8xf32> to vector<1x8xf32>
    %70 = arith.addf %67, %69 : vector<1x8xf32>
    %c0_68 = arith.constant 0 : index
    %c0_69 = arith.constant 0 : index
    %71 = vector.load %arg4[%c0_68, %c0_69] : memref<2x8xf32, #tpu.memory_space<vmem>>, vector<1x8xf32>
    tpu.vector_store %arg4[%c0_68, %c0_69], %70 {strides = array<i32>} : memref<2x8xf32, #tpu.memory_space<vmem>>, vector<1x8xf32>,
    %c1_70 = arith.constant 1 : index
    %c0_71 = arith.constant 0 : index
    %72 = vector.load %arg4[%c1_70, %c0_71] : memref<2x8xf32, #tpu.memory_space<vmem>>, vector<1x8xf32>
    %73 = arith.mulf %61, %61 : vector<64x8xf32>
    %cst_72 = arith.constant dense<0.000000e+00> : vector<8xf32>
    %74 = vector.multi_reduction <add>, %73, %cst_72 [0] : vector<64x8xf32> to vector<8xf32>
    %75 = vector.shape_cast %74 : vector<8xf32> to vector<1x8xf32>
    %76 = arith.addf %72, %75 : vector<1x8xf32>
    %c1_73 = arith.constant 1 : index
    %c0_74 = arith.constant 0 : index
    %77 = vector.load %arg4[%c1_73, %c0_74] : memref<2x8xf32, #tpu.memory_space<vmem>>, vector<1x8xf32>
    tpu.vector_store %arg4[%c1_73, %c0_74], %76 {strides = array<i32>} : memref<2x8xf32, #tpu.memory_space<vmem>>, vector<1x8xf32>,
    return
  }
  func.func @transform_0(%arg0: i32) -> (i32, i32, i32, i32) {
    %c0_i32 = arith.constant 0 : i32
    %c0_i32_0 = arith.constant 0 : i32
    %c0_i32_1 = arith.constant 0 : i32
    %c0_i32_2 = arith.constant 0 : i32
    return %arg0, %c0_i32, %c0_i32_0, %c0_i32_1 : i32, i32, i32, i32
  }
  func.func @transform_1(%arg0: i32) -> (i32, i32, i32) {
    %c0_i32 = arith.constant 0 : i32
    %c0_i32_0 = arith.constant 0 : i32
    %c0_i32_1 = arith.constant 0 : i32
    %c0_i32_2 = arith.constant 0 : i32
    return %c0_i32, %c0_i32_0, %c0_i32_1 : i32, i32, i32
  }
  func.func @transform_2(%arg0: i32) -> (i32, i32) {
    %c0_i32 = arith.constant 0 : i32
    %c0_i32_0 = arith.constant 0 : i32
    return %arg0, %c0_i32 : i32, i32
  }
  func.func @transform_3(%arg0: i32) -> (i32, i32) {
    %c0_i32 = arith.constant 0 : i32
    %c0_i32_0 = arith.constant 0 : i32
    %c0_i32_1 = arith.constant 0 : i32
    return %c0_i32, %c0_i32_0 : i32, i32
  }
}

module attributes {stable_mosaic.version = 11 : i64} {
  func.func @_affine_relu_kernel(%arg0: i32, %arg1: memref<8x128xbf16, #tpu.memory_space<vmem>>, %arg2: memref<2x128xf32, #tpu.memory_space<vmem>>, %arg3: memref<8x128xbf16, #tpu.memory_space<vmem>>) attributes {dimension_semantics = [#tpu.dimension_semantics<parallel>], iteration_bounds = array<i64: 1>, scalar_prefetch = 0 : i64, scratch_operands = 0 : i64, tpu.core_type = #tpu.core_type<tc>, window_params = [{transform_indices = @transform_0, window_bounds = array<i64: 8, 128>}, {pipeline_mode = #tpu.pipeline_mode<synchronous>, transform_indices = @transform_1, window_bounds = array<i64: 2, 128>}, {transform_indices = @transform_2, window_bounds = array<i64: 8, 128>}]} {
    %c0 = arith.constant 0 : index
    %c0_0 = arith.constant 0 : index
    %0 = vector.load %arg1[%c0, %c0_0] : memref<8x128xbf16, #tpu.memory_space<vmem>>, vector<8x128xbf16>
    %1 = arith.extf %0 : vector<8x128xbf16> to vector<8x128xf32>
    %c0_1 = arith.constant 0 : index
    %c0_2 = arith.constant 0 : index
    %2 = vector.load %arg2[%c0_1, %c0_2] : memref<2x128xf32, #tpu.memory_space<vmem>>, vector<1x128xf32>
    %3 = vector.broadcast %2 : vector<1x128xf32> to vector<8x128xf32>
    %4 = arith.mulf %1, %3 : vector<8x128xf32>
    %c1 = arith.constant 1 : index
    %c0_3 = arith.constant 0 : index
    %5 = vector.load %arg2[%c1, %c0_3] : memref<2x128xf32, #tpu.memory_space<vmem>>, vector<1x128xf32>
    %6 = vector.broadcast %5 : vector<1x128xf32> to vector<8x128xf32>
    %7 = arith.addf %4, %6 : vector<8x128xf32>
    %cst = arith.constant 0.000000e+00 : f32
    %8 = vector.broadcast %cst : f32 to vector<8x128xf32>
    %9 = arith.maximumf %7, %8 : vector<8x128xf32>
    %10 = arith.truncf %9 : vector<8x128xf32> to vector<8x128xbf16>
    %c0_4 = arith.constant 0 : index
    %c0_5 = arith.constant 0 : index
    %11 = vector.load %arg3[%c0_4, %c0_5] : memref<8x128xbf16, #tpu.memory_space<vmem>>, vector<8x128xbf16>
    tpu.vector_store %arg3[%c0_4, %c0_5], %10 {strides = array<i32>} : memref<8x128xbf16, #tpu.memory_space<vmem>>, vector<8x128xbf16>,
    return
  }
  func.func @transform_0(%arg0: i32) -> (i32, i32) {
    %c0_i32 = arith.constant 0 : i32
    %c0_i32_0 = arith.constant 0 : i32
    return %arg0, %c0_i32 : i32, i32
  }
  func.func @transform_1(%arg0: i32) -> (i32, i32) {
    %c0_i32 = arith.constant 0 : i32
    %c0_i32_0 = arith.constant 0 : i32
    %c0_i32_1 = arith.constant 0 : i32
    return %c0_i32, %c0_i32_0 : i32, i32
  }
  func.func @transform_2(%arg0: i32) -> (i32, i32) {
    %c0_i32 = arith.constant 0 : i32
    %c0_i32_0 = arith.constant 0 : i32
    return %arg0, %c0_i32 : i32, i32
  }
}

module attributes {stable_mosaic.version = 11 : i64} {
  func.func @kernel(%arg0: i32, %arg1: memref<1x10x10x8xbf16, #tpu.memory_space<vmem>>, %arg2: memref<9x8x8xbf16, #tpu.memory_space<vmem>>, %arg3: memref<64x8xbf16, #tpu.memory_space<vmem>>, %arg4: memref<2x8xf32, #tpu.memory_space<vmem>>) attributes {dimension_semantics = [#tpu.dimension_semantics<arbitrary>], iteration_bounds = array<i64: 2>, scalar_prefetch = 0 : i64, scratch_operands = 0 : i64, tpu.core_type = #tpu.core_type<tc>, window_params = [{transform_indices = @transform_0, window_bounds = array<i64: 1, 10, 10, 8>}, {pipeline_mode = #tpu.pipeline_mode<synchronous>, transform_indices = @transform_1, window_bounds = array<i64: 9, 8, 8>}, {transform_indices = @transform_2, window_bounds = array<i64: 64, 8>}, {pipeline_mode = #tpu.pipeline_mode<synchronous>, transform_indices = @transform_3, window_bounds = array<i64: 2, 8>}]} {
    %c0 = arith.constant 0 : index
    %c0_0 = arith.constant 0 : index
    %c0_1 = arith.constant 0 : index
    %c0_2 = arith.constant 0 : index
    %0 = vector.load %arg1[%c0, %c0_0, %c0_1, %c0_2] : memref<1x10x10x8xbf16, #tpu.memory_space<vmem>>, vector<1x8x8x8xbf16>
    %1 = vector.shape_cast %0 : vector<1x8x8x8xbf16> to vector<8x8x8xbf16>
    %2 = vector.shape_cast %1 : vector<8x8x8xbf16> to vector<64x8xbf16>
    %c0_3 = arith.constant 0 : index
    %c0_4 = arith.constant 0 : index
    %c0_5 = arith.constant 0 : index
    %3 = vector.load %arg2[%c0_3, %c0_4, %c0_5] : memref<9x8x8xbf16, #tpu.memory_space<vmem>>, vector<1x8x8xbf16>
    %4 = vector.shape_cast %3 : vector<1x8x8xbf16> to vector<8x8xbf16>
    %cst = arith.constant dense<0.000000e+00> : vector<64x8xf32>
    %5 = tpu.matmul %2, %4, %cst {dimension_numbers = #tpu.dot_dimension_numbers<[1], [0], [0], [1], [0, 0, 1, 1], [], []>} : vector<64x8xbf16>, vector<8x8xbf16>, vector<64x8xf32> -> vector<64x8xf32>
    %c0_6 = arith.constant 0 : index
    %c0_7 = arith.constant 0 : index
    %c1 = arith.constant 1 : index
    %c0_8 = arith.constant 0 : index
    %6 = vector.load %arg1[%c0_6, %c0_7, %c1, %c0_8] : memref<1x10x10x8xbf16, #tpu.memory_space<vmem>>, vector<1x8x8x8xbf16>
    %7 = vector.shape_cast %6 : vector<1x8x8x8xbf16> to vector<8x8x8xbf16>
    %8 = vector.shape_cast %7 : vector<8x8x8xbf16> to vector<64x8xbf16>
    %c1_9 = arith.constant 1 : index
    %c0_10 = arith.constant 0 : index
    %c0_11 = arith.constant 0 : index
    %9 = vector.load %arg2[%c1_9, %c0_10, %c0_11] : memref<9x8x8xbf16, #tpu.memory_space<vmem>>, vector<1x8x8xbf16>
    %10 = vector.shape_cast %9 : vector<1x8x8xbf16> to vector<8x8xbf16>
    %cst_12 = arith.constant dense<0.000000e+00> : vector<64x8xf32>
    %11 = tpu.matmul %8, %10, %cst_12 {dimension_numbers = #tpu.dot_dimension_numbers<[1], [0], [0], [1], [0, 0, 1, 1], [], []>} : vector<64x8xbf16>, vector<8x8xbf16>, vector<64x8xf32> -> vector<64x8xf32>
    %12 = arith.addf %5, %11 : vector<64x8xf32>
    %c0_13 = arith.constant 0 : index
    %c0_14 = arith.constant 0 : index
    %c2 = arith.constant 2 : index
    %c0_15 = arith.constant 0 : index
    %13 = vector.load %arg1[%c0_13, %c0_14, %c2, %c0_15] : memref<1x10x10x8xbf16, #tpu.memory_space<vmem>>, vector<1x8x8x8xbf16>
    %14 = vector.shape_cast %13 : vector<1x8x8x8xbf16> to vector<8x8x8xbf16>
    %15 = vector.shape_cast %14 : vector<8x8x8xbf16> to vector<64x8xbf16>
    %c2_16 = arith.constant 2 : index
    %c0_17 = arith.constant 0 : index
    %c0_18 = arith.constant 0 : index
    %16 = vector.load %arg2[%c2_16, %c0_17, %c0_18] : memref<9x8x8xbf16, #tpu.memory_space<vmem>>, vector<1x8x8xbf16>
    %17 = vector.shape_cast %16 : vector<1x8x8xbf16> to vector<8x8xbf16>
    %cst_19 = arith.constant dense<0.000000e+00> : vector<64x8xf32>
    %18 = tpu.matmul %15, %17, %cst_19 {dimension_numbers = #tpu.dot_dimension_numbers<[1], [0], [0], [1], [0, 0, 1, 1], [], []>} : vector<64x8xbf16>, vector<8x8xbf16>, vector<64x8xf32> -> vector<64x8xf32>
    %19 = arith.addf %12, %18 : vector<64x8xf32>
    %c0_20 = arith.constant 0 : index
    %c1_21 = arith.constant 1 : index
    %c0_22 = arith.constant 0 : index
    %c0_23 = arith.constant 0 : index
    %20 = vector.load %arg1[%c0_20, %c1_21, %c0_22, %c0_23] : memref<1x10x10x8xbf16, #tpu.memory_space<vmem>>, vector<1x8x8x8xbf16>
    %21 = vector.shape_cast %20 : vector<1x8x8x8xbf16> to vector<8x8x8xbf16>
    %22 = vector.shape_cast %21 : vector<8x8x8xbf16> to vector<64x8xbf16>
    %c3 = arith.constant 3 : index
    %c0_24 = arith.constant 0 : index
    %c0_25 = arith.constant 0 : index
    %23 = vector.load %arg2[%c3, %c0_24, %c0_25] : memref<9x8x8xbf16, #tpu.memory_space<vmem>>, vector<1x8x8xbf16>
    %24 = vector.shape_cast %23 : vector<1x8x8xbf16> to vector<8x8xbf16>
    %cst_26 = arith.constant dense<0.000000e+00> : vector<64x8xf32>
    %25 = tpu.matmul %22, %24, %cst_26 {dimension_numbers = #tpu.dot_dimension_numbers<[1], [0], [0], [1], [0, 0, 1, 1], [], []>} : vector<64x8xbf16>, vector<8x8xbf16>, vector<64x8xf32> -> vector<64x8xf32>
    %26 = arith.addf %19, %25 : vector<64x8xf32>
    %c0_27 = arith.constant 0 : index
    %c1_28 = arith.constant 1 : index
    %c1_29 = arith.constant 1 : index
    %c0_30 = arith.constant 0 : index
    %27 = vector.load %arg1[%c0_27, %c1_28, %c1_29, %c0_30] : memref<1x10x10x8xbf16, #tpu.memory_space<vmem>>, vector<1x8x8x8xbf16>
    %28 = vector.shape_cast %27 : vector<1x8x8x8xbf16> to vector<8x8x8xbf16>
    %29 = vector.shape_cast %28 : vector<8x8x8xbf16> to vector<64x8xbf16>
    %c4 = arith.constant 4 : index
    %c0_31 = arith.constant 0 : index
    %c0_32 = arith.constant 0 : index
    %30 = vector.load %arg2[%c4, %c0_31, %c0_32] : memref<9x8x8xbf16, #tpu.memory_space<vmem>>, vector<1x8x8xbf16>
    %31 = vector.shape_cast %30 : vector<1x8x8xbf16> to vector<8x8xbf16>
    %cst_33 = arith.constant dense<0.000000e+00> : vector<64x8xf32>
    %32 = tpu.matmul %29, %31, %cst_33 {dimension_numbers = #tpu.dot_dimension_numbers<[1], [0], [0], [1], [0, 0, 1, 1], [], []>} : vector<64x8xbf16>, vector<8x8xbf16>, vector<64x8xf32> -> vector<64x8xf32>
    %33 = arith.addf %26, %32 : vector<64x8xf32>
    %c0_34 = arith.constant 0 : index
    %c1_35 = arith.constant 1 : index
    %c2_36 = arith.constant 2 : index
    %c0_37 = arith.constant 0 : index
    %34 = vector.load %arg1[%c0_34, %c1_35, %c2_36, %c0_37] : memref<1x10x10x8xbf16, #tpu.memory_space<vmem>>, vector<1x8x8x8xbf16>
    %35 = vector.shape_cast %34 : vector<1x8x8x8xbf16> to vector<8x8x8xbf16>
    %36 = vector.shape_cast %35 : vector<8x8x8xbf16> to vector<64x8xbf16>
    %c5 = arith.constant 5 : index
    %c0_38 = arith.constant 0 : index
    %c0_39 = arith.constant 0 : index
    %37 = vector.load %arg2[%c5, %c0_38, %c0_39] : memref<9x8x8xbf16, #tpu.memory_space<vmem>>, vector<1x8x8xbf16>
    %38 = vector.shape_cast %37 : vector<1x8x8xbf16> to vector<8x8xbf16>
    %cst_40 = arith.constant dense<0.000000e+00> : vector<64x8xf32>
    %39 = tpu.matmul %36, %38, %cst_40 {dimension_numbers = #tpu.dot_dimension_numbers<[1], [0], [0], [1], [0, 0, 1, 1], [], []>} : vector<64x8xbf16>, vector<8x8xbf16>, vector<64x8xf32> -> vector<64x8xf32>
    %40 = arith.addf %33, %39 : vector<64x8xf32>
    %c0_41 = arith.constant 0 : index
    %c2_42 = arith.constant 2 : index
    %c0_43 = arith.constant 0 : index
    %c0_44 = arith.constant 0 : index
    %41 = vector.load %arg1[%c0_41, %c2_42, %c0_43, %c0_44] : memref<1x10x10x8xbf16, #tpu.memory_space<vmem>>, vector<1x8x8x8xbf16>
    %42 = vector.shape_cast %41 : vector<1x8x8x8xbf16> to vector<8x8x8xbf16>
    %43 = vector.shape_cast %42 : vector<8x8x8xbf16> to vector<64x8xbf16>
    %c6 = arith.constant 6 : index
    %c0_45 = arith.constant 0 : index
    %c0_46 = arith.constant 0 : index
    %44 = vector.load %arg2[%c6, %c0_45, %c0_46] : memref<9x8x8xbf16, #tpu.memory_space<vmem>>, vector<1x8x8xbf16>
    %45 = vector.shape_cast %44 : vector<1x8x8xbf16> to vector<8x8xbf16>
    %cst_47 = arith.constant dense<0.000000e+00> : vector<64x8xf32>
    %46 = tpu.matmul %43, %45, %cst_47 {dimension_numbers = #tpu.dot_dimension_numbers<[1], [0], [0], [1], [0, 0, 1, 1], [], []>} : vector<64x8xbf16>, vector<8x8xbf16>, vector<64x8xf32> -> vector<64x8xf32>
    %47 = arith.addf %40, %46 : vector<64x8xf32>
    %c0_48 = arith.constant 0 : index
    %c2_49 = arith.constant 2 : index
    %c1_50 = arith.constant 1 : index
    %c0_51 = arith.constant 0 : index
    %48 = vector.load %arg1[%c0_48, %c2_49, %c1_50, %c0_51] : memref<1x10x10x8xbf16, #tpu.memory_space<vmem>>, vector<1x8x8x8xbf16>
    %49 = vector.shape_cast %48 : vector<1x8x8x8xbf16> to vector<8x8x8xbf16>
    %50 = vector.shape_cast %49 : vector<8x8x8xbf16> to vector<64x8xbf16>
    %c7 = arith.constant 7 : index
    %c0_52 = arith.constant 0 : index
    %c0_53 = arith.constant 0 : index
    %51 = vector.load %arg2[%c7, %c0_52, %c0_53] : memref<9x8x8xbf16, #tpu.memory_space<vmem>>, vector<1x8x8xbf16>
    %52 = vector.shape_cast %51 : vector<1x8x8xbf16> to vector<8x8xbf16>
    %cst_54 = arith.constant dense<0.000000e+00> : vector<64x8xf32>
    %53 = tpu.matmul %50, %52, %cst_54 {dimension_numbers = #tpu.dot_dimension_numbers<[1], [0], [0], [1], [0, 0, 1, 1], [], []>} : vector<64x8xbf16>, vector<8x8xbf16>, vector<64x8xf32> -> vector<64x8xf32>
    %54 = arith.addf %47, %53 : vector<64x8xf32>
    %c0_55 = arith.constant 0 : index
    %c2_56 = arith.constant 2 : index
    %c2_57 = arith.constant 2 : index
    %c0_58 = arith.constant 0 : index
    %55 = vector.load %arg1[%c0_55, %c2_56, %c2_57, %c0_58] : memref<1x10x10x8xbf16, #tpu.memory_space<vmem>>, vector<1x8x8x8xbf16>
    %56 = vector.shape_cast %55 : vector<1x8x8x8xbf16> to vector<8x8x8xbf16>
    %57 = vector.shape_cast %56 : vector<8x8x8xbf16> to vector<64x8xbf16>
    %c8 = arith.constant 8 : index
    %c0_59 = arith.constant 0 : index
    %c0_60 = arith.constant 0 : index
    %58 = vector.load %arg2[%c8, %c0_59, %c0_60] : memref<9x8x8xbf16, #tpu.memory_space<vmem>>, vector<1x8x8xbf16>
    %59 = vector.shape_cast %58 : vector<1x8x8xbf16> to vector<8x8xbf16>
    %cst_61 = arith.constant dense<0.000000e+00> : vector<64x8xf32>
    %60 = tpu.matmul %57, %59, %cst_61 {dimension_numbers = #tpu.dot_dimension_numbers<[1], [0], [0], [1], [0, 0, 1, 1], [], []>} : vector<64x8xbf16>, vector<8x8xbf16>, vector<64x8xf32> -> vector<64x8xf32>
    %61 = arith.addf %54, %60 : vector<64x8xf32>
    %62 = arith.truncf %61 : vector<64x8xf32> to vector<64x8xbf16>
    %c0_62 = arith.constant 0 : index
    %c0_63 = arith.constant 0 : index
    %63 = vector.load %arg3[%c0_62, %c0_63] : memref<64x8xbf16, #tpu.memory_space<vmem>>, vector<64x8xbf16>
    tpu.vector_store %arg3[%c0_62, %c0_63], %62 {strides = array<i32>} : memref<64x8xbf16, #tpu.memory_space<vmem>>, vector<64x8xbf16>,
    %c0_i32 = arith.constant 0 : i32
    %64 = arith.cmpi eq, %arg0, %c0_i32 : i32
    %65 = arith.extui %64 : i1 to i32
    %c0_i32_64 = arith.constant 0 : i32
    %66 = arith.cmpi ne, %65, %c0_i32_64 : i32
    scf.if %66 {
      %cst_75 = arith.constant 0.000000e+00 : f32
      %78 = vector.broadcast %cst_75 : f32 to vector<2x8xf32>
      %c0_76 = arith.constant 0 : index
      %c0_77 = arith.constant 0 : index
      %79 = vector.load %arg4[%c0_76, %c0_77] : memref<2x8xf32, #tpu.memory_space<vmem>>, vector<2x8xf32>
      tpu.vector_store %arg4[%c0_76, %c0_77], %78 {strides = array<i32>} : memref<2x8xf32, #tpu.memory_space<vmem>>, vector<2x8xf32>,
    } else {
    }
    %c0_65 = arith.constant 0 : index
    %c0_66 = arith.constant 0 : index
    %67 = vector.load %arg4[%c0_65, %c0_66] : memref<2x8xf32, #tpu.memory_space<vmem>>, vector<1x8xf32>
    %cst_67 = arith.constant dense<0.000000e+00> : vector<8xf32>
    %68 = vector.multi_reduction <add>, %61, %cst_67 [0] : vector<64x8xf32> to vector<8xf32>
    %69 = vector.shape_cast %68 : vector<8xf32> to vector<1x8xf32>
    %70 = arith.addf %67, %69 : vector<1x8xf32>
    %c0_68 = arith.constant 0 : index
    %c0_69 = arith.constant 0 : index
    %71 = vector.load %arg4[%c0_68, %c0_69] : memref<2x8xf32, #tpu.memory_space<vmem>>, vector<1x8xf32>
    tpu.vector_store %arg4[%c0_68, %c0_69], %70 {strides = array<i32>} : memref<2x8xf32, #tpu.memory_space<vmem>>, vector<1x8xf32>,
    %c1_70 = arith.constant 1 : index
    %c0_71 = arith.constant 0 : index
    %72 = vector.load %arg4[%c1_70, %c0_71] : memref<2x8xf32, #tpu.memory_space<vmem>>, vector<1x8xf32>
    %73 = arith.mulf %61, %61 : vector<64x8xf32>
    %cst_72 = arith.constant dense<0.000000e+00> : vector<8xf32>
    %74 = vector.multi_reduction <add>, %73, %cst_72 [0] : vector<64x8xf32> to vector<8xf32>
    %75 = vector.shape_cast %74 : vector<8xf32> to vector<1x8xf32>
    %76 = arith.addf %72, %75 : vector<1x8xf32>
    %c1_73 = arith.constant 1 : index
    %c0_74 = arith.constant 0 : index
    %77 = vector.load %arg4[%c1_73, %c0_74] : memref<2x8xf32, #tpu.memory_space<vmem>>, vector<1x8xf32>
    tpu.vector_store %arg4[%c1_73, %c0_74], %76 {strides = array<i32>} : memref<2x8xf32, #tpu.memory_space<vmem>>, vector<1x8xf32>,
    return
  }
  func.func @transform_0(%arg0: i32) -> (i32, i32, i32, i32) {
    %c0_i32 = arith.constant 0 : i32
    %c0_i32_0 = arith.constant 0 : i32
    %c0_i32_1 = arith.constant 0 : i32
    %c0_i32_2 = arith.constant 0 : i32
    return %arg0, %c0_i32, %c0_i32_0, %c0_i32_1 : i32, i32, i32, i32
  }
  func.func @transform_1(%arg0: i32) -> (i32, i32, i32) {
    %c0_i32 = arith.constant 0 : i32
    %c0_i32_0 = arith.constant 0 : i32
    %c0_i32_1 = arith.constant 0 : i32
    %c0_i32_2 = arith.constant 0 : i32
    return %c0_i32, %c0_i32_0, %c0_i32_1 : i32, i32, i32
  }
  func.func @transform_2(%arg0: i32) -> (i32, i32) {
    %c0_i32 = arith.constant 0 : i32
    %c0_i32_0 = arith.constant 0 : i32
    return %arg0, %c0_i32 : i32, i32
  }
  func.func @transform_3(%arg0: i32) -> (i32, i32) {
    %c0_i32 = arith.constant 0 : i32
    %c0_i32_0 = arith.constant 0 : i32
    %c0_i32_1 = arith.constant 0 : i32
    return %c0_i32, %c0_i32_0 : i32, i32
  }
}

module attributes {stable_mosaic.version = 11 : i64} {
  func.func @_affine_skip_relu_kernel(%arg0: i32, %arg1: memref<8x128xbf16, #tpu.memory_space<vmem>>, %arg2: memref<2x128xf32, #tpu.memory_space<vmem>>, %arg3: memref<8x64xbf16, #tpu.memory_space<vmem>>, %arg4: memref<64x128xbf16, #tpu.memory_space<vmem>>, %arg5: memref<8x128xbf16, #tpu.memory_space<vmem>>) attributes {dimension_semantics = [#tpu.dimension_semantics<parallel>], iteration_bounds = array<i64: 1>, scalar_prefetch = 0 : i64, scratch_operands = 0 : i64, tpu.core_type = #tpu.core_type<tc>, window_params = [{transform_indices = @transform_0, window_bounds = array<i64: 8, 128>}, {pipeline_mode = #tpu.pipeline_mode<synchronous>, transform_indices = @transform_1, window_bounds = array<i64: 2, 128>}, {transform_indices = @transform_2, window_bounds = array<i64: 8, 64>}, {pipeline_mode = #tpu.pipeline_mode<synchronous>, transform_indices = @transform_3, window_bounds = array<i64: 64, 128>}, {transform_indices = @transform_4, window_bounds = array<i64: 8, 128>}]} {
    %c0 = arith.constant 0 : index
    %c0_0 = arith.constant 0 : index
    %0 = vector.load %arg1[%c0, %c0_0] : memref<8x128xbf16, #tpu.memory_space<vmem>>, vector<8x128xbf16>
    %1 = arith.extf %0 : vector<8x128xbf16> to vector<8x128xf32>
    %c0_1 = arith.constant 0 : index
    %c0_2 = arith.constant 0 : index
    %2 = vector.load %arg3[%c0_1, %c0_2] : memref<8x64xbf16, #tpu.memory_space<vmem>>, vector<8x64xbf16>
    %c0_3 = arith.constant 0 : index
    %c0_4 = arith.constant 0 : index
    %3 = vector.load %arg4[%c0_3, %c0_4] : memref<64x128xbf16, #tpu.memory_space<vmem>>, vector<64x128xbf16>
    %cst = arith.constant dense<0.000000e+00> : vector<8x128xf32>
    %4 = tpu.matmul %2, %3, %cst {dimension_numbers = #tpu.dot_dimension_numbers<[1], [0], [0], [1], [0, 0, 1, 1], [], []>} : vector<8x64xbf16>, vector<64x128xbf16>, vector<8x128xf32> -> vector<8x128xf32>
    %c0_5 = arith.constant 0 : index
    %c0_6 = arith.constant 0 : index
    %5 = vector.load %arg2[%c0_5, %c0_6] : memref<2x128xf32, #tpu.memory_space<vmem>>, vector<1x128xf32>
    %6 = vector.broadcast %5 : vector<1x128xf32> to vector<8x128xf32>
    %7 = arith.mulf %1, %6 : vector<8x128xf32>
    %c1 = arith.constant 1 : index
    %c0_7 = arith.constant 0 : index
    %8 = vector.load %arg2[%c1, %c0_7] : memref<2x128xf32, #tpu.memory_space<vmem>>, vector<1x128xf32>
    %9 = vector.broadcast %8 : vector<1x128xf32> to vector<8x128xf32>
    %10 = arith.addf %7, %9 : vector<8x128xf32>
    %11 = arith.addf %10, %4 : vector<8x128xf32>
    %cst_8 = arith.constant 0.000000e+00 : f32
    %12 = vector.broadcast %cst_8 : f32 to vector<8x128xf32>
    %13 = arith.maximumf %11, %12 : vector<8x128xf32>
    %14 = arith.truncf %13 : vector<8x128xf32> to vector<8x128xbf16>
    %c0_9 = arith.constant 0 : index
    %c0_10 = arith.constant 0 : index
    %15 = vector.load %arg5[%c0_9, %c0_10] : memref<8x128xbf16, #tpu.memory_space<vmem>>, vector<8x128xbf16>
    tpu.vector_store %arg5[%c0_9, %c0_10], %14 {strides = array<i32>} : memref<8x128xbf16, #tpu.memory_space<vmem>>, vector<8x128xbf16>,
    return
  }
  func.func @transform_0(%arg0: i32) -> (i32, i32) {
    %c0_i32 = arith.constant 0 : i32
    %c0_i32_0 = arith.constant 0 : i32
    return %arg0, %c0_i32 : i32, i32
  }
  func.func @transform_1(%arg0: i32) -> (i32, i32) {
    %c0_i32 = arith.constant 0 : i32
    %c0_i32_0 = arith.constant 0 : i32
    %c0_i32_1 = arith.constant 0 : i32
    return %c0_i32, %c0_i32_0 : i32, i32
  }
  func.func @transform_2(%arg0: i32) -> (i32, i32) {
    %c0_i32 = arith.constant 0 : i32
    %c0_i32_0 = arith.constant 0 : i32
    return %arg0, %c0_i32 : i32, i32
  }
  func.func @transform_3(%arg0: i32) -> (i32, i32) {
    %c0_i32 = arith.constant 0 : i32
    %c0_i32_0 = arith.constant 0 : i32
    %c0_i32_1 = arith.constant 0 : i32
    return %c0_i32, %c0_i32_0 : i32, i32
  }
  func.func @transform_4(%arg0: i32) -> (i32, i32) {
    %c0_i32 = arith.constant 0 : i32
    %c0_i32_0 = arith.constant 0 : i32
    return %arg0, %c0_i32 : i32, i32
  }
}

module attributes {stable_mosaic.version = 11 : i64} {
  func.func @_affine_skip_relu_kernel(%arg0: i32, %arg1: memref<8x128xbf16, #tpu.memory_space<vmem>>, %arg2: memref<2x128xf32, #tpu.memory_space<vmem>>, %arg3: memref<8x128xbf16, #tpu.memory_space<vmem>>, %arg4: memref<128x128xbf16, #tpu.memory_space<vmem>>, %arg5: memref<8x128xf32, #tpu.memory_space<vmem>>) attributes {dimension_semantics = [#tpu.dimension_semantics<parallel>], iteration_bounds = array<i64: 1>, scalar_prefetch = 0 : i64, scratch_operands = 0 : i64, tpu.core_type = #tpu.core_type<tc>, window_params = [{transform_indices = @transform_0, window_bounds = array<i64: 8, 128>}, {pipeline_mode = #tpu.pipeline_mode<synchronous>, transform_indices = @transform_1, window_bounds = array<i64: 2, 128>}, {transform_indices = @transform_2, window_bounds = array<i64: 8, 128>}, {pipeline_mode = #tpu.pipeline_mode<synchronous>, transform_indices = @transform_3, window_bounds = array<i64: 128, 128>}, {transform_indices = @transform_4, window_bounds = array<i64: 8, 128>}]} {
    %c0 = arith.constant 0 : index
    %c0_0 = arith.constant 0 : index
    %0 = vector.load %arg1[%c0, %c0_0] : memref<8x128xbf16, #tpu.memory_space<vmem>>, vector<8x128xbf16>
    %1 = arith.extf %0 : vector<8x128xbf16> to vector<8x128xf32>
    %c0_1 = arith.constant 0 : index
    %c0_2 = arith.constant 0 : index
    %2 = vector.load %arg3[%c0_1, %c0_2] : memref<8x128xbf16, #tpu.memory_space<vmem>>, vector<8x128xbf16>
    %c0_3 = arith.constant 0 : index
    %c0_4 = arith.constant 0 : index
    %3 = vector.load %arg4[%c0_3, %c0_4] : memref<128x128xbf16, #tpu.memory_space<vmem>>, vector<128x128xbf16>
    %cst = arith.constant dense<0.000000e+00> : vector<8x128xf32>
    %4 = tpu.matmul %2, %3, %cst {dimension_numbers = #tpu.dot_dimension_numbers<[1], [0], [0], [1], [0, 0, 1, 1], [], []>} : vector<8x128xbf16>, vector<128x128xbf16>, vector<8x128xf32> -> vector<8x128xf32>
    %c0_5 = arith.constant 0 : index
    %c0_6 = arith.constant 0 : index
    %5 = vector.load %arg2[%c0_5, %c0_6] : memref<2x128xf32, #tpu.memory_space<vmem>>, vector<1x128xf32>
    %6 = vector.broadcast %5 : vector<1x128xf32> to vector<8x128xf32>
    %7 = arith.mulf %1, %6 : vector<8x128xf32>
    %c1 = arith.constant 1 : index
    %c0_7 = arith.constant 0 : index
    %8 = vector.load %arg2[%c1, %c0_7] : memref<2x128xf32, #tpu.memory_space<vmem>>, vector<1x128xf32>
    %9 = vector.broadcast %8 : vector<1x128xf32> to vector<8x128xf32>
    %10 = arith.addf %7, %9 : vector<8x128xf32>
    %11 = arith.addf %10, %4 : vector<8x128xf32>
    %cst_8 = arith.constant 0.000000e+00 : f32
    %12 = vector.broadcast %cst_8 : f32 to vector<8x128xf32>
    %13 = arith.maximumf %11, %12 : vector<8x128xf32>
    %c0_9 = arith.constant 0 : index
    %c0_10 = arith.constant 0 : index
    %14 = vector.load %arg5[%c0_9, %c0_10] : memref<8x128xf32, #tpu.memory_space<vmem>>, vector<8x128xf32>
    tpu.vector_store %arg5[%c0_9, %c0_10], %13 {strides = array<i32>} : memref<8x128xf32, #tpu.memory_space<vmem>>, vector<8x128xf32>,
    return
  }
  func.func @transform_0(%arg0: i32) -> (i32, i32) {
    %c0_i32 = arith.constant 0 : i32
    %c0_i32_0 = arith.constant 0 : i32
    return %arg0, %c0_i32 : i32, i32
  }
  func.func @transform_1(%arg0: i32) -> (i32, i32) {
    %c0_i32 = arith.constant 0 : i32
    %c0_i32_0 = arith.constant 0 : i32
    %c0_i32_1 = arith.constant 0 : i32
    return %c0_i32, %c0_i32_0 : i32, i32
  }
  func.func @transform_2(%arg0: i32) -> (i32, i32) {
    %c0_i32 = arith.constant 0 : i32
    %c0_i32_0 = arith.constant 0 : i32
    return %arg0, %c0_i32 : i32, i32
  }
  func.func @transform_3(%arg0: i32) -> (i32, i32) {
    %c0_i32 = arith.constant 0 : i32
    %c0_i32_0 = arith.constant 0 : i32
    %c0_i32_1 = arith.constant 0 : i32
    return %c0_i32, %c0_i32_0 : i32, i32
  }
  func.func @transform_4(%arg0: i32) -> (i32, i32) {
    %c0_i32 = arith.constant 0 : i32
    %c0_i32_0 = arith.constant 0 : i32
    return %arg0, %c0_i32 : i32, i32
  }
}

</mosaic_0001>

<llo_original>
// kernel: tile.47
$region0: #{tile.47}
  #allocation0 [shape = 's32[1]{0}', space=sflag, size = 0x4, scoped, tag = 'scoped memory for tile.47']
  %s0 = inlined_call_operand.vmem [shape: f32[8], index: 0, kind: input, shape index: {}]
  %s1 = inlined_call_operand.vmem [shape: f32[16,8], index: 1, kind: output, shape index: {}]
  // Predicated region
  $region2: #{tile.47} parent=0 // pred_check
    _
  $region3: #{tile.47} parent=0 // pred_check_branch
    %3 = sbr.rel (0) target = $region5
  $region4: #{tile.47} parent=0 // pred_region
    _
  $region5: #{tile.47} parent=0 // pred_fallthru
    _
  %v4 = vld [vmem:[%s0] ss:$0 sm:$0xff]
  %5 = vst [vmem:[%s1] sm:$0xff] %v4
  %s6 = scalar_lea.vmem %s1, 8
  %7 = vst [vmem:[%s6] sm:$0xff] %v4

// kernel: tile.49
$region0: #{tile.49}
  %s0 = inlined_call_operand.vmem [shape: f32[16,8], index: 0, kind: input, shape index: {}]
  %s1 = inlined_call_operand.vmem [shape: f32[1,128], index: 1, kind: output, shape index: {}]
  $region1: #{tile.49} parent=0
    #allocation0 [shape = 'u8[4096]{0}', space=vmem, size = 0x1000, scoped, tag = 'scoped mem for output reshape']
    %v2 = vld [vmem:[%s0] sm:$0x1]
    %vm3 = vcmask 64512
    %4 = vst.msk [vmem:[#allocation0] sm:$0x1] %vm3, %v2
    %s5 = scalar_lea.vmem %s0, 15
    %v6 = vld [vmem:[%s5] sm:$0x1]
    %7 = vrot.lane.b32.xlu0 %v6, 120
    %v8 = vpop.permute.xlu0 %7
    %vm9 = vcmask 1048512
    %10 = vst.msk [vmem:[#allocation0] sm:$0x1] %vm9, %v8
    %s11 = scalar_lea.vmem %s0, 14
    %v12 = vld [vmem:[%s11] sm:$0x1]
    %13 = vrot.lane.b32.xlu0 %v12, 112
    %v14 = vpop.permute.xlu0 %13
    %vm15 = vcmask 982912
    %16 = vst.msk [vmem:[#allocation0] sm:$0x1] %vm15, %v14
    %s17 = scalar_lea.vmem %s0, 13
    %v18 = vld [vmem:[%s17] sm:$0x1]
    %19 = vrot.lane.b32.xlu0 %v18, 104
    %v20 = vpop.permute.xlu0 %19
    %vm21 = vcmask 917312
    %22 = vst.msk [vmem:[#allocation0] sm:$0x1] %vm21, %v20
    %s23 = scalar_lea.vmem %s0, 12
    %v24 = vld [vmem:[%s23] sm:$0x1]
    %25 = vrot.lane.b32.xlu0 %v24, 96
    %v26 = vpop.permute.xlu0 %25
    %vm27 = vcmask 851712
    %28 = vst.msk [vmem:[#allocation0] sm:$0x1] %vm27, %v26
    %s29 = scalar_lea.vmem %s0, 11
    %v30 = vld [vmem:[%s29] sm:$0x1]
    %31 = vrot.lane.b32.xlu0 %v30, 88
    %v32 = vpop.permute.xlu0 %31
    %vm33 = vcmask 786112
    %34 = vst.msk [vmem:[#allocation0] sm:$0x1] %vm33, %v32
    %s35 = scalar_lea.vmem %s0, 10
    %v36 = vld [vmem:[%s35] sm:$0x1]
    %37 = vrot.lane.b32.xlu0 %v36, 80
    %v38 = vpop.permute.xlu0 %37
    %vm39 = vcmask 720512
    %40 = vst.msk [vmem:[#allocation0] sm:$0x1] %vm39, %v38
    %s41 = scalar_lea.vmem %s0, 9
    %v42 = vld [vmem:[%s41] sm:$0x1]
    %43 = vrot.lane.b32.xlu0 %v42, 72
    %v44 = vpop.permute.xlu0 %43
    %vm45 = vcmask 654912
    %46 = vst.msk [vmem:[#allocation0] sm:$0x1] %vm45, %v44
    %s47 = scalar_lea.vmem %s0, 8
    %v48 = vld [vmem:[%s47] sm:$0x1]
    %49 = vrot.lane.b32.xlu0 %v48, 64
    %v50 = vpop.permute.xlu0 %49
    %vm51 = vcmask 589312
    %52 = vst.msk [vmem:[#allocation0] sm:$0x1] %vm51, %v50
    %s53 = scalar_lea.vmem %s0, 7
    %v54 = vld [vmem:[%s53] sm:$0x1]
    %55 = vrot.lane.b32.xlu0 %v54, 56
    %v56 = vpop.permute.xlu0 %55
    %vm57 = vcmask 523712
    %58 = vst.msk [vmem:[#allocation0] sm:$0x1] %vm57, %v56
    %s59 = scalar_lea.vmem %s0, 6
    %v60 = vld [vmem:[%s59] sm:$0x1]
    %61 = vrot.lane.b32.xlu0 %v60, 48
    %v62 = vpop.permute.xlu0 %61
    %vm63 = vcmask 458112
    %64 = vst.msk [vmem:[#allocation0] sm:$0x1] %vm63, %v62
    %s65 = scalar_lea.vmem %s0, 5
    %v66 = vld [vmem:[%s65] sm:$0x1]
    %67 = vrot.lane.b32.xlu0 %v66, 40
    %v68 = vpop.permute.xlu0 %67
    %vm69 = vcmask 392512
    %70 = vst.msk [vmem:[#allocation0] sm:$0x1] %vm69, %v68
    %s71 = scalar_lea.vmem %s0, 4
    %v72 = vld [vmem:[%s71] sm:$0x1]
    %73 = vrot.lane.b32.xlu0 %v72, 32
    %v74 = vpop.permute.xlu0 %73
    %vm75 = vcmask 326912
    %76 = vst.msk [vmem:[#allocation0] sm:$0x1] %vm75, %v74
    %s77 = scalar_lea.vmem %s0, 3
    %v78 = vld [vmem:[%s77] sm:$0x1]
    %79 = vrot.lane.b32.xlu0 %v78, 24
    %v80 = vpop.permute.xlu0 %79
    %vm81 = vcmask 261312
    %82 = vst.msk [vmem:[#allocation0] sm:$0x1] %vm81, %v80
    %s83 = scalar_lea.vmem %s0, 2
    %v84 = vld [vmem:[%s83] sm:$0x1]
    %85 = vrot.lane.b32.xlu0 %v84, 16
    %v86 = vpop.permute.xlu0 %85
    %vm87 = vcmask 195712
    %88 = vst.msk [vmem:[#allocation0] sm:$0x1] %vm87, %v86
    %s89 = scalar_lea.vmem %s0, 1
    %v90 = vld [vmem:[%s89] sm:$0x1]
    %91 = vrot.lane.b32.xlu0 %v90, 8
    %v92 = vpop.permute.xlu0 %91
    %vm93 = vcmask 130112
    %94 = vst.msk [vmem:[#allocation0] sm:$0x1] %vm93, %v92
    %s96 = sshllo.u32 0, 1
    %v98 = vld [vmem:[#allocation0] sm:%s96]
    %s99 = sshllo.u32 0, 1
    %100 = vst [vmem:[%s1] sm:%s99] %v98

// kernel: wy_block.9
$region0: #{wy_block.9}
  #allocation0 [shape = 'u32[]', space=smem, size = 0x4, offset = 0x4, fixed_abs, tag = 'smem constant byte address 0x4 - core index']
  #allocation1 [shape = 'u32[144,128]{1,0:T(1,128)}', space=vmem, size = 0x12000, scoped, tag = 'internal scratch']
  %s0 = inlined_call_operand.vmem [shape: bf16[8,128], index: 0, kind: input, shape index: {}]
  %s1 = inlined_call_operand.vmem [shape: f32[2,128], index: 1, kind: input, shape index: {}]
  %s2 = inlined_call_operand.vmem [shape: bf16[8,128], index: 2, kind: output, shape index: {}]
  %s3 = sld [smem:[#allocation0]]
  $region18: #{wy_block.9} parent=0
    _
  %s5 = ssub.s32 1, %s3
  %s6 = scalar_select 0, %s5, %s3
  // Predicated region
  $region2: #{wy_block.9} parent=0 // pred_check
    _
  $region3: #{wy_block.9} parent=0 // pred_check_branch
    %8 = sbr.rel (0) target = $region5
  $region4: #{wy_block.9} parent=0 // pred_region
    _
  $region5: #{wy_block.9} parent=0 // pred_fallthru
    _
  // Predicated region
  $region6: #{wy_block.9} parent=0 // pred_check
    _
  $region7: #{wy_block.9} parent=0 // pred_check_branch
    %10 = sbr.rel (0) target = $region9
  $region8: #{wy_block.9} parent=0 // pred_region
    _
  $region9: #{wy_block.9} parent=0 // pred_fallthru
    _
  %v11 = vld [vmem:[%s0] sm:$0xf]
  %v12 = vunpack.c.l.bf16 %v11
  %v13 = vld [vmem:[%s1] sm:$0x1]
  %v14 = vlaneseq
  %v15 = vshrl.u32 %v14, 7
  %v16 = vsub.s32 0, %v15
  %v17 = vrot.slane %v13, %v16
  %v18 = vmul.f32 %v12, %v17
  %v19 = vld [vmem:[%s1 + $0x1] sm:$0x1]
  %v20 = vlaneseq
  %v21 = vshrl.u32 %v20, 7
  %v22 = vsub.s32 0, %v21
  %v23 = vrot.slane %v19, %v22
  %v24 = vadd.f32 %v18, %v23
  %v25 = vmax.f32 %v24, 0.0
  %v26 = vpack.c.bf16 %v25, %v25
  %27 = vst [vmem:[%s2] sm:$0xf] %v26
  // Predicated region
  $region10: #{wy_block.9} parent=0 // pred_check
    _
  $region11: #{wy_block.9} parent=0 // pred_check_branch
    %29 = sbr.rel (0) target = $region13
  $region12: #{wy_block.9} parent=0 // pred_region
    _
  $region13: #{wy_block.9} parent=0 // pred_fallthru
    _
  // Predicated region
  $region14: #{wy_block.9} parent=0 // pred_check
    _
  $region15: #{wy_block.9} parent=0 // pred_check_branch
    %31 = sbr.rel (0) target = $region17
  $region16: #{wy_block.9} parent=0 // pred_region
    _
  $region17: #{wy_block.9} parent=0 // pred_fallthru
    _

// kernel: wy_block.8
$region0: #{wy_block.8}
  #allocation0 [shape = 'u32[]', space=smem, size = 0x4, offset = 0x4, fixed_abs, tag = 'smem constant byte address 0x4 - core index']
  #allocation1 [shape = 'u32[144,128]{1,0:T(1,128)}', space=vmem, size = 0x12000, scoped, tag = 'internal scratch']
  %s0 = inlined_call_operand.vmem [shape: bf16[8,9,9,4], index: 0, kind: input, shape index: {}]
  %s1 = inlined_call_operand.vmem [shape: bf16[9,4,8], index: 1, kind: input, shape index: {}]
  %s2 = inlined_call_operand.vmem [shape: bf16[128,8], index: 2, kind: output, shape index: {0}]
  %s3 = inlined_call_operand.vmem [shape: f32[2,8], index: 3, kind: output, shape index: {1}]
  %4 = xla_tuple %s2, %s3
  %s5 = sld [smem:[#allocation0]]
  $region53: #{wy_block.8} parent=0
    _
  %s7 = ssub.s32 1, %s5
  %s8 = scalar_select 0, %s7, %s5
  loop: start=0, step=1, limit=4
  $region2: #{wy_block.8} parent=0 // loop_pre_header
    _
  $region3: #{wy_block.8} parent=0 // loop_header
    %s10 = sphi 0, %s14
    %p11 = scmp.ge.s32.totalorder %s10, 4
    %s20 = sphi 0, %s22
    %s23 = sphi 0, %s20
    %s24 = sphi 0, %s23
    %s40 = sphi 0, %s24
    %s44 = sphi 0, %s44
    %s46 = sphi 0, %s44
    %s47 = sphi 0, %s46
    %s61 = sphi 0, %s47
    %s67 = sphi 0, %s69
    %s70 = sphi 0, %s67
    %s71 = sphi 0, %s70
    %s87 = sphi 0, %s71
    %s91 = sphi 0, %s91
    %s93 = sphi 0, %s91
    %s94 = sphi 0, %s93
    %s108 = sphi 0, %s94
  $region4: #{wy_block.8} parent=0 // loop_header_branch
    %13 = sbr.rel (%p11) target = $region8
  $region5: #{wy_block.8} parent=0 // loop_body
    %s15 = ssub.s32 %s10, 1
    %s16 = ssub.s32 %s10, 2
    %s17 = sadd.s32 %s10, 1
    %s18 = ssub.s32 %s10, %s17
    %p19 = scmp.eq.s32.totalorder %s18, 0
    %s21 = sadd.s32 %s20, 1
    %s22 = scalar_select %p19, %s20, %s21
    %p25 = pneg %p19
    %p26 = scmp.eq.s32.totalorder %s10, 1
    %p27 = por %p25, %p26
    %p28 = scmp.ne.s32.totalorder %s20, %s23
    %p29 = scmp.eq.s32.totalorder %s10, 0
    %p30 = por %p28, %p29
    %p31 = scmp.ne.s32.totalorder %s20, %s23
    %p32 = scmp.eq.s32.totalorder %s15, 1
    %p33 = por %p31, %p32
    %p34 = scmp.ne.s32.totalorder %s23, %s24
    %p35 = scmp.eq.s32.totalorder %s15, 0
    %p36 = por %p34, %p35
    %p37 = scmp.ne.s32.totalorder %s23, %s24
    %p38 = scmp.eq.s32.totalorder %s16, 1
    %p39 = por %p37, %p38
    %p41 = scmp.ne.s32.totalorder %s24, %s40
    %p42 = scmp.eq.s32.totalorder %s16, 0
    %p43 = por %p41, %p42
    %s45 = sadd.s32 %s44, 1
    %p48 = scmp.eq.s32.totalorder %s10, 1
    %p49 = scmp.ne.s32.totalorder %s44, %s46
    %p50 = scmp.eq.s32.totalorder %s10, 0
    %p51 = por %p49, %p50
    %p52 = scmp.ne.s32.totalorder %s44, %s46
    %p53 = scmp.eq.s32.totalorder %s15, 1
    %p54 = por %p52, %p53
    %p55 = scmp.ne.s32.totalorder %s46, %s47
    %p56 = scmp.eq.s32.totalorder %s15, 0
    %p57 = por %p55, %p56
    %p58 = scmp.ne.s32.totalorder %s46, %s47
    %p59 = scmp.eq.s32.totalorder %s16, 1
    %p60 = por %p58, %p59
    %p62 = scmp.ne.s32.totalorder %s47, %s61
    %p63 = scmp.eq.s32.totalorder %s16, 0
    %p64 = por %p62, %p63
    %s65 = ssub.s32 %s10, %s17
    %p66 = scmp.eq.s32.totalorder %s65, 0
    %s68 = sadd.s32 %s67, 1
    %s69 = scalar_select %p66, %s67, %s68
    %p72 = pneg %p66
    %p73 = scmp.eq.s32.totalorder %s10, 1
    %p74 = por %p72, %p73
    %p75 = scmp.ne.s32.totalorder %s67, %s70
    %p76 = scmp.eq.s32.totalorder %s10, 0
    %p77 = por %p75, %p76
    %p78 = scmp.ne.s32.totalorder %s67, %s70
    %p79 = scmp.eq.s32.totalorder %s15, 1
    %p80 = por %p78, %p79
    %p81 = scmp.ne.s32.totalorder %s70, %s71
    %p82 = scmp.eq.s32.totalorder %s15, 0
    %p83 = por %p81, %p82
    %p84 = scmp.ne.s32.totalorder %s70, %s71
    %p85 = scmp.eq.s32.totalorder %s16, 1
    %p86 = por %p84, %p85
    %p88 = scmp.ne.s32.totalorder %s71, %s87
    %p89 = scmp.eq.s32.totalorder %s16, 0
    %p90 = por %p88, %p89
    %s92 = sadd.s32 %s91, 1
    %p95 = scmp.eq.s32.totalorder %s10, 1
    %p96 = scmp.ne.s32.totalorder %s91, %s93
    %p97 = scmp.eq.s32.totalorder %s10, 0
    %p98 = por %p96, %p97
    %p99 = scmp.ne.s32.totalorder %s91, %s93
    %p100 = scmp.eq.s32.totalorder %s15, 1
    %p101 = por %p99, %p100
    %p102 = scmp.ne.s32.totalorder %s93, %s94
    %p103 = scmp.eq.s32.totalorder %s15, 0
    %p104 = por %p102, %p103
    %p105 = scmp.ne.s32.totalorder %s93, %s94
    %p106 = scmp.eq.s32.totalorder %s16, 1
    %p107 = por %p105, %p106
    %p109 = scmp.ne.s32.totalorder %s94, %s108
    %p110 = scmp.eq.s32.totalorder %s16, 0
    %p111 = por %p109, %p110
    %p112 = scmp.le.s32.totalorder 1, %s10
    %p113 = scmp.lt.s32.totalorder %s10, 3
    %p114 = pnand %p112, %p113
    %p115 = pneg %p114
    // Predicated region
    $region9: #{wy_block.8} parent=5 // pred_check
      _
    $region10: #{wy_block.8} parent=5 // pred_check_branch
      %117 = sbr.rel (%p114) target = $region12
    $region11: #{wy_block.8} parent=5 // pred_region
      %s118 = ssub.s32 %s10, 1
      // Predicated region
      $region13: #{wy_block.8} parent=11 // pred_check
        %p119 = pneg %p57
      $region14: #{wy_block.8} parent=11 // pred_check_branch
        %121 = sbr.rel (%p119) target = $region16
      $region15: #{wy_block.8} parent=11 // pred_region
        _
      $region16: #{wy_block.8} parent=11 // pred_fallthru
        _
    $region12: #{wy_block.8} parent=5 // pred_fallthru
      _
    %p122 = scmp.lt.s32.totalorder %s10, 2
    // Predicated region
    $region17: #{wy_block.8} parent=5 // pred_check
      %p123 = pneg %p122
    $region18: #{wy_block.8} parent=5 // pred_check_branch
      %125 = sbr.rel (%p123) target = $region20
    $region19: #{wy_block.8} parent=5 // pred_region
      // Predicated region
      $region21: #{wy_block.8} parent=19 // pred_check
        %p126 = pneg %p30
      $region22: #{wy_block.8} parent=19 // pred_check_branch
        %128 = sbr.rel (%p126) target = $region24
      $region23: #{wy_block.8} parent=19 // pred_region
        %s129 = smul.u32 4, %s10
        %p130 = scmp.lt.s32.totalorder %s129, 7
        %s131 = scalar_select %p130, %s129, 7
        %s132 = smul.addr %s131, 18
        %s133 = smul.addr %s132, 4
        %s134 = scalar_lea.vmem %s0, %s133
        %s135 = smul.u32 4, %s10
      $region24: #{wy_block.8} parent=19 // pred_fallthru
        _
    $region20: #{wy_block.8} parent=5 // pred_fallthru
      _
    %p136 = scmp.le.s32.totalorder 1, %s10
    %p137 = scmp.lt.s32.totalorder %s10, 3
    %p138 = pnand %p136, %p137
    %p139 = pneg %p138
    // Predicated region
    $region25: #{wy_block.8} parent=5 // pred_check
      _
    $region26: #{wy_block.8} parent=5 // pred_check_branch
      %141 = sbr.rel (%p138) target = $region28
    $region27: #{wy_block.8} parent=5 // pred_region
      %s142 = ssub.s32 %s10, 1
      %s143 = smul.u32 4, %s15
      %p144 = scmp.lt.s32.totalorder %s143, 7
      %s145 = scalar_select %p144, %s143, 7
      %s146 = smul.addr %s145, 18
      %s147 = smul.addr %s146, 4
      %s148 = scalar_lea.vmem %s0, %s147
      %p149 = pneg %p36
      %p150 = pneg %p33
      %p151 = pneg %p57
      %p152 = pneg %p54
      %p153 = pneg %p83
      %p154 = pneg %p80
      %s155 = smul.u32 8, %s15
      %p156 = scmp.lt.s32.totalorder %s155, 15
      %s157 = scalar_select %p156, %s155, 15
      %s158 = smul.addr %s157, 4
      %s159 = scalar_lea.vmem %s2, %s158
      %p160 = pneg %p104
      %p161 = pneg %p101
      %s162 = smul.u32 4, %s15
      %p163 = scmp.lt.s32.totalorder %s162, 7
      %s164 = scalar_select %p163, %s162, 7
      %s165 = smul.addr %s164, 18
      %s166 = smul.addr %s165, 4
      %s167 = scalar_lea.vmem %s0, %s166
      %s168 = smul.u32 4, %s15
      %s169 = smul.u32 8, %s15
      %p170 = scmp.lt.s32.totalorder %s169, 15
      %s171 = scalar_select %p170, %s169, 15
      %s172 = smul.addr %s171, 4
      %s173 = scalar_lea.vmem %s2, %s172
      %s174 = smul.u32 8, %s15
      %v176 = vld [vmem:[%s167] sm:$0xf]
      %v177 = vld [vmem:[%s167 + $0x8] sm:$0xf]
      %v178 = vld [vmem:[%s167 + $0x10] sm:$0xf]
      %v179 = vld [vmem:[%s167 + $0x18] sm:$0xf]
      %v180 = vld [vmem:[%s167 + $0x20] sm:$0xf]
      %v181 = vld [vmem:[%s167 + $0x28] sm:$0xf]
      %v182 = vld [vmem:[%s167 + $0x30] sm:$0xf]
      %v183 = vld [vmem:[%s167 + $0x38] sm:$0xf]
      %v184 = vld [vmem:[%s1] sm:$0x3]
      %s185 = scalar_lea.vmem %s167, 72
      %v186 = vld [vmem:[%s185] sm:$0xf]
      %v187 = vld [vmem:[%s185 + $0x8] sm:$0xf]
      %v188 = vld [vmem:[%s185 + $0x10] sm:$0xf]
      %v189 = vld [vmem:[%s185 + $0x18] sm:$0xf]
      %v190 = vld [vmem:[%s185 + $0x20] sm:$0xf]
      %v191 = vld [vmem:[%s185 + $0x28] sm:$0xf]
      %v192 = vld [vmem:[%s185 + $0x30] sm:$0xf]
      %v193 = vld [vmem:[%s185 + $0x38] sm:$0xf]
      %s194 = scalar_lea.vmem %s1, 2
      %v195 = vld [vmem:[%s194] sm:$0x3]
      %v204 = vunpack.c.l.b16 %v186
      %v205 = vunpack.c.l.b16 %v187
      %v206 = vunpack.c.l.b16 %v188
      %v207 = vunpack.c.l.b16 %v189
      %v208 = vunpack.c.l.b16 %v190
      %v209 = vunpack.c.l.b16 %v191
      %v210 = vunpack.c.l.b16 %v192
      %v211 = vunpack.c.l.b16 %v193
      %v212 = vpack.c.b16 %v205, %v204
      %v213 = vpack.c.b16 %v207, %v206
      %v214 = vpack.c.b16 %v209, %v208
      %v215 = vpack.c.b16 %v211, %v210
      %vm216 = vcmask 31744
      %v218 = vsel %vm216, %v212, 0
      %v221 = vsel %vm216, %v213, 0
      %v224 = vsel %vm216, %v214, 0
      %v227 = vsel %vm216, %v215, 0
      %vm229 = vcmask 1041408
      %v231 = vsel %vm229, %v195, 0
      %233 = vmatprep.subr.bf16.mxu0 0
      %234 = vmatpush1.bf16.msra.mxu0 %v231
      %235 = vmatprep.subr.bf16.mxu0 0
      %236 = vmatpush1.bf16.msra.mxu0 0
      %237 = vmatprep.subr.bf16.mxu0 0
      %238 = vmatpush1.bf16.msra.mxu0 0
      %239 = vmatprep.subr.bf16.mxu0 0
      %240 = vmatpush1.bf16.msra.mxu0 0
      %241 = vmatprep.subr.bf16.mxu0 0
      %242 = vmatpush1.bf16.msra.mxu0 0
      %243 = vmatprep.subr.bf16.mxu0 0
      %244 = vmatpush1.bf16.msra.mxu0 0
      %245 = vmatprep.subr.bf16.mxu0 0
      %246 = vmatpush1.bf16.msra.mxu0 0
      %247 = vmatprep.subr.bf16.mxu0 0
      %248 = vmatpush1.bf16.msra.mxu0 0
      %249 = vmatprep.subr.bf16.mxu0 0
      %250 = vmatpush1.bf16.msra.mxu0 0
      %251 = vmatprep.subr.bf16.mxu0 0
      %252 = vmatpush1.bf16.msra.mxu0 0
      %253 = vmatprep.subr.bf16.mxu0 0
      %254 = vmatpush1.bf16.msra.mxu0 0
      %255 = vmatprep.subr.bf16.mxu0 0
      %256 = vmatpush1.bf16.msra.mxu0 0
      %257 = vmatprep.subr.bf16.mxu0 0
      %258 = vmatpush1.bf16.msra.mxu0 0
      %259 = vmatprep.subr.bf16.mxu0 0
      %260 = vmatpush1.bf16.msra.mxu0 0
      %261 = vmatprep.subr.bf16.mxu0 0
      %262 = vmatpush1.bf16.msra.mxu0 0
      %263 = vmatprep.subr.bf16.mxu0 0
      %264 = vmatpush1.bf16.msra.mxu0 0
      %265 = vmatprep.mubr.bf16.mxu0 0
      %266 = vmatmul.mubr.bf16.gmra.mrb[0].mxu0 %v218
      %v267 = vpop.f32.mrb[0].mxu0
      %v268 = vadd.f32 0.0, %v267
      %v269 = vpop.f32.mrb[0].mxu0
      %v270 = vpop.f32.mrb[0].mxu0
      %v271 = vadd.f32 0.0, %v270
      %v272 = vpop.f32.mrb[0].mxu0
      %273 = vmatprep.mubr.bf16.mxu0 0
      %274 = vmatmul.mubr.bf16.gmra.mrb[0].mxu0 %v221
      %v275 = vpop.f32.mrb[0].mxu0
      %v276 = vadd.f32 0.0, %v275
      %v277 = vpop.f32.mrb[0].mxu0
      %v278 = vpop.f32.mrb[0].mxu0
      %v279 = vadd.f32 0.0, %v278
      %v280 = vpop.f32.mrb[0].mxu0
      %281 = vmatprep.mubr.bf16.mxu0 0
      %282 = vmatmul.mubr.bf16.gmra.mrb[0].mxu0 %v224
      %v283 = vpop.f32.mrb[0].mxu0
      %v284 = vadd.f32 0.0, %v283
      %v285 = vpop.f32.mrb[0].mxu0
      %v286 = vpop.f32.mrb[0].mxu0
      %v287 = vadd.f32 0.0, %v286
      %v288 = vpop.f32.mrb[0].mxu0
      %289 = vmatprep.mubr.bf16.mxu0 0
      %290 = vmatmul.mubr.bf16.gmra.mrb[0].mxu0 %v227
      %v291 = vpop.f32.mrb[0].mxu0
      %v292 = vadd.f32 0.0, %v291
      %v293 = vpop.f32.mrb[0].mxu0
      %v294 = vpop.f32.mrb[0].mxu0
      %v295 = vadd.f32 0.0, %v294
      %v296 = vpop.f32.mrb[0].mxu0
      %297 = vdwg.mxu0
      %v306 = vunpack.c.l.b16 %v176
      %v307 = vunpack.c.l.b16 %v177
      %v308 = vunpack.c.l.b16 %v178
      %v309 = vunpack.c.l.b16 %v179
      %v310 = vunpack.c.l.b16 %v180
      %v311 = vunpack.c.l.b16 %v181
      %v312 = vunpack.c.l.b16 %v182
      %v313 = vunpack.c.l.b16 %v183
      %v314 = vpack.c.b16 %v307, %v306
      %v315 = vpack.c.b16 %v309, %v308
      %v316 = vpack.c.b16 %v311, %v310
      %v317 = vpack.c.b16 %v313, %v312
      %v319 = vsel %vm216, %v314, 0
      %v322 = vsel %vm216, %v315, 0
      %v325 = vsel %vm216, %v316, 0
      %v328 = vsel %vm216, %v317, 0
      %v331 = vsel %vm229, %v184, 0
      %333 = vmatprep.subr.bf16.mxu0 0
      %334 = vmatpush1.bf16.msra.mxu0 %v331
      %335 = vmatprep.subr.bf16.mxu0 0
      %336 = vmatpush1.bf16.msra.mxu0 0
      %337 = vmatprep.subr.bf16.mxu0 0
      %338 = vmatpush1.bf16.msra.mxu0 0
      %339 = vmatprep.subr.bf16.mxu0 0
      %340 = vmatpush1.bf16.msra.mxu0 0
      %341 = vmatprep.subr.bf16.mxu0 0
      %342 = vmatpush1.bf16.msra.mxu0 0
      %343 = vmatprep.subr.bf16.mxu0 0
      %344 = vmatpush1.bf16.msra.mxu0 0
      %345 = vmatprep.subr.bf16.mxu0 0
      %346 = vmatpush1.bf16.msra.mxu0 0
      %347 = vmatprep.subr.bf16.mxu0 0
      %348 = vmatpush1.bf16.msra.mxu0 0
      %349 = vmatprep.subr.bf16.mxu0 0
      %350 = vmatpush1.bf16.msra.mxu0 0
      %351 = vmatprep.subr.bf16.mxu0 0
      %352 = vmatpush1.bf16.msra.mxu0 0
      %353 = vmatprep.subr.bf16.mxu0 0
      %354 = vmatpush1.bf16.msra.mxu0 0
      %355 = vmatprep.subr.bf16.mxu0 0
      %356 = vmatpush1.bf16.msra.mxu0 0
      %357 = vmatprep.subr.bf16.mxu0 0
      %358 = vmatpush1.bf16.msra.mxu0 0
      %359 = vmatprep.subr.bf16.mxu0 0
      %360 = vmatpush1.bf16.msra.mxu0 0
      %361 = vmatprep.subr.bf16.mxu0 0
      %362 = vmatpush1.bf16.msra.mxu0 0
      %363 = vmatprep.subr.bf16.mxu0 0
      %364 = vmatpush1.bf16.msra.mxu0 0
      %365 = vmatprep.mubr.bf16.mxu0 0
      %366 = vmatmul.mubr.bf16.gmra.mrb[0].mxu0 %v319
      %v367 = vpop.f32.mrb[0].mxu0
      %v368 = vadd.f32 %v268, %v367
      %v369 = vpop.f32.mrb[0].mxu0
      %v370 = vpop.f32.mrb[0].mxu0
      %v371 = vadd.f32 %v271, %v370
      %v372 = vpop.f32.mrb[0].mxu0
      %373 = vmatprep.mubr.bf16.mxu0 0
      %374 = vmatmul.mubr.bf16.gmra.mrb[0].mxu0 %v322
      %v375 = vpop.f32.mrb[0].mxu0
      %v376 = vadd.f32 %v276, %v375
      %v377 = vpop.f32.mrb[0].mxu0
      %v378 = vpop.f32.mrb[0].mxu0
      %v379 = vadd.f32 %v279, %v378
      %v380 = vpop.f32.mrb[0].mxu0
      %381 = vmatprep.mubr.bf16.mxu0 0
      %382 = vmatmul.mubr.bf16.gmra.mrb[0].mxu0 %v325
      %v383 = vpop.f32.mrb[0].mxu0
      %v384 = vadd.f32 %v284, %v383
      %v385 = vpop.f32.mrb[0].mxu0
      %v386 = vpop.f32.mrb[0].mxu0
      %v387 = vadd.f32 %v287, %v386
      %v388 = vpop.f32.mrb[0].mxu0
      %389 = vmatprep.mubr.bf16.mxu0 0
      %390 = vmatmul.mubr.bf16.gmra.mrb[0].mxu0 %v328
      %v391 = vpop.f32.mrb[0].mxu0
      %v392 = vadd.f32 %v292, %v391
      %v393 = vpop.f32.mrb[0].mxu0
      %v394 = vpop.f32.mrb[0].mxu0
      %v395 = vadd.f32 %v295, %v394
      %v396 = vpop.f32.mrb[0].mxu0
      %397 = vdwg.mxu0
      %v398 = vld [vmem:[%s167] sm:$0xf]
      %v399 = vld [vmem:[%s167 + $0x4] sm:$0x1]
      %v400 = vld [vmem:[%s167 + $0x8] sm:$0xf]
      %v401 = vld [vmem:[%s167 + $0xc] sm:$0x1]
      %v402 = vld [vmem:[%s167 + $0x10] sm:$0xf]
      %v403 = vld [vmem:[%s167 + $0x14] sm:$0x1]
      %v404 = vld [vmem:[%s167 + $0x18] sm:$0xf]
      %v405 = vld [vmem:[%s167 + $0x1c] sm:$0x1]
      %v406 = vld [vmem:[%s167 + $0x20] sm:$0xf]
      %v407 = vld [vmem:[%s167 + $0x24] sm:$0x1]
      %v408 = vld [vmem:[%s167 + $0x28] sm:$0xf]
      %v409 = vld [vmem:[%s167 + $0x2c] sm:$0x1]
      %v410 = vld [vmem:[%s167 + $0x30] sm:$0xf]
      %v411 = vld [vmem:[%s167 + $0x34] sm:$0x1]
      %v412 = vld [vmem:[%s167 + $0x38] sm:$0xf]
      %v413 = vld [vmem:[%s167 + $0x3c] sm:$0x1]
      %vm414 = vsmask.f32 3328
      %vm415 = vsmask.f32 7440
      %vm416 = vmor %vm414, %vm415
      %v418 = vshrl.u32 %v398, 16
      %v420 = vrot.slane %v418, 4
      %v421 = vshll.u32 %v398, 16
      %v423 = vrot.slane %v421, 5
      %v424 = vor.u32 %v420, %v423
      %v425 = vrot.slane %v424, 4
      %v427 = vshll.u32 %v399, 16
      %v429 = vrot.slane %v427, 5
      %v430 = vsel %vm416, %v425, %v429
      %v432 = vshrl.u32 %v400, 16
      %v434 = vrot.slane %v432, 4
      %v435 = vshll.u32 %v400, 16
      %v437 = vrot.slane %v435, 5
      %v438 = vor.u32 %v434, %v437
      %v439 = vrot.slane %v438, 4
      %v441 = vshll.u32 %v401, 16
      %v443 = vrot.slane %v441, 5
      %v444 = vsel %vm416, %v439, %v443
      %v446 = vshrl.u32 %v402, 16
      %v448 = vrot.slane %v446, 4
      %v449 = vshll.u32 %v402, 16
      %v451 = vrot.slane %v449, 5
      %v452 = vor.u32 %v448, %v451
      %v453 = vrot.slane %v452, 4
      %v455 = vshll.u32 %v403, 16
      %v457 = vrot.slane %v455, 5
      %v458 = vsel %vm416, %v453, %v457
      %v460 = vshrl.u32 %v404, 16
      %v462 = vrot.slane %v460, 4
      %v463 = vshll.u32 %v404, 16
      %v465 = vrot.slane %v463, 5
      %v466 = vor.u32 %v462, %v465
      %v467 = vrot.slane %v466, 4
      %v469 = vshll.u32 %v405, 16
      %v471 = vrot.slane %v469, 5
      %v472 = vsel %vm416, %v467, %v471
      %v474 = vshrl.u32 %v406, 16
      %v476 = vrot.slane %v474, 4
      %v477 = vshll.u32 %v406, 16
      %v479 = vrot.slane %v477, 5
      %v480 = vor.u32 %v476, %v479
      %v481 = vrot.slane %v480, 4
      %v483 = vshll.u32 %v407, 16
      %v485 = vrot.slane %v483, 5
      %v486 = vsel %vm416, %v481, %v485
      %v488 = vshrl.u32 %v408, 16
      %v490 = vrot.slane %v488, 4
      %v491 = vshll.u32 %v408, 16
      %v493 = vrot.slane %v491, 5
      %v494 = vor.u32 %v490, %v493
      %v495 = vrot.slane %v494, 4
      %v497 = vshll.u32 %v409, 16
      %v499 = vrot.slane %v497, 5
      %v500 = vsel %vm416, %v495, %v499
      %v502 = vshrl.u32 %v410, 16
      %v504 = vrot.slane %v502, 4
      %v505 = vshll.u32 %v410, 16
      %v507 = vrot.slane %v505, 5
      %v508 = vor.u32 %v504, %v507
      %v509 = vrot.slane %v508, 4
      %v511 = vshll.u32 %v411, 16
      %v513 = vrot.slane %v511, 5
      %v514 = vsel %vm416, %v509, %v513
      %v516 = vshrl.u32 %v412, 16
      %v518 = vrot.slane %v516, 4
      %v519 = vshll.u32 %v412, 16
      %v521 = vrot.slane %v519, 5
      %v522 = vor.u32 %v518, %v521
      %v523 = vrot.slane %v522, 4
      %v525 = vshll.u32 %v413, 16
      %v527 = vrot.slane %v525, 5
      %v528 = vsel %vm416, %v523, %v527
      %s529 = scalar_lea.vmem %s1, 4
      %v530 = vld [vmem:[%s529] sm:$0x3]
      %v531 = vunpack.c.l.b16 %v430
      %v532 = vunpack.c.l.b16 %v444
      %v533 = vunpack.c.l.b16 %v458
      %v534 = vunpack.c.l.b16 %v472
      %v535 = vunpack.c.l.b16 %v486
      %v536 = vunpack.c.l.b16 %v500
      %v537 = vunpack.c.l.b16 %v514
      %v538 = vunpack.c.l.b16 %v528
      %v539 = vpack.c.b16 %v532, %v531
      %v540 = vpack.c.b16 %v534, %v533
      %v541 = vpack.c.b16 %v536, %v535
      %v542 = vpack.c.b16 %v538, %v537
      %v544 = vsel %vm216, %v539, 0
      %v547 = vsel %vm216, %v540, 0
      %v550 = vsel %vm216, %v541, 0
      %v553 = vsel %vm216, %v542, 0
      %v556 = vsel %vm229, %v530, 0
      %558 = vmatprep.subr.bf16.mxu0 0
      %559 = vmatpush1.bf16.msra.mxu0 %v556
      %560 = vmatprep.subr.bf16.mxu0 0
      %561 = vmatpush1.bf16.msra.mxu0 0
      %562 = vmatprep.subr.bf16.mxu0 0
      %563 = vmatpush1.bf16.msra.mxu0 0
      %564 = vmatprep.subr.bf16.mxu0 0
      %565 = vmatpush1.bf16.msra.mxu0 0
      %566 = vmatprep.subr.bf16.mxu0 0
      %567 = vmatpush1.bf16.msra.mxu0 0
      %568 = vmatprep.subr.bf16.mxu0 0
      %569 = vmatpush1.bf16.msra.mxu0 0
      %570 = vmatprep.subr.bf16.mxu0 0
      %571 = vmatpush1.bf16.msra.mxu0 0
      %572 = vmatprep.subr.bf16.mxu0 0
      %573 = vmatpush1.bf16.msra.mxu0 0
      %574 = vmatprep.subr.bf16.mxu0 0
      %575 = vmatpush1.bf16.msra.mxu0 0
      %576 = vmatprep.subr.bf16.mxu0 0
      %577 = vmatpush1.bf16.msra.mxu0 0
      %578 = vmatprep.subr.bf16.mxu0 0
      %579 = vmatpush1.bf16.msra.mxu0 0
      %580 = vmatprep.subr.bf16.mxu0 0
      %581 = vmatpush1.bf16.msra.mxu0 0
      %582 = vmatprep.subr.bf16.mxu0 0
      %583 = vmatpush1.bf16.msra.mxu0 0
      %584 = vmatprep.subr.bf16.mxu0 0
      %585 = vmatpush1.bf16.msra.mxu0 0
      %586 = vmatprep.subr.bf16.mxu0 0
      %587 = vmatpush1.bf16.msra.mxu0 0
      %588 = vmatprep.subr.bf16.mxu0 0
      %589 = vmatpush1.bf16.msra.mxu0 0
      %590 = vmatprep.mubr.bf16.mxu0 0
      %591 = vmatmul.mubr.bf16.gmra.mrb[0].mxu0 %v544
      %v592 = vpop.f32.mrb[0].mxu0
      %v593 = vadd.f32 0.0, %v592
      %v594 = vpop.f32.mrb[0].mxu0
      %v595 = vpop.f32.mrb[0].mxu0
      %v596 = vadd.f32 0.0, %v595
      %v597 = vpop.f32.mrb[0].mxu0
      %598 = vmatprep.mubr.bf16.mxu0 0
      %599 = vmatmul.mubr.bf16.gmra.mrb[0].mxu0 %v547
      %v600 = vpop.f32.mrb[0].mxu0
      %v601 = vadd.f32 0.0, %v600
      %v602 = vpop.f32.mrb[0].mxu0
      %v603 = vpop.f32.mrb[0].mxu0
      %v604 = vadd.f32 0.0, %v603
      %v605 = vpop.f32.mrb[0].mxu0
      %606 = vmatprep.mubr.bf16.mxu0 0
      %607 = vmatmul.mubr.bf16.gmra.mrb[0].mxu0 %v550
      %v608 = vpop.f32.mrb[0].mxu0
      %v609 = vadd.f32 0.0, %v608
      %v610 = vpop.f32.mrb[0].mxu0
      %v611 = vpop.f32.mrb[0].mxu0
      %v612 = vadd.f32 0.0, %v611
      %v613 = vpop.f32.mrb[0].mxu0
      %614 = vmatprep.mubr.bf16.mxu0 0
      %615 = vmatmul.mubr.bf16.gmra.mrb[0].mxu0 %v553
      %v616 = vpop.f32.mrb[0].mxu0
      %v617 = vadd.f32 0.0, %v616
      %v618 = vpop.f32.mrb[0].mxu0
      %v619 = vpop.f32.mrb[0].mxu0
      %v620 = vadd.f32 0.0, %v619
      %v621 = vpop.f32.mrb[0].mxu0
      %622 = vdwg.mxu0
      %v623 = vadd.f32 %v368, %v593
      %v624 = vadd.f32 %v371, %v596
      %v625 = vadd.f32 %v376, %v601
      %v626 = vadd.f32 %v379, %v604
      %v627 = vadd.f32 %v384, %v609
      %v628 = vadd.f32 %v387, %v612
      %v629 = vadd.f32 %v392, %v617
      %v630 = vadd.f32 %v395, %v620
      %s631 = scalar_lea.vmem %s167, 144
      %v632 = vld [vmem:[%s631] sm:$0xf]
      %v633 = vld [vmem:[%s631 + $0x8] sm:$0xf]
      %v634 = vld [vmem:[%s631 + $0x10] sm:$0xf]
      %v635 = vld [vmem:[%s631 + $0x18] sm:$0xf]
      %v636 = vld [vmem:[%s631 + $0x20] sm:$0xf]
      %v637 = vld [vmem:[%s631 + $0x28] sm:$0xf]
      %v638 = vld [vmem:[%s631 + $0x30] sm:$0xf]
      %v639 = vld [vmem:[%s631 + $0x38] sm:$0xf]
      %s640 = scalar_lea.vmem %s1, 6
      %v641 = vld [vmem:[%s640] sm:$0x3]
      %v650 = vunpack.c.l.b16 %v632
      %v651 = vunpack.c.l.b16 %v633
      %v652 = vunpack.c.l.b16 %v634
      %v653 = vunpack.c.l.b16 %v635
      %v654 = vunpack.c.l.b16 %v636
      %v655 = vunpack.c.l.b16 %v637
      %v656 = vunpack.c.l.b16 %v638
      %v657 = vunpack.c.l.b16 %v639
      %v658 = vpack.c.b16 %v651, %v650
      %v659 = vpack.c.b16 %v653, %v652
      %v660 = vpack.c.b16 %v655, %v654
      %v661 = vpack.c.b16 %v657, %v656
      %v663 = vsel %vm216, %v658, 0
      %v666 = vsel %vm216, %v659, 0
      %v669 = vsel %vm216, %v660, 0
      %v672 = vsel %vm216, %v661, 0
      %v675 = vsel %vm229, %v641, 0
      %677 = vmatprep.subr.bf16.mxu0 0
      %678 = vmatpush1.bf16.msra.mxu0 %v675
      %679 = vmatprep.subr.bf16.mxu0 0
      %680 = vmatpush1.bf16.msra.mxu0 0
      %681 = vmatprep.subr.bf16.mxu0 0
      %682 = vmatpush1.bf16.msra.mxu0 0
      %683 = vmatprep.subr.bf16.mxu0 0
      %684 = vmatpush1.bf16.msra.mxu0 0
      %685 = vmatprep.subr.bf16.mxu0 0
      %686 = vmatpush1.bf16.msra.mxu0 0
      %687 = vmatprep.subr.bf16.mxu0 0
      %688 = vmatpush1.bf16.msra.mxu0 0
      %689 = vmatprep.subr.bf16.mxu0 0
      %690 = vmatpush1.bf16.msra.mxu0 0
      %691 = vmatprep.subr.bf16.mxu0 0
      %692 = vmatpush1.bf16.msra.mxu0 0
      %693 = vmatprep.subr.bf16.mxu0 0
      %694 = vmatpush1.bf16.msra.mxu0 0
      %695 = vmatprep.subr.bf16.mxu0 0
      %696 = vmatpush1.bf16.msra.mxu0 0
      %697 = vmatprep.subr.bf16.mxu0 0
      %698 = vmatpush1.bf16.msra.mxu0 0
      %699 = vmatprep.subr.bf16.mxu0 0
      %700 = vmatpush1.bf16.msra.mxu0 0
      %701 = vmatprep.subr.bf16.mxu0 0
      %702 = vmatpush1.bf16.msra.mxu0 0
      %703 = vmatprep.subr.bf16.mxu0 0
      %704 = vmatpush1.bf16.msra.mxu0 0
      %705 = vmatprep.subr.bf16.mxu0 0
      %706 = vmatpush1.bf16.msra.mxu0 0
      %707 = vmatprep.subr.bf16.mxu0 0
      %708 = vmatpush1.bf16.msra.mxu0 0
      %709 = vmatprep.mubr.bf16.mxu0 0
      %710 = vmatmul.mubr.bf16.gmra.mrb[0].mxu0 %v663
      %v711 = vpop.f32.mrb[0].mxu0
      %v712 = vadd.f32 0.0, %v711
      %v713 = vpop.f32.mrb[0].mxu0
      %v714 = vpop.f32.mrb[0].mxu0
      %v715 = vadd.f32 0.0, %v714
      %v716 = vpop.f32.mrb[0].mxu0
      %717 = vmatprep.mubr.bf16.mxu0 0
      %718 = vmatmul.mubr.bf16.gmra.mrb[0].mxu0 %v666
      %v719 = vpop.f32.mrb[0].mxu0
      %v720 = vadd.f32 0.0, %v719
      %v721 = vpop.f32.mrb[0].mxu0
      %v722 = vpop.f32.mrb[0].mxu0
      %v723 = vadd.f32 0.0, %v722
      %v724 = vpop.f32.mrb[0].mxu0
      %725 = vmatprep.mubr.bf16.mxu0 0
      %726 = vmatmul.mubr.bf16.gmra.mrb[0].mxu0 %v669
      %v727 = vpop.f32.mrb[0].mxu0
      %v728 = vadd.f32 0.0, %v727
      %v729 = vpop.f32.mrb[0].mxu0
      %v730 = vpop.f32.mrb[0].mxu0
      %v731 = vadd.f32 0.0, %v730
      %v732 = vpop.f32.mrb[0].mxu0
      %733 = vmatprep.mubr.bf16.mxu0 0
      %734 = vmatmul.mubr.bf16.gmra.mrb[0].mxu0 %v672
      %v735 = vpop.f32.mrb[0].mxu0
      %v736 = vadd.f32 0.0, %v735
      %v737 = vpop.f32.mrb[0].mxu0
      %v738 = vpop.f32.mrb[0].mxu0
      %v739 = vadd.f32 0.0, %v738
      %v740 = vpop.f32.mrb[0].mxu0
      %741 = vdwg.mxu0
      %v742 = vadd.f32 %v623, %v712
      %v743 = vadd.f32 %v624, %v715
      %v744 = vadd.f32 %v625, %v720
      %v745 = vadd.f32 %v626, %v723
      %v746 = vadd.f32 %v627, %v728
      %v747 = vadd.f32 %v628, %v731
      %v748 = vadd.f32 %v629, %v736
      %v749 = vadd.f32 %v630, %v739
      %s750 = scalar_lea.vmem %s167, 216
      %v751 = vld [vmem:[%s750] sm:$0xf]
      %v752 = vld [vmem:[%s750 + $0x8] sm:$0xf]
      %v753 = vld [vmem:[%s750 + $0x10] sm:$0xf]
      %v754 = vld [vmem:[%s750 + $0x18] sm:$0xf]
      %v755 = vld [vmem:[%s750 + $0x20] sm:$0xf]
      %v756 = vld [vmem:[%s750 + $0x28] sm:$0xf]
      %v757 = vld [vmem:[%s750 + $0x30] sm:$0xf]
      %v758 = vld [vmem:[%s750 + $0x38] sm:$0xf]
      %s759 = scalar_lea.vmem %s1, 8
      %v760 = vld [vmem:[%s759] sm:$0x3]
      %v769 = vunpack.c.l.b16 %v751
      %v770 = vunpack.c.l.b16 %v752
      %v771 = vunpack.c.l.b16 %v753
      %v772 = vunpack.c.l.b16 %v754
      %v773 = vunpack.c.l.b16 %v755
      %v774 = vunpack.c.l.b16 %v756
      %v775 = vunpack.c.l.b16 %v757
      %v776 = vunpack.c.l.b16 %v758
      %v777 = vpack.c.b16 %v770, %v769
      %v778 = vpack.c.b16 %v772, %v771
      %v779 = vpack.c.b16 %v774, %v773
      %v780 = vpack.c.b16 %v776, %v775
      %v782 = vsel %vm216, %v777, 0
      %v785 = vsel %vm216, %v778, 0
      %v788 = vsel %vm216, %v779, 0
      %v791 = vsel %vm216, %v780, 0
      %v794 = vsel %vm229, %v760, 0
      %796 = vmatprep.subr.bf16.mxu0 0
      %797 = vmatpush1.bf16.msra.mxu0 %v794
      %798 = vmatprep.subr.bf16.mxu0 0
      %799 = vmatpush1.bf16.msra.mxu0 0
      %800 = vmatprep.subr.bf16.mxu0 0
      %801 = vmatpush1.bf16.msra.mxu0 0
      %802 = vmatprep.subr.bf16.mxu0 0
      %803 = vmatpush1.bf16.msra.mxu0 0
      %804 = vmatprep.subr.bf16.mxu0 0
      %805 = vmatpush1.bf16.msra.mxu0 0
      %806 = vmatprep.subr.bf16.mxu0 0
      %807 = vmatpush1.bf16.msra.mxu0 0
      %808 = vmatprep.subr.bf16.mxu0 0
      %809 = vmatpush1.bf16.msra.mxu0 0
      %810 = vmatprep.subr.bf16.mxu0 0
      %811 = vmatpush1.bf16.msra.mxu0 0
      %812 = vmatprep.subr.bf16.mxu0 0
      %813 = vmatpush1.bf16.msra.mxu0 0
      %814 = vmatprep.subr.bf16.mxu0 0
      %815 = vmatpush1.bf16.msra.mxu0 0
      %816 = vmatprep.subr.bf16.mxu0 0
      %817 = vmatpush1.bf16.msra.mxu0 0
      %818 = vmatprep.subr.bf16.mxu0 0
      %819 = vmatpush1.bf16.msra.mxu0 0
      %820 = vmatprep.subr.bf16.mxu0 0
      %821 = vmatpush1.bf16.msra.mxu0 0
      %822 = vmatprep.subr.bf16.mxu0 0
      %823 = vmatpush1.bf16.msra.mxu0 0
      %824 = vmatprep.subr.bf16.mxu0 0
      %825 = vmatpush1.bf16.msra.mxu0 0
      %826 = vmatprep.subr.bf16.mxu0 0
      %827 = vmatpush1.bf16.msra.mxu0 0
      %828 = vmatprep.mubr.bf16.mxu0 0
      %829 = vmatmul.mubr.bf16.gmra.mrb[0].mxu0 %v782
      %v830 = vpop.f32.mrb[0].mxu0
      %v831 = vadd.f32 0.0, %v830
      %v832 = vpop.f32.mrb[0].mxu0
      %v833 = vpop.f32.mrb[0].mxu0
      %v834 = vadd.f32 0.0, %v833
      %v835 = vpop.f32.mrb[0].mxu0
      %836 = vmatprep.mubr.bf16.mxu0 0
      %837 = vmatmul.mubr.bf16.gmra.mrb[0].mxu0 %v785
      %v838 = vpop.f32.mrb[0].mxu0
      %v839 = vadd.f32 0.0, %v838
      %v840 = vpop.f32.mrb[0].mxu0
      %v841 = vpop.f32.mrb[0].mxu0
      %v842 = vadd.f32 0.0, %v841
      %v843 = vpop.f32.mrb[0].mxu0
      %844 = vmatprep.mubr.bf16.mxu0 0
      %845 = vmatmul.mubr.bf16.gmra.mrb[0].mxu0 %v788
      %v846 = vpop.f32.mrb[0].mxu0
      %v847 = vadd.f32 0.0, %v846
      %v848 = vpop.f32.mrb[0].mxu0
      %v849 = vpop.f32.mrb[0].mxu0
      %v850 = vadd.f32 0.0, %v849
      %v851 = vpop.f32.mrb[0].mxu0
      %852 = vmatprep.mubr.bf16.mxu0 0
      %853 = vmatmul.mubr.bf16.gmra.mrb[0].mxu0 %v791
      %v854 = vpop.f32.mrb[0].mxu0
      %v855 = vadd.f32 0.0, %v854
      %v856 = vpop.f32.mrb[0].mxu0
      %v857 = vpop.f32.mrb[0].mxu0
      %v858 = vadd.f32 0.0, %v857
      %v859 = vpop.f32.mrb[0].mxu0
      %860 = vdwg.mxu0
      %v861 = vadd.f32 %v742, %v831
      %v862 = vadd.f32 %v743, %v834
      %v863 = vadd.f32 %v744, %v839
      %v864 = vadd.f32 %v745, %v842
      %v865 = vadd.f32 %v746, %v847
      %v866 = vadd.f32 %v747, %v850
      %v867 = vadd.f32 %v748, %v855
      %v868 = vadd.f32 %v749, %v858
      %v869 = vld [vmem:[%s631] sm:$0xf]
      %v870 = vld [vmem:[%s631 + $0x4] sm:$0x1]
      %v871 = vld [vmem:[%s631 + $0x8] sm:$0xf]
      %v872 = vld [vmem:[%s631 + $0xc] sm:$0x1]
      %v873 = vld [vmem:[%s631 + $0x10] sm:$0xf]
      %v874 = vld [vmem:[%s631 + $0x14] sm:$0x1]
      %v875 = vld [vmem:[%s631 + $0x18] sm:$0xf]
      %v876 = vld [vmem:[%s631 + $0x1c] sm:$0x1]
      %v877 = vld [vmem:[%s631 + $0x20] sm:$0xf]
      %v878 = vld [vmem:[%s631 + $0x24] sm:$0x1]
      %v879 = vld [vmem:[%s631 + $0x28] sm:$0xf]
      %v880 = vld [vmem:[%s631 + $0x2c] sm:$0x1]
      %v881 = vld [vmem:[%s631 + $0x30] sm:$0xf]
      %v882 = vld [vmem:[%s631 + $0x34] sm:$0x1]
      %v883 = vld [vmem:[%s631 + $0x38] sm:$0xf]
      %v884 = vld [vmem:[%s631 + $0x3c] sm:$0x1]
      %v886 = vshrl.u32 %v869, 16
      %v888 = vrot.slane %v886, 4
      %v889 = vshll.u32 %v869, 16
      %v891 = vrot.slane %v889, 5
      %v892 = vor.u32 %v888, %v891
      %v893 = vrot.slane %v892, 4
      %v895 = vshll.u32 %v870, 16
      %v897 = vrot.slane %v895, 5
      %v898 = vsel %vm416, %v893, %v897
      %v900 = vshrl.u32 %v871, 16
      %v902 = vrot.slane %v900, 4
      %v903 = vshll.u32 %v871, 16
      %v905 = vrot.slane %v903, 5
      %v906 = vor.u32 %v902, %v905
      %v907 = vrot.slane %v906, 4
      %v909 = vshll.u32 %v872, 16
      %v911 = vrot.slane %v909, 5
      %v912 = vsel %vm416, %v907, %v911
      %v914 = vshrl.u32 %v873, 16
      %v916 = vrot.slane %v914, 4
      %v917 = vshll.u32 %v873, 16
      %v919 = vrot.slane %v917, 5
      %v920 = vor.u32 %v916, %v919
      %v921 = vrot.slane %v920, 4
      %v923 = vshll.u32 %v874, 16
      %v925 = vrot.slane %v923, 5
      %v926 = vsel %vm416, %v921, %v925
      %v928 = vshrl.u32 %v875, 16
      %v930 = vrot.slane %v928, 4
      %v931 = vshll.u32 %v875, 16
      %v933 = vrot.slane %v931, 5
      %v934 = vor.u32 %v930, %v933
      %v935 = vrot.slane %v934, 4
      %v937 = vshll.u32 %v876, 16
      %v939 = vrot.slane %v937, 5
      %v940 = vsel %vm416, %v935, %v939
      %v942 = vshrl.u32 %v877, 16
      %v944 = vrot.slane %v942, 4
      %v945 = vshll.u32 %v877, 16
      %v947 = vrot.slane %v945, 5
      %v948 = vor.u32 %v944, %v947
      %v949 = vrot.slane %v948, 4
      %v951 = vshll.u32 %v878, 16
      %v953 = vrot.slane %v951, 5
      %v954 = vsel %vm416, %v949, %v953
      %v956 = vshrl.u32 %v879, 16
      %v958 = vrot.slane %v956, 4
      %v959 = vshll.u32 %v879, 16
      %v961 = vrot.slane %v959, 5
      %v962 = vor.u32 %v958, %v961
      %v963 = vrot.slane %v962, 4
      %v965 = vshll.u32 %v880, 16
      %v967 = vrot.slane %v965, 5
      %v968 = vsel %vm416, %v963, %v967
      %v970 = vshrl.u32 %v881, 16
      %v972 = vrot.slane %v970, 4
      %v973 = vshll.u32 %v881, 16
      %v975 = vrot.slane %v973, 5
      %v976 = vor.u32 %v972, %v975
      %v977 = vrot.slane %v976, 4
      %v979 = vshll.u32 %v882, 16
      %v981 = vrot.slane %v979, 5
      %v982 = vsel %vm416, %v977, %v981
      %v984 = vshrl.u32 %v883, 16
      %v986 = vrot.slane %v984, 4
      %v987 = vshll.u32 %v883, 16
      %v989 = vrot.slane %v987, 5
      %v990 = vor.u32 %v986, %v989
      %v991 = vrot.slane %v990, 4
      %v993 = vshll.u32 %v884, 16
      %v995 = vrot.slane %v993, 5
      %v996 = vsel %vm416, %v991, %v995
      %s997 = scalar_lea.vmem %s1, 10
      %v998 = vld [vmem:[%s997] sm:$0x3]
      %v999 = vunpack.c.l.b16 %v898
      %v1000 = vunpack.c.l.b16 %v912
      %v1001 = vunpack.c.l.b16 %v926
      %v1002 = vunpack.c.l.b16 %v940
      %v1003 = vunpack.c.l.b16 %v954
      %v1004 = vunpack.c.l.b16 %v968
      %v1005 = vunpack.c.l.b16 %v982
      %v1006 = vunpack.c.l.b16 %v996
      %v1007 = vpack.c.b16 %v1000, %v999
      %v1008 = vpack.c.b16 %v1002, %v1001
      %v1009 = vpack.c.b16 %v1004, %v1003
      %v1010 = vpack.c.b16 %v1006, %v1005
      %v1012 = vsel %vm216, %v1007, 0
      %v1015 = vsel %vm216, %v1008, 0
      %v1018 = vsel %vm216, %v1009, 0
      %v1021 = vsel %vm216, %v1010, 0
      %v1024 = vsel %vm229, %v998, 0
      %1026 = vmatprep.subr.bf16.mxu0 0
      %1027 = vmatpush1.bf16.msra.mxu0 %v1024
      %1028 = vmatprep.subr.bf16.mxu0 0
      %1029 = vmatpush1.bf16.msra.mxu0 0
      %1030 = vmatprep.subr.bf16.mxu0 0
      %1031 = vmatpush1.bf16.msra.mxu0 0
      %1032 = vmatprep.subr.bf16.mxu0 0
      %1033 = vmatpush1.bf16.msra.mxu0 0
      %1034 = vmatprep.subr.bf16.mxu0 0
      %1035 = vmatpush1.bf16.msra.mxu0 0
      %1036 = vmatprep.subr.bf16.mxu0 0
      %1037 = vmatpush1.bf16.msra.mxu0 0
      %1038 = vmatprep.subr.bf16.mxu0 0
      %1039 = vmatpush1.bf16.msra.mxu0 0
      %1040 = vmatprep.subr.bf16.mxu0 0
      %1041 = vmatpush1.bf16.msra.mxu0 0
      %1042 = vmatprep.subr.bf16.mxu0 0
      %1043 = vmatpush1.bf16.msra.mxu0 0
      %1044 = vmatprep.subr.bf16.mxu0 0
      %1045 = vmatpush1.bf16.msra.mxu0 0
      %1046 = vmatprep.subr.bf16.mxu0 0
      %1047 = vmatpush1.bf16.msra.mxu0 0
      %1048 = vmatprep.subr.bf16.mxu0 0
      %1049 = vmatpush1.bf16.msra.mxu0 0
      %1050 = vmatprep.subr.bf16.mxu0 0
      %1051 = vmatpush1.bf16.msra.mxu0 0
      %1052 = vmatprep.subr.bf16.mxu0 0
      %1053 = vmatpush1.bf16.msra.mxu0 0
      %1054 = vmatprep.subr.bf16.mxu0 0
      %1055 = vmatpush1.bf16.msra.mxu0 0
      %1056 = vmatprep.subr.bf16.mxu0 0
      %1057 = vmatpush1.bf16.msra.mxu0 0
      %1058 = vmatprep.mubr.bf16.mxu0 0
      %1059 = vmatmul.mubr.bf16.gmra.mrb[0].mxu0 %v1012
      %v1060 = vpop.f32.mrb[0].mxu0
      %v1061 = vadd.f32 0.0, %v1060
      %v1062 = vpop.f32.mrb[0].mxu0
      %v1063 = vpop.f32.mrb[0].mxu0
      %v1064 = vadd.f32 0.0, %v1063
      %v1065 = vpop.f32.mrb[0].mxu0
      %1066 = vmatprep.mubr.bf16.mxu0 0
      %1067 = vmatmul.mubr.bf16.gmra.mrb[0].mxu0 %v1015
      %v1068 = vpop.f32.mrb[0].mxu0
      %v1069 = vadd.f32 0.0, %v1068
      %v1070 = vpop.f32.mrb[0].mxu0
      %v1071 = vpop.f32.mrb[0].mxu0
      %v1072 = vadd.f32 0.0, %v1071
      %v1073 = vpop.f32.mrb[0].mxu0
      %1074 = vmatprep.mubr.bf16.mxu0 0
      %1075 = vmatmul.mubr.bf16.gmra.mrb[0].mxu0 %v1018
      %v1076 = vpop.f32.mrb[0].mxu0
      %v1077 = vadd.f32 0.0, %v1076
      %v1078 = vpop.f32.mrb[0].mxu0
      %v1079 = vpop.f32.mrb[0].mxu0
      %v1080 = vadd.f32 0.0, %v1079
      %v1081 = vpop.f32.mrb[0].mxu0
      %1082 = vmatprep.mubr.bf16.mxu0 0
      %1083 = vmatmul.mubr.bf16.gmra.mrb[0].mxu0 %v1021
      %v1084 = vpop.f32.mrb[0].mxu0
      %v1085 = vadd.f32 0.0, %v1084
      %v1086 = vpop.f32.mrb[0].mxu0
      %v1087 = vpop.f32.mrb[0].mxu0
      %v1088 = vadd.f32 0.0, %v1087
      %v1089 = vpop.f32.mrb[0].mxu0
      %1090 = vdwg.mxu0
      %v1091 = vadd.f32 %v861, %v1061
      %v1092 = vadd.f32 %v862, %v1064
      %v1093 = vadd.f32 %v863, %v1069
      %v1094 = vadd.f32 %v864, %v1072
      %v1095 = vadd.f32 %v865, %v1077
      %v1096 = vadd.f32 %v866, %v1080
      %v1097 = vadd.f32 %v867, %v1085
      %v1098 = vadd.f32 %v868, %v1088
      %s1099 = scalar_lea.vmem %s167, 8
      %v1100 = vld [vmem:[%s1099] sm:$0xf]
      %v1101 = vld [vmem:[%s1099 + $0x8] sm:$0xf]
      %v1102 = vld [vmem:[%s1099 + $0x10] sm:$0xf]
      %v1103 = vld [vmem:[%s1099 + $0x18] sm:$0xf]
      %v1104 = vld [vmem:[%s1099 + $0x20] sm:$0xf]
      %v1105 = vld [vmem:[%s1099 + $0x28] sm:$0xf]
      %v1106 = vld [vmem:[%s1099 + $0x30] sm:$0xf]
      %v1107 = vld [vmem:[%s1099 + $0x38] sm:$0xf]
      %s1108 = scalar_lea.vmem %s1, 12
      %v1109 = vld [vmem:[%s1108] sm:$0x3]
      %v1118 = vunpack.c.l.b16 %v1100
      %v1119 = vunpack.c.l.b16 %v1101
      %v1120 = vunpack.c.l.b16 %v1102
      %v1121 = vunpack.c.l.b16 %v1103
      %v1122 = vunpack.c.l.b16 %v1104
      %v1123 = vunpack.c.l.b16 %v1105
      %v1124 = vunpack.c.l.b16 %v1106
      %v1125 = vunpack.c.l.b16 %v1107
      %v1126 = vpack.c.b16 %v1119, %v1118
      %v1127 = vpack.c.b16 %v1121, %v1120
      %v1128 = vpack.c.b16 %v1123, %v1122
      %v1129 = vpack.c.b16 %v1125, %v1124
      %v1131 = vsel %vm216, %v1126, 0
      %v1134 = vsel %vm216, %v1127, 0
      %v1137 = vsel %vm216, %v1128, 0
      %v1140 = vsel %vm216, %v1129, 0
      %v1143 = vsel %vm229, %v1109, 0
      %1145 = vmatprep.subr.bf16.mxu0 0
      %1146 = vmatpush1.bf16.msra.mxu0 %v1143
      %1147 = vmatprep.subr.bf16.mxu0 0
      %1148 = vmatpush1.bf16.msra.mxu0 0
      %1149 = vmatprep.subr.bf16.mxu0 0
      %1150 = vmatpush1.bf16.msra.mxu0 0
      %1151 = vmatprep.subr.bf16.mxu0 0
      %1152 = vmatpush1.bf16.msra.mxu0 0
      %1153 = vmatprep.subr.bf16.mxu0 0
      %1154 = vmatpush1.bf16.msra.mxu0 0
      %1155 = vmatprep.subr.bf16.mxu0 0
      %1156 = vmatpush1.bf16.msra.mxu0 0
      %1157 = vmatprep.subr.bf16.mxu0 0
      %1158 = vmatpush1.bf16.msra.mxu0 0
      %1159 = vmatprep.subr.bf16.mxu0 0
      %1160 = vmatpush1.bf16.msra.mxu0 0
      %1161 = vmatprep.subr.bf16.mxu0 0
      %1162 = vmatpush1.bf16.msra.mxu0 0
      %1163 = vmatprep.subr.bf16.mxu0 0
      %1164 = vmatpush1.bf16.msra.mxu0 0
      %1165 = vmatprep.subr.bf16.mxu0 0
      %1166 = vmatpush1.bf16.msra.mxu0 0
      %1167 = vmatprep.subr.bf16.mxu0 0
      %1168 = vmatpush1.bf16.msra.mxu0 0
      %1169 = vmatprep.subr.bf16.mxu0 0
      %1170 = vmatpush1.bf16.msra.mxu0 0
      %1171 = vmatprep.subr.bf16.mxu0 0
      %1172 = vmatpush1.bf16.msra.mxu0 0
      %1173 = vmatprep.subr.bf16.mxu0 0
      %1174 = vmatpush1.bf16.msra.mxu0 0
      %1175 = vmatprep.subr.bf16.mxu0 0
      %1176 = vmatpush1.bf16.msra.mxu0 0
      %1177 = vmatprep.mubr.bf16.mxu0 0
      %1178 = vmatmul.mubr.bf16.gmra.mrb[0].mxu0 %v1131
      %v1179 = vpop.f32.mrb[0].mxu0
      %v1180 = vadd.f32 0.0, %v1179
      %v1181 = vpop.f32.mrb[0].mxu0
      %v1182 = vpop.f32.mrb[0].mxu0
      %v1183 = vadd.f32 0.0, %v1182
      %v1184 = vpop.f32.mrb[0].mxu0
      %1185 = vmatprep.mubr.bf16.mxu0 0
      %1186 = vmatmul.mubr.bf16.gmra.mrb[0].mxu0 %v1134
      %v1187 = vpop.f32.mrb[0].mxu0
      %v1188 = vadd.f32 0.0, %v1187
      %v1189 = vpop.f32.mrb[0].mxu0
      %v1190 = vpop.f32.mrb[0].mxu0
      %v1191 = vadd.f32 0.0, %v1190
      %v1192 = vpop.f32.mrb[0].mxu0
      %1193 = vmatprep.mubr.bf16.mxu0 0
      %1194 = vmatmul.mubr.bf16.gmra.mrb[0].mxu0 %v1137
      %v1195 = vpop.f32.mrb[0].mxu0
      %v1196 = vadd.f32 0.0, %v1195
      %v1197 = vpop.f32.mrb[0].mxu0
      %v1198 = vpop.f32.mrb[0].mxu0
      %v1199 = vadd.f32 0.0, %v1198
      %v1200 = vpop.f32.mrb[0].mxu0
      %1201 = vmatprep.mubr.bf16.mxu0 0
      %1202 = vmatmul.mubr.bf16.gmra.mrb[0].mxu0 %v1140
      %v1203 = vpop.f32.mrb[0].mxu0
      %v1204 = vadd.f32 0.0, %v1203
      %v1205 = vpop.f32.mrb[0].mxu0
      %v1206 = vpop.f32.mrb[0].mxu0
      %v1207 = vadd.f32 0.0, %v1206
      %v1208 = vpop.f32.mrb[0].mxu0
      %1209 = vdwg.mxu0
      %v1210 = vadd.f32 %v1091, %v1180
      %v1211 = vadd.f32 %v1092, %v1183
      %v1212 = vadd.f32 %v1093, %v1188
      %v1213 = vadd.f32 %v1094, %v1191
      %v1214 = vadd.f32 %v1095, %v1196
      %v1215 = vadd.f32 %v1096, %v1199
      %v1216 = vadd.f32 %v1097, %v1204
      %v1217 = vadd.f32 %v1098, %v1207
      %s1218 = scalar_lea.vmem %s167, 80
      %v1219 = vld [vmem:[%s1218] sm:$0xf]
      %v1220 = vld [vmem:[%s1218 + $0x8] sm:$0xf]
      %v1221 = vld [vmem:[%s1218 + $0x10] sm:$0xf]
      %v1222 = vld [vmem:[%s1218 + $0x18] sm:$0xf]
      %v1223 = vld [vmem:[%s1218 + $0x20] sm:$0xf]
      %v1224 = vld [vmem:[%s1218 + $0x28] sm:$0xf]
      %v1225 = vld [vmem:[%s1218 + $0x30] sm:$0xf]
      %v1226 = vld [vmem:[%s1218 + $0x38] sm:$0xf]
      %s1227 = scalar_lea.vmem %s1, 14
      %v1228 = vld [vmem:[%s1227] sm:$0x3]
      %v1237 = vunpack.c.l.b16 %v1219
      %v1238 = vunpack.c.l.b16 %v1220
      %v1239 = vunpack.c.l.b16 %v1221
      %v1240 = vunpack.c.l.b16 %v1222
      %v1241 = vunpack.c.l.b16 %v1223
      %v1242 = vunpack.c.l.b16 %v1224
      %v1243 = vunpack.c.l.b16 %v1225
      %v1244 = vunpack.c.l.b16 %v1226
      %v1245 = vpack.c.b16 %v1238, %v1237
      %v1246 = vpack.c.b16 %v1240, %v1239
      %v1247 = vpack.c.b16 %v1242, %v1241
      %v1248 = vpack.c.b16 %v1244, %v1243
      %v1250 = vsel %vm216, %v1245, 0
      %v1253 = vsel %vm216, %v1246, 0
      %v1256 = vsel %vm216, %v1247, 0
      %v1259 = vsel %vm216, %v1248, 0
      %v1262 = vsel %vm229, %v1228, 0
      %1264 = vmatprep.subr.bf16.mxu0 0
      %1265 = vmatpush1.bf16.msra.mxu0 %v1262
      %1266 = vmatprep.subr.bf16.mxu0 0
      %1267 = vmatpush1.bf16.msra.mxu0 0
      %1268 = vmatprep.subr.bf16.mxu0 0
      %1269 = vmatpush1.bf16.msra.mxu0 0
      %1270 = vmatprep.subr.bf16.mxu0 0
      %1271 = vmatpush1.bf16.msra.mxu0 0
      %1272 = vmatprep.subr.bf16.mxu0 0
      %1273 = vmatpush1.bf16.msra.mxu0 0
      %1274 = vmatprep.subr.bf16.mxu0 0
      %1275 = vmatpush1.bf16.msra.mxu0 0
      %1276 = vmatprep.subr.bf16.mxu0 0
      %1277 = vmatpush1.bf16.msra.mxu0 0
      %1278 = vmatprep.subr.bf16.mxu0 0
      %1279 = vmatpush1.bf16.msra.mxu0 0
      %1280 = vmatprep.subr.bf16.mxu0 0
      %1281 = vmatpush1.bf16.msra.mxu0 0
      %1282 = vmatprep.subr.bf16.mxu0 0
      %1283 = vmatpush1.bf16.msra.mxu0 0
      %1284 = vmatprep.subr.bf16.mxu0 0
      %1285 = vmatpush1.bf16.msra.mxu0 0
      %1286 = vmatprep.subr.bf16.mxu0 0
      %1287 = vmatpush1.bf16.msra.mxu0 0
      %1288 = vmatprep.subr.bf16.mxu0 0
      %1289 = vmatpush1.bf16.msra.mxu0 0
      %1290 = vmatprep.subr.bf16.mxu0 0
      %1291 = vmatpush1.bf16.msra.mxu0 0
      %1292 = vmatprep.subr.bf16.mxu0 0
      %1293 = vmatpush1.bf16.msra.mxu0 0
      %1294 = vmatprep.subr.bf16.mxu0 0
      %1295 = vmatpush1.bf16.msra.mxu0 0
      %1296 = vmatprep.mubr.bf16.mxu0 0
      %1297 = vmatmul.mubr.bf16.gmra.mrb[0].mxu0 %v1250
      %v1298 = vpop.f32.mrb[0].mxu0
      %v1299 = vadd.f32 0.0, %v1298
      %v1300 = vpop.f32.mrb[0].mxu0
      %v1301 = vpop.f32.mrb[0].mxu0
      %v1302 = vadd.f32 0.0, %v1301
      %v1303 = vpop.f32.mrb[0].mxu0
      %1304 = vmatprep.mubr.bf16.mxu0 0
      %1305 = vmatmul.mubr.bf16.gmra.mrb[0].mxu0 %v1253
      %v1306 = vpop.f32.mrb[0].mxu0
      %v1307 = vadd.f32 0.0, %v1306
      %v1308 = vpop.f32.mrb[0].mxu0
      %v1309 = vpop.f32.mrb[0].mxu0
      %v1310 = vadd.f32 0.0, %v1309
      %v1311 = vpop.f32.mrb[0].mxu0
      %1312 = vmatprep.mubr.bf16.mxu0 0
      %1313 = vmatmul.mubr.bf16.gmra.mrb[0].mxu0 %v1256
      %v1314 = vpop.f32.mrb[0].mxu0
      %v1315 = vadd.f32 0.0, %v1314
      %v1316 = vpop.f32.mrb[0].mxu0
      %v1317 = vpop.f32.mrb[0].mxu0
      %v1318 = vadd.f32 0.0, %v1317
      %v1319 = vpop.f32.mrb[0].mxu0
      %1320 = vmatprep.mubr.bf16.mxu0 0
      %1321 = vmatmul.mubr.bf16.gmra.mrb[0].mxu0 %v1259
      %v1322 = vpop.f32.mrb[0].mxu0
      %v1323 = vadd.f32 0.0, %v1322
      %v1324 = vpop.f32.mrb[0].mxu0
      %v1325 = vpop.f32.mrb[0].mxu0
      %v1326 = vadd.f32 0.0, %v1325
      %v1327 = vpop.f32.mrb[0].mxu0
      %1328 = vdwg.mxu0
      %v1329 = vadd.f32 %v1210, %v1299
      %v1330 = vadd.f32 %v1211, %v1302
      %v1331 = vadd.f32 %v1212, %v1307
      %v1332 = vadd.f32 %v1213, %v1310
      %v1333 = vadd.f32 %v1214, %v1315
      %v1334 = vadd.f32 %v1215, %v1318
      %v1335 = vadd.f32 %v1216, %v1323
      %v1336 = vadd.f32 %v1217, %v1326
      %v1337 = vld [vmem:[%s1099] sm:$0xf]
      %v1338 = vld [vmem:[%s1099 + $0x4] sm:$0x1]
      %v1339 = vld [vmem:[%s1099 + $0x8] sm:$0xf]
      %v1340 = vld [vmem:[%s1099 + $0xc] sm:$0x1]
      %v1341 = vld [vmem:[%s1099 + $0x10] sm:$0xf]
      %v1342 = vld [vmem:[%s1099 + $0x14] sm:$0x1]
      %v1343 = vld [vmem:[%s1099 + $0x18] sm:$0xf]
      %v1344 = vld [vmem:[%s1099 + $0x1c] sm:$0x1]
      %v1345 = vld [vmem:[%s1099 + $0x20] sm:$0xf]
      %v1346 = vld [vmem:[%s1099 + $0x24] sm:$0x1]
      %v1347 = vld [vmem:[%s1099 + $0x28] sm:$0xf]
      %v1348 = vld [vmem:[%s1099 + $0x2c] sm:$0x1]
      %v1349 = vld [vmem:[%s1099 + $0x30] sm:$0xf]
      %v1350 = vld [vmem:[%s1099 + $0x34] sm:$0x1]
      %v1351 = vld [vmem:[%s1099 + $0x38] sm:$0xf]
      %v1352 = vld [vmem:[%s1099 + $0x3c] sm:$0x1]
      %v1354 = vshrl.u32 %v1337, 16
      %v1356 = vrot.slane %v1354, 4
      %v1357 = vshll.u32 %v1337, 16
      %v1359 = vrot.slane %v1357, 5
      %v1360 = vor.u32 %v1356, %v1359
      %v1361 = vrot.slane %v1360, 4
      %v1363 = vshll.u32 %v1338, 16
      %v1365 = vrot.slane %v1363, 5
      %v1366 = vsel %vm416, %v1361, %v1365
      %v1368 = vshrl.u32 %v1339, 16
      %v1370 = vrot.slane %v1368, 4
      %v1371 = vshll.u32 %v1339, 16
      %v1373 = vrot.slane %v1371, 5
      %v1374 = vor.u32 %v1370, %v1373
      %v1375 = vrot.slane %v1374, 4
      %v1377 = vshll.u32 %v1340, 16
      %v1379 = vrot.slane %v1377, 5
      %v1380 = vsel %vm416, %v1375, %v1379
      %v1382 = vshrl.u32 %v1341, 16
      %v1384 = vrot.slane %v1382, 4
      %v1385 = vshll.u32 %v1341, 16
      %v1387 = vrot.slane %v1385, 5
      %v1388 = vor.u32 %v1384, %v1387
      %v1389 = vrot.slane %v1388, 4
      %v1391 = vshll.u32 %v1342, 16
      %v1393 = vrot.slane %v1391, 5
      %v1394 = vsel %vm416, %v1389, %v1393
      %v1396 = vshrl.u32 %v1343, 16
      %v1398 = vrot.slane %v1396, 4
      %v1399 = vshll.u32 %v1343, 16
      %v1401 = vrot.slane %v1399, 5
      %v1402 = vor.u32 %v1398, %v1401
      %v1403 = vrot.slane %v1402, 4
      %v1405 = vshll.u32 %v1344, 16
      %v1407 = vrot.slane %v1405, 5
      %v1408 = vsel %vm416, %v1403, %v1407
      %v1410 = vshrl.u32 %v1345, 16
      %v1412 = vrot.slane %v1410, 4
      %v1413 = vshll.u32 %v1345, 16
      %v1415 = vrot.slane %v1413, 5
      %v1416 = vor.u32 %v1412, %v1415
      %v1417 = vrot.slane %v1416, 4
      %v1419 = vshll.u32 %v1346, 16
      %v1421 = vrot.slane %v1419, 5
      %v1422 = vsel %vm416, %v1417, %v1421
      %v1424 = vshrl.u32 %v1347, 16
      %v1426 = vrot.slane %v1424, 4
      %v1427 = vshll.u32 %v1347, 16
      %v1429 = vrot.slane %v1427, 5
      %v1430 = vor.u32 %v1426, %v1429
      %v1431 = vrot.slane %v1430, 4
      %v1433 = vshll.u32 %v1348, 16
      %v1435 = vrot.slane %v1433, 5
      %v1436 = vsel %vm416, %v1431, %v1435
      %v1438 = vshrl.u32 %v1349, 16
      %v1440 = vrot.slane %v1438, 4
      %v1441 = vshll.u32 %v1349, 16
      %v1443 = vrot.slane %v1441, 5
      %v1444 = vor.u32 %v1440, %v1443
      %v1445 = vrot.slane %v1444, 4
      %v1447 = vshll.u32 %v1350, 16
      %v1449 = vrot.slane %v1447, 5
      %v1450 = vsel %vm416, %v1445, %v1449
      %v1452 = vshrl.u32 %v1351, 16
      %v1454 = vrot.slane %v1452, 4
      %v1455 = vshll.u32 %v1351, 16
      %v1457 = vrot.slane %v1455, 5
      %v1458 = vor.u32 %v1454, %v1457
      %v1459 = vrot.slane %v1458, 4
      %v1461 = vshll.u32 %v1352, 16
      %v1463 = vrot.slane %v1461, 5
      %v1464 = vsel %vm416, %v1459, %v1463
      %s1465 = scalar_lea.vmem %s1, 16
      %v1466 = vld [vmem:[%s1465] sm:$0x3]
      %v1467 = vunpack.c.l.b16 %v1366
      %v1468 = vunpack.c.l.b16 %v1380
      %v1469 = vunpack.c.l.b16 %v1394
      %v1470 = vunpack.c.l.b16 %v1408
      %v1471 = vunpack.c.l.b16 %v1422
      %v1472 = vunpack.c.l.b16 %v1436
      %v1473 = vunpack.c.l.b16 %v1450
      %v1474 = vunpack.c.l.b16 %v1464
      %v1475 = vpack.c.b16 %v1468, %v1467
      %v1476 = vpack.c.b16 %v1470, %v1469
      %v1477 = vpack.c.b16 %v1472, %v1471
      %v1478 = vpack.c.b16 %v1474, %v1473
      %v1480 = vsel %vm216, %v1475, 0
      %v1483 = vsel %vm216, %v1476, 0
      %v1486 = vsel %vm216, %v1477, 0
      %v1489 = vsel %vm216, %v1478, 0
      %v1492 = vsel %vm229, %v1466, 0
      %1494 = vmatprep.subr.bf16.mxu0 0
      %1495 = vmatpush1.bf16.msra.mxu0 %v1492
      %1496 = vmatprep.subr.bf16.mxu0 0
      %1497 = vmatpush1.bf16.msra.mxu0 0
      %1498 = vmatprep.subr.bf16.mxu0 0
      %1499 = vmatpush1.bf16.msra.mxu0 0
      %1500 = vmatprep.subr.bf16.mxu0 0
      %1501 = vmatpush1.bf16.msra.mxu0 0
      %1502 = vmatprep.subr.bf16.mxu0 0
      %1503 = vmatpush1.bf16.msra.mxu0 0
      %1504 = vmatprep.subr.bf16.mxu0 0
      %1505 = vmatpush1.bf16.msra.mxu0 0
      %1506 = vmatprep.subr.bf16.mxu0 0
      %1507 = vmatpush1.bf16.msra.mxu0 0
      %1508 = vmatprep.subr.bf16.mxu0 0
      %1509 = vmatpush1.bf16.msra.mxu0 0
      %1510 = vmatprep.subr.bf16.mxu0 0
      %1511 = vmatpush1.bf16.msra.mxu0 0
      %1512 = vmatprep.subr.bf16.mxu0 0
      %1513 = vmatpush1.bf16.msra.mxu0 0
      %1514 = vmatprep.subr.bf16.mxu0 0
      %1515 = vmatpush1.bf16.msra.mxu0 0
      %1516 = vmatprep.subr.bf16.mxu0 0
      %1517 = vmatpush1.bf16.msra.mxu0 0
      %1518 = vmatprep.subr.bf16.mxu0 0
      %1519 = vmatpush1.bf16.msra.mxu0 0
      %1520 = vmatprep.subr.bf16.mxu0 0
      %1521 = vmatpush1.bf16.msra.mxu0 0
      %1522 = vmatprep.subr.bf16.mxu0 0
      %1523 = vmatpush1.bf16.msra.mxu0 0
      %1524 = vmatprep.subr.bf16.mxu0 0
      %1525 = vmatpush1.bf16.msra.mxu0 0
      %1526 = vmatprep.mubr.bf16.mxu0 0
      %1527 = vmatmul.mubr.bf16.gmra.mrb[0].mxu0 %v1480
      %v1528 = vpop.f32.mrb[0].mxu0
      %v1529 = vadd.f32 0.0, %v1528
      %v1530 = vpop.f32.mrb[0].mxu0
      %v1531 = vpop.f32.mrb[0].mxu0
      %v1532 = vadd.f32 0.0, %v1531
      %v1533 = vpop.f32.mrb[0].mxu0
      %1534 = vmatprep.mubr.bf16.mxu0 0
      %1535 = vmatmul.mubr.bf16.gmra.mrb[0].mxu0 %v1483
      %v1536 = vpop.f32.mrb[0].mxu0
      %v1537 = vadd.f32 0.0, %v1536
      %v1538 = vpop.f32.mrb[0].mxu0
      %v1539 = vpop.f32.mrb[0].mxu0
      %v1540 = vadd.f32 0.0, %v1539
      %v1541 = vpop.f32.mrb[0].mxu0
      %1542 = vmatprep.mubr.bf16.mxu0 0
      %1543 = vmatmul.mubr.bf16.gmra.mrb[0].mxu0 %v1486
      %v1544 = vpop.f32.mrb[0].mxu0
      %v1545 = vadd.f32 0.0, %v1544
      %v1546 = vpop.f32.mrb[0].mxu0
      %v1547 = vpop.f32.mrb[0].mxu0
      %v1548 = vadd.f32 0.0, %v1547
      %v1549 = vpop.f32.mrb[0].mxu0
      %1550 = vmatprep.mubr.bf16.mxu0 0
      %1551 = vmatmul.mubr.bf16.gmra.mrb[0].mxu0 %v1489
      %v1552 = vpop.f32.mrb[0].mxu0
      %v1553 = vadd.f32 0.0, %v1552
      %v1554 = vpop.f32.mrb[0].mxu0
      %v1555 = vpop.f32.mrb[0].mxu0
      %v1556 = vadd.f32 0.0, %v1555
      %v1557 = vpop.f32.mrb[0].mxu0
      %1558 = vdwg.mxu0
      %v1559 = vadd.f32 %v1329, %v1529
      %v1560 = vadd.f32 %v1330, %v1532
      %v1561 = vadd.f32 %v1331, %v1537
      %v1562 = vadd.f32 %v1332, %v1540
      %v1563 = vadd.f32 %v1333, %v1545
      %v1564 = vadd.f32 %v1334, %v1548
      %v1565 = vadd.f32 %v1335, %v1553
      %v1566 = vadd.f32 %v1336, %v1556
      %v1567 = vpack.c.bf16 %v1560, %v1559
      %v1568 = vpack.c.bf16 %v1562, %v1561
      %v1569 = vpack.c.bf16 %v1564, %v1563
      %v1570 = vpack.c.bf16 %v1566, %v1565
      %v1575 = vunpack.c.l.b16 %v1567
      %v1576 = vunpack.c.h.b16 %v1567
      %v1577 = vunpack.c.l.b16 %v1568
      %v1578 = vunpack.c.h.b16 %v1568
      %v1579 = vunpack.c.l.b16 %v1569
      %v1580 = vunpack.c.h.b16 %v1569
      %v1581 = vunpack.c.l.b16 %v1570
      %v1582 = vunpack.c.h.b16 %v1570
      %v1583 = vpack.c.b16 %v1575, %v1575
      %v1584 = vpack.c.b16 %v1576, %v1576
      %v1585 = vpack.c.b16 %v1577, %v1577
      %v1586 = vpack.c.b16 %v1578, %v1578
      %v1587 = vpack.c.b16 %v1579, %v1579
      %v1588 = vpack.c.b16 %v1580, %v1580
      %v1589 = vpack.c.b16 %v1581, %v1581
      %v1590 = vpack.c.b16 %v1582, %v1582
      %vm1599 = vcmask 60416
      %1600 = vst.msk [vmem:[%s173] sm:$0xf] %vm1599, %v1583
      %1601 = vst.msk [vmem:[%s173 + $0x4] sm:$0xf] %vm1599, %v1584
      %1602 = vst.msk [vmem:[%s173 + $0x8] sm:$0xf] %vm1599, %v1585
      %1603 = vst.msk [vmem:[%s173 + $0xc] sm:$0xf] %vm1599, %v1586
      %1604 = vst.msk [vmem:[%s173 + $0x10] sm:$0xf] %vm1599, %v1587
      %1605 = vst.msk [vmem:[%s173 + $0x14] sm:$0xf] %vm1599, %v1588
      %1606 = vst.msk [vmem:[%s173 + $0x18] sm:$0xf] %vm1599, %v1589
      %1607 = vst.msk [vmem:[%s173 + $0x1c] sm:$0xf] %vm1599, %v1590
      %p1608 = scmp.eq.s32.totalorder %s15, 0
      // Predicated region
      $region29: #{wy_block.8} parent=27 // pred_check
        %p1609 = pneg %p1608
      $region30: #{wy_block.8} parent=27 // pred_check_branch
        %1611 = sbr.rel (%p1609) target = $region32
      $region31: #{wy_block.8} parent=27 // pred_region
        %vm1612 = vcmask 58368
        %1613 = vst.msk [vmem:[%s3] sm:$0x3] %vm1612, 0.0
      $region32: #{wy_block.8} parent=27 // pred_fallthru
        _
      %v1614 = vld [vmem:[%s3] sm:$0x1]
      %vm1615 = vcmask 64512
      %v1616 = vsel %vm1615, %v1559, 0.0
      %v1617 = vsel %vm1615, %v1560, 0.0
      %v1618 = vadd.f32 %v1616, %v1617
      %v1619 = vsel %vm1615, %v1561, 0.0
      %v1620 = vadd.f32 %v1618, %v1619
      %v1621 = vsel %vm1615, %v1562, 0.0
      %v1622 = vadd.f32 %v1620, %v1621
      %v1623 = vsel %vm1615, %v1563, 0.0
      %v1624 = vadd.f32 %v1622, %v1623
      %v1625 = vsel %vm1615, %v1564, 0.0
      %v1626 = vadd.f32 %v1624, %v1625
      %v1627 = vsel %vm1615, %v1565, 0.0
      %v1628 = vadd.f32 %v1626, %v1627
      %v1629 = vsel %vm1615, %v1566, 0.0
      %v1630 = vadd.f32 %v1628, %v1629
      %v1631 = vrot.slane %v1630, 4
      %v1632 = vadd.f32 %v1630, %v1631
      %v1633 = vrot.slane %v1632, 2
      %v1634 = vadd.f32 %v1632, %v1633
      %v1635 = vrot.slane %v1634, 1
      %v1636 = vadd.f32 %v1634, %v1635
      %v1637 = vadd.f32 %v1614, %v1636
      %vm1638 = vcmask 57344
      %1639 = vst.msk [vmem:[%s3] sm:$0x1] %vm1638, %v1637
      %v1640 = vld [vmem:[%s3 + $0x1] sm:$0x1]
      %v1641 = vmul.f32 %v1559, %v1559
      %v1642 = vmul.f32 %v1560, %v1560
      %v1643 = vmul.f32 %v1561, %v1561
      %v1644 = vmul.f32 %v1562, %v1562
      %v1645 = vmul.f32 %v1563, %v1563
      %v1646 = vmul.f32 %v1564, %v1564
      %v1647 = vmul.f32 %v1565, %v1565
      %v1648 = vmul.f32 %v1566, %v1566
      %v1649 = vsel %vm1615, %v1641, 0.0
      %v1650 = vsel %vm1615, %v1642, 0.0
      %v1651 = vadd.f32 %v1649, %v1650
      %v1652 = vsel %vm1615, %v1643, 0.0
      %v1653 = vadd.f32 %v1651, %v1652
      %v1654 = vsel %vm1615, %v1644, 0.0
      %v1655 = vadd.f32 %v1653, %v1654
      %v1656 = vsel %vm1615, %v1645, 0.0
      %v1657 = vadd.f32 %v1655, %v1656
      %v1658 = vsel %vm1615, %v1646, 0.0
      %v1659 = vadd.f32 %v1657, %v1658
      %v1660 = vsel %vm1615, %v1647, 0.0
      %v1661 = vadd.f32 %v1659, %v1660
      %v1662 = vsel %vm1615, %v1648, 0.0
      %v1663 = vadd.f32 %v1661, %v1662
      %v1664 = vrot.slane %v1663, 4
      %v1665 = vadd.f32 %v1663, %v1664
      %v1666 = vrot.slane %v1665, 2
      %v1667 = vadd.f32 %v1665, %v1666
      %v1668 = vrot.slane %v1667, 1
      %v1669 = vadd.f32 %v1667, %v1668
      %v1670 = vadd.f32 %v1640, %v1669
      %1671 = vst.msk [vmem:[%s3 + $0x1] sm:$0x1] %vm1638, %v1670
      %s1672 = smul.u32 8, %s15
      %p1673 = scmp.lt.s32.totalorder %s1672, 15
      %s1674 = scalar_select %p1673, %s1672, 15
      %s1675 = smul.addr %s1674, 4
      %s1676 = scalar_lea.vmem %s2, %s1675
      // Predicated region
      $region33: #{wy_block.8} parent=27 // pred_check
        %p1677 = pneg %p80
      $region34: #{wy_block.8} parent=27 // pred_check_branch
        %1679 = sbr.rel (%p1677) target = $region36
      $region35: #{wy_block.8} parent=27 // pred_region
        %s1680 = smul.u32 8, %s15
      $region36: #{wy_block.8} parent=27 // pred_fallthru
        _
      // Predicated region
      $region37: #{wy_block.8} parent=27 // pred_check
        %p1681 = pneg %p101
      $region38: #{wy_block.8} parent=27 // pred_check_branch
        %1683 = sbr.rel (%p1681) target = $region40
      $region39: #{wy_block.8} parent=27 // pred_region
        _
      $region40: #{wy_block.8} parent=27 // pred_fallthru
        _
      // Predicated region
      $region41: #{wy_block.8} parent=27 // pred_check
        %p1684 = pneg %p101
      $region42: #{wy_block.8} parent=27 // pred_check_branch
        %1686 = sbr.rel (%p1684) target = $region44
      $region43: #{wy_block.8} parent=27 // pred_region
        _
      $region44: #{wy_block.8} parent=27 // pred_fallthru
        _
    $region28: #{wy_block.8} parent=5 // pred_fallthru
      _
    %p1687 = scmp.le.s32.totalorder 2, %s10
    // Predicated region
    $region45: #{wy_block.8} parent=5 // pred_check
      %p1688 = pneg %p1687
    $region46: #{wy_block.8} parent=5 // pred_check_branch
      %1690 = sbr.rel (%p1688) target = $region48
    $region47: #{wy_block.8} parent=5 // pred_region
      %s1691 = ssub.s32 %s10, 2
      // Predicated region
      $region49: #{wy_block.8} parent=47 // pred_check
        %p1692 = pneg %p86
      $region50: #{wy_block.8} parent=47 // pred_check_branch
        %1694 = sbr.rel (%p1692) target = $region52
      $region51: #{wy_block.8} parent=47 // pred_region
        %s1695 = smul.u32 8, %s16
        %p1696 = scmp.lt.s32.totalorder %s1695, 15
        %s1697 = scalar_select %p1696, %s1695, 15
        %s1698 = smul.addr %s1697, 4
        %s1699 = scalar_lea.vmem %s2, %s1698
      $region52: #{wy_block.8} parent=47 // pred_fallthru
        _
    $region48: #{wy_block.8} parent=5 // pred_fallthru
      _
  $region6: #{wy_block.8} parent=0 // loop_footer
    %s14 = sadd.s32 1, %s10
  $region7: #{wy_block.8} parent=0 // loop_footer_branch
    %9 = sbr.rel target = $region3
  $region8: #{wy_block.8} parent=0 // loop_exit
    _

// kernel: wy_block.10
$region0: #{wy_block.10}
  #allocation0 [shape = 'u32[]', space=smem, size = 0x4, offset = 0x4, fixed_abs, tag = 'smem constant byte address 0x4 - core index']
  #allocation1 [shape = 'u32[144,128]{1,0:T(1,128)}', space=vmem, size = 0x12000, scoped, tag = 'internal scratch']
  %s0 = inlined_call_operand.vmem [shape: bf16[2,10,10,8], index: 0, kind: input, shape index: {}]
  %s1 = inlined_call_operand.vmem [shape: bf16[9,8,8], index: 1, kind: input, shape index: {}]
  %s2 = inlined_call_operand.vmem [shape: bf16[128,8], index: 2, kind: output, shape index: {0}]
  %s3 = inlined_call_operand.vmem [shape: f32[2,8], index: 3, kind: output, shape index: {1}]
  %4 = xla_tuple %s2, %s3
  %s5 = sld [smem:[#allocation0]]
  $region53: #{wy_block.10} parent=0
    _
  %s7 = ssub.s32 1, %s5
  %s8 = scalar_select 0, %s7, %s5
  loop: start=0, step=1, limit=4
  $region2: #{wy_block.10} parent=0 // loop_pre_header
    _
  $region3: #{wy_block.10} parent=0 // loop_header
    %s10 = sphi 0, %s14
    %p11 = scmp.ge.s32.totalorder %s10, 4
    %s20 = sphi 0, %s22
    %s23 = sphi 0, %s20
    %s24 = sphi 0, %s23
    %s40 = sphi 0, %s24
    %s44 = sphi 0, %s44
    %s46 = sphi 0, %s44
    %s47 = sphi 0, %s46
    %s61 = sphi 0, %s47
    %s67 = sphi 0, %s69
    %s70 = sphi 0, %s67
    %s71 = sphi 0, %s70
    %s87 = sphi 0, %s71
    %s91 = sphi 0, %s91
    %s93 = sphi 0, %s91
    %s94 = sphi 0, %s93
    %s108 = sphi 0, %s94
  $region4: #{wy_block.10} parent=0 // loop_header_branch
    %13 = sbr.rel (%p11) target = $region8
  $region5: #{wy_block.10} parent=0 // loop_body
    %s15 = ssub.s32 %s10, 1
    %s16 = ssub.s32 %s10, 2
    %s17 = sadd.s32 %s10, 1
    %s18 = ssub.s32 %s10, %s17
    %p19 = scmp.eq.s32.totalorder %s18, 0
    %s21 = sadd.s32 %s20, 1
    %s22 = scalar_select %p19, %s20, %s21
    %p25 = pneg %p19
    %p26 = scmp.eq.s32.totalorder %s10, 1
    %p27 = por %p25, %p26
    %p28 = scmp.ne.s32.totalorder %s20, %s23
    %p29 = scmp.eq.s32.totalorder %s10, 0
    %p30 = por %p28, %p29
    %p31 = scmp.ne.s32.totalorder %s20, %s23
    %p32 = scmp.eq.s32.totalorder %s15, 1
    %p33 = por %p31, %p32
    %p34 = scmp.ne.s32.totalorder %s23, %s24
    %p35 = scmp.eq.s32.totalorder %s15, 0
    %p36 = por %p34, %p35
    %p37 = scmp.ne.s32.totalorder %s23, %s24
    %p38 = scmp.eq.s32.totalorder %s16, 1
    %p39 = por %p37, %p38
    %p41 = scmp.ne.s32.totalorder %s24, %s40
    %p42 = scmp.eq.s32.totalorder %s16, 0
    %p43 = por %p41, %p42
    %s45 = sadd.s32 %s44, 1
    %p48 = scmp.eq.s32.totalorder %s10, 1
    %p49 = scmp.ne.s32.totalorder %s44, %s46
    %p50 = scmp.eq.s32.totalorder %s10, 0
    %p51 = por %p49, %p50
    %p52 = scmp.ne.s32.totalorder %s44, %s46
    %p53 = scmp.eq.s32.totalorder %s15, 1
    %p54 = por %p52, %p53
    %p55 = scmp.ne.s32.totalorder %s46, %s47
    %p56 = scmp.eq.s32.totalorder %s15, 0
    %p57 = por %p55, %p56
    %p58 = scmp.ne.s32.totalorder %s46, %s47
    %p59 = scmp.eq.s32.totalorder %s16, 1
    %p60 = por %p58, %p59
    %p62 = scmp.ne.s32.totalorder %s47, %s61
    %p63 = scmp.eq.s32.totalorder %s16, 0
    %p64 = por %p62, %p63
    %s65 = ssub.s32 %s10, %s17
    %p66 = scmp.eq.s32.totalorder %s65, 0
    %s68 = sadd.s32 %s67, 1
    %s69 = scalar_select %p66, %s67, %s68
    %p72 = pneg %p66
    %p73 = scmp.eq.s32.totalorder %s10, 1
    %p74 = por %p72, %p73
    %p75 = scmp.ne.s32.totalorder %s67, %s70
    %p76 = scmp.eq.s32.totalorder %s10, 0
    %p77 = por %p75, %p76
    %p78 = scmp.ne.s32.totalorder %s67, %s70
    %p79 = scmp.eq.s32.totalorder %s15, 1
    %p80 = por %p78, %p79
    %p81 = scmp.ne.s32.totalorder %s70, %s71
    %p82 = scmp.eq.s32.totalorder %s15, 0
    %p83 = por %p81, %p82
    %p84 = scmp.ne.s32.totalorder %s70, %s71
    %p85 = scmp.eq.s32.totalorder %s16, 1
    %p86 = por %p84, %p85
    %p88 = scmp.ne.s32.totalorder %s71, %s87
    %p89 = scmp.eq.s32.totalorder %s16, 0
    %p90 = por %p88, %p89
    %s92 = sadd.s32 %s91, 1
    %p95 = scmp.eq.s32.totalorder %s10, 1
    %p96 = scmp.ne.s32.totalorder %s91, %s93
    %p97 = scmp.eq.s32.totalorder %s10, 0
    %p98 = por %p96, %p97
    %p99 = scmp.ne.s32.totalorder %s91, %s93
    %p100 = scmp.eq.s32.totalorder %s15, 1
    %p101 = por %p99, %p100
    %p102 = scmp.ne.s32.totalorder %s93, %s94
    %p103 = scmp.eq.s32.totalorder %s15, 0
    %p104 = por %p102, %p103
    %p105 = scmp.ne.s32.totalorder %s93, %s94
    %p106 = scmp.eq.s32.totalorder %s16, 1
    %p107 = por %p105, %p106
    %p109 = scmp.ne.s32.totalorder %s94, %s108
    %p110 = scmp.eq.s32.totalorder %s16, 0
    %p111 = por %p109, %p110
    %p112 = scmp.le.s32.totalorder 1, %s10
    %p113 = scmp.lt.s32.totalorder %s10, 3
    %p114 = pnand %p112, %p113
    %p115 = pneg %p114
    // Predicated region
    $region9: #{wy_block.10} parent=5 // pred_check
      _
    $region10: #{wy_block.10} parent=5 // pred_check_branch
      %117 = sbr.rel (%p114) target = $region12
    $region11: #{wy_block.10} parent=5 // pred_region
      %s118 = ssub.s32 %s10, 1
      // Predicated region
      $region13: #{wy_block.10} parent=11 // pred_check
        %p119 = pneg %p57
      $region14: #{wy_block.10} parent=11 // pred_check_branch
        %121 = sbr.rel (%p119) target = $region16
      $region15: #{wy_block.10} parent=11 // pred_region
        _
      $region16: #{wy_block.10} parent=11 // pred_fallthru
        _
    $region12: #{wy_block.10} parent=5 // pred_fallthru
      _
    %p122 = scmp.lt.s32.totalorder %s10, 2
    // Predicated region
    $region17: #{wy_block.10} parent=5 // pred_check
      %p123 = pneg %p122
    $region18: #{wy_block.10} parent=5 // pred_check_branch
      %125 = sbr.rel (%p123) target = $region20
    $region19: #{wy_block.10} parent=5 // pred_region
      // Predicated region
      $region21: #{wy_block.10} parent=19 // pred_check
        %p126 = pneg %p30
      $region22: #{wy_block.10} parent=19 // pred_check_branch
        %128 = sbr.rel (%p126) target = $region24
      $region23: #{wy_block.10} parent=19 // pred_region
        %p129 = scmp.lt.s32.totalorder %s10, 1
        %s130 = scalar_select %p129, %s10, 1
        %s131 = smul.addr %s130, 20
        %s132 = smul.addr %s131, 4
        %s133 = scalar_lea.vmem %s0, %s132
      $region24: #{wy_block.10} parent=19 // pred_fallthru
        _
    $region20: #{wy_block.10} parent=5 // pred_fallthru
      _
    %p134 = scmp.le.s32.totalorder 1, %s10
    %p135 = scmp.lt.s32.totalorder %s10, 3
    %p136 = pnand %p134, %p135
    %p137 = pneg %p136
    // Predicated region
    $region25: #{wy_block.10} parent=5 // pred_check
      _
    $region26: #{wy_block.10} parent=5 // pred_check_branch
      %139 = sbr.rel (%p136) target = $region28
    $region27: #{wy_block.10} parent=5 // pred_region
      %s140 = ssub.s32 %s10, 1
      %p141 = scmp.lt.s32.totalorder %s15, 1
      %s142 = scalar_select %p141, %s15, 1
      %s143 = smul.addr %s142, 20
      %s144 = smul.addr %s143, 4
      %s145 = scalar_lea.vmem %s0, %s144
      %p146 = pneg %p36
      %p147 = pneg %p33
      %p148 = pneg %p57
      %p149 = pneg %p54
      %p150 = pneg %p83
      %p151 = pneg %p80
      %s152 = smul.u32 8, %s15
      %p153 = scmp.lt.s32.totalorder %s152, 15
      %s154 = scalar_select %p153, %s152, 15
      %s155 = smul.addr %s154, 4
      %s156 = scalar_lea.vmem %s2, %s155
      %p157 = pneg %p104
      %p158 = pneg %p101
      %p159 = scmp.lt.s32.totalorder %s15, 1
      %s160 = scalar_select %p159, %s15, 1
      %s161 = smul.addr %s160, 20
      %s162 = smul.addr %s161, 4
      %s163 = scalar_lea.vmem %s0, %s162
      %s164 = smul.u32 8, %s15
      %p165 = scmp.lt.s32.totalorder %s164, 15
      %s166 = scalar_select %p165, %s164, 15
      %s167 = smul.addr %s166, 4
      %s168 = scalar_lea.vmem %s2, %s167
      %s169 = smul.u32 8, %s15
      %v171 = vld [vmem:[%s163] sm:$0xf]
      %v172 = vld [vmem:[%s163 + $0x8] sm:$0xf]
      %v173 = vld [vmem:[%s163 + $0x10] sm:$0xf]
      %v174 = vld [vmem:[%s163 + $0x18] sm:$0xf]
      %v175 = vld [vmem:[%s163 + $0x20] sm:$0xf]
      %v176 = vld [vmem:[%s163 + $0x28] sm:$0xf]
      %v177 = vld [vmem:[%s163 + $0x30] sm:$0xf]
      %v178 = vld [vmem:[%s163 + $0x38] sm:$0xf]
      %v179 = vld [vmem:[%s1] sm:$0xf]
      %v180 = vld [vmem:[%s163 + $0x4] sm:$0x1]
      %v181 = vld [vmem:[%s163 + $0xc] sm:$0x1]
      %v182 = vld [vmem:[%s163 + $0x14] sm:$0x1]
      %v183 = vld [vmem:[%s163 + $0x1c] sm:$0x1]
      %v184 = vld [vmem:[%s163 + $0x24] sm:$0x1]
      %v185 = vld [vmem:[%s163 + $0x2c] sm:$0x1]
      %v186 = vld [vmem:[%s163 + $0x34] sm:$0x1]
      %v187 = vld [vmem:[%s163 + $0x3c] sm:$0x1]
      %vm188 = vsmask.f32 3328
      %vm189 = vsmask.f32 7440
      %vm190 = vmor %vm188, %vm189
      %v192 = vshrl.u32 %v171, 16
      %v194 = vrot.slane %v192, 4
      %v195 = vshll.u32 %v171, 16
      %v197 = vrot.slane %v195, 5
      %v198 = vor.u32 %v194, %v197
      %v199 = vrot.slane %v198, 4
      %v201 = vshll.u32 %v180, 16
      %v203 = vrot.slane %v201, 5
      %v204 = vsel %vm190, %v199, %v203
      %v206 = vshrl.u32 %v172, 16
      %v208 = vrot.slane %v206, 4
      %v209 = vshll.u32 %v172, 16
      %v211 = vrot.slane %v209, 5
      %v212 = vor.u32 %v208, %v211
      %v213 = vrot.slane %v212, 4
      %v215 = vshll.u32 %v181, 16
      %v217 = vrot.slane %v215, 5
      %v218 = vsel %vm190, %v213, %v217
      %v220 = vshrl.u32 %v173, 16
      %v222 = vrot.slane %v220, 4
      %v223 = vshll.u32 %v173, 16
      %v225 = vrot.slane %v223, 5
      %v226 = vor.u32 %v222, %v225
      %v227 = vrot.slane %v226, 4
      %v229 = vshll.u32 %v182, 16
      %v231 = vrot.slane %v229, 5
      %v232 = vsel %vm190, %v227, %v231
      %v234 = vshrl.u32 %v174, 16
      %v236 = vrot.slane %v234, 4
      %v237 = vshll.u32 %v174, 16
      %v239 = vrot.slane %v237, 5
      %v240 = vor.u32 %v236, %v239
      %v241 = vrot.slane %v240, 4
      %v243 = vshll.u32 %v183, 16
      %v245 = vrot.slane %v243, 5
      %v246 = vsel %vm190, %v241, %v245
      %v248 = vshrl.u32 %v175, 16
      %v250 = vrot.slane %v248, 4
      %v251 = vshll.u32 %v175, 16
      %v253 = vrot.slane %v251, 5
      %v254 = vor.u32 %v250, %v253
      %v255 = vrot.slane %v254, 4
      %v257 = vshll.u32 %v184, 16
      %v259 = vrot.slane %v257, 5
      %v260 = vsel %vm190, %v255, %v259
      %v262 = vshrl.u32 %v176, 16
      %v264 = vrot.slane %v262, 4
      %v265 = vshll.u32 %v176, 16
      %v267 = vrot.slane %v265, 5
      %v268 = vor.u32 %v264, %v267
      %v269 = vrot.slane %v268, 4
      %v271 = vshll.u32 %v185, 16
      %v273 = vrot.slane %v271, 5
      %v274 = vsel %vm190, %v269, %v273
      %v276 = vshrl.u32 %v177, 16
      %v278 = vrot.slane %v276, 4
      %v279 = vshll.u32 %v177, 16
      %v281 = vrot.slane %v279, 5
      %v282 = vor.u32 %v278, %v281
      %v283 = vrot.slane %v282, 4
      %v285 = vshll.u32 %v186, 16
      %v287 = vrot.slane %v285, 5
      %v288 = vsel %vm190, %v283, %v287
      %v290 = vshrl.u32 %v178, 16
      %v292 = vrot.slane %v290, 4
      %v293 = vshll.u32 %v178, 16
      %v295 = vrot.slane %v293, 5
      %v296 = vor.u32 %v292, %v295
      %v297 = vrot.slane %v296, 4
      %v299 = vshll.u32 %v187, 16
      %v301 = vrot.slane %v299, 5
      %v302 = vsel %vm190, %v297, %v301
      %s303 = scalar_lea.vmem %s1, 4
      %v304 = vld [vmem:[%s303] sm:$0xf]
      %v305 = vunpack.c.l.b16 %v204
      %v306 = vunpack.c.l.b16 %v218
      %v307 = vunpack.c.l.b16 %v232
      %v308 = vunpack.c.l.b16 %v246
      %v309 = vunpack.c.l.b16 %v260
      %v310 = vunpack.c.l.b16 %v274
      %v311 = vunpack.c.l.b16 %v288
      %v312 = vunpack.c.l.b16 %v302
      %v313 = vpack.c.b16 %v306, %v305
      %v314 = vpack.c.b16 %v308, %v307
      %v315 = vpack.c.b16 %v310, %v309
      %v316 = vpack.c.b16 %v312, %v311
      %vm317 = vcmask 64512
      %v319 = vsel %vm317, %v313, 0
      %v322 = vsel %vm317, %v314, 0
      %v325 = vsel %vm317, %v315, 0
      %v328 = vsel %vm317, %v316, 0
      %vm330 = vcmask 1043456
      %v332 = vsel %vm330, %v304, 0
      %334 = vmatprep.subr.bf16.mxu0 0
      %335 = vmatpush1.bf16.msra.mxu0 %v332
      %336 = vmatprep.subr.bf16.mxu0 0
      %337 = vmatpush1.bf16.msra.mxu0 0
      %338 = vmatprep.subr.bf16.mxu0 0
      %339 = vmatpush1.bf16.msra.mxu0 0
      %340 = vmatprep.subr.bf16.mxu0 0
      %341 = vmatpush1.bf16.msra.mxu0 0
      %342 = vmatprep.subr.bf16.mxu0 0
      %343 = vmatpush1.bf16.msra.mxu0 0
      %344 = vmatprep.subr.bf16.mxu0 0
      %345 = vmatpush1.bf16.msra.mxu0 0
      %346 = vmatprep.subr.bf16.mxu0 0
      %347 = vmatpush1.bf16.msra.mxu0 0
      %348 = vmatprep.subr.bf16.mxu0 0
      %349 = vmatpush1.bf16.msra.mxu0 0
      %350 = vmatprep.subr.bf16.mxu0 0
      %351 = vmatpush1.bf16.msra.mxu0 0
      %352 = vmatprep.subr.bf16.mxu0 0
      %353 = vmatpush1.bf16.msra.mxu0 0
      %354 = vmatprep.subr.bf16.mxu0 0
      %355 = vmatpush1.bf16.msra.mxu0 0
      %356 = vmatprep.subr.bf16.mxu0 0
      %357 = vmatpush1.bf16.msra.mxu0 0
      %358 = vmatprep.subr.bf16.mxu0 0
      %359 = vmatpush1.bf16.msra.mxu0 0
      %360 = vmatprep.subr.bf16.mxu0 0
      %361 = vmatpush1.bf16.msra.mxu0 0
      %362 = vmatprep.subr.bf16.mxu0 0
      %363 = vmatpush1.bf16.msra.mxu0 0
      %364 = vmatprep.subr.bf16.mxu0 0
      %365 = vmatpush1.bf16.msra.mxu0 0
      %366 = vmatprep.mubr.bf16.mxu0 0
      %367 = vmatmul.mubr.bf16.gmra.mrb[0].mxu0 %v319
      %v368 = vpop.f32.mrb[0].mxu0
      %v369 = vadd.f32 0.0, %v368
      %v370 = vpop.f32.mrb[0].mxu0
      %v371 = vpop.f32.mrb[0].mxu0
      %v372 = vadd.f32 0.0, %v371
      %v373 = vpop.f32.mrb[0].mxu0
      %374 = vmatprep.mubr.bf16.mxu0 0
      %375 = vmatmul.mubr.bf16.gmra.mrb[0].mxu0 %v322
      %v376 = vpop.f32.mrb[0].mxu0
      %v377 = vadd.f32 0.0, %v376
      %v378 = vpop.f32.mrb[0].mxu0
      %v379 = vpop.f32.mrb[0].mxu0
      %v380 = vadd.f32 0.0, %v379
      %v381 = vpop.f32.mrb[0].mxu0
      %382 = vmatprep.mubr.bf16.mxu0 0
      %383 = vmatmul.mubr.bf16.gmra.mrb[0].mxu0 %v325
      %v384 = vpop.f32.mrb[0].mxu0
      %v385 = vadd.f32 0.0, %v384
      %v386 = vpop.f32.mrb[0].mxu0
      %v387 = vpop.f32.mrb[0].mxu0
      %v388 = vadd.f32 0.0, %v387
      %v389 = vpop.f32.mrb[0].mxu0
      %390 = vmatprep.mubr.bf16.mxu0 0
      %391 = vmatmul.mubr.bf16.gmra.mrb[0].mxu0 %v328
      %v392 = vpop.f32.mrb[0].mxu0
      %v393 = vadd.f32 0.0, %v392
      %v394 = vpop.f32.mrb[0].mxu0
      %v395 = vpop.f32.mrb[0].mxu0
      %v396 = vadd.f32 0.0, %v395
      %v397 = vpop.f32.mrb[0].mxu0
      %398 = vdwg.mxu0
      %v407 = vunpack.c.l.b16 %v171
      %v408 = vunpack.c.l.b16 %v172
      %v409 = vunpack.c.l.b16 %v173
      %v410 = vunpack.c.l.b16 %v174
      %v411 = vunpack.c.l.b16 %v175
      %v412 = vunpack.c.l.b16 %v176
      %v413 = vunpack.c.l.b16 %v177
      %v414 = vunpack.c.l.b16 %v178
      %v415 = vpack.c.b16 %v408, %v407
      %v416 = vpack.c.b16 %v410, %v409
      %v417 = vpack.c.b16 %v412, %v411
      %v418 = vpack.c.b16 %v414, %v413
      %v420 = vsel %vm317, %v415, 0
      %v423 = vsel %vm317, %v416, 0
      %v426 = vsel %vm317, %v417, 0
      %v429 = vsel %vm317, %v418, 0
      %v432 = vsel %vm330, %v179, 0
      %434 = vmatprep.subr.bf16.mxu0 0
      %435 = vmatpush1.bf16.msra.mxu0 %v432
      %436 = vmatprep.subr.bf16.mxu0 0
      %437 = vmatpush1.bf16.msra.mxu0 0
      %438 = vmatprep.subr.bf16.mxu0 0
      %439 = vmatpush1.bf16.msra.mxu0 0
      %440 = vmatprep.subr.bf16.mxu0 0
      %441 = vmatpush1.bf16.msra.mxu0 0
      %442 = vmatprep.subr.bf16.mxu0 0
      %443 = vmatpush1.bf16.msra.mxu0 0
      %444 = vmatprep.subr.bf16.mxu0 0
      %445 = vmatpush1.bf16.msra.mxu0 0
      %446 = vmatprep.subr.bf16.mxu0 0
      %447 = vmatpush1.bf16.msra.mxu0 0
      %448 = vmatprep.subr.bf16.mxu0 0
      %449 = vmatpush1.bf16.msra.mxu0 0
      %450 = vmatprep.subr.bf16.mxu0 0
      %451 = vmatpush1.bf16.msra.mxu0 0
      %452 = vmatprep.subr.bf16.mxu0 0
      %453 = vmatpush1.bf16.msra.mxu0 0
      %454 = vmatprep.subr.bf16.mxu0 0
      %455 = vmatpush1.bf16.msra.mxu0 0
      %456 = vmatprep.subr.bf16.mxu0 0
      %457 = vmatpush1.bf16.msra.mxu0 0
      %458 = vmatprep.subr.bf16.mxu0 0
      %459 = vmatpush1.bf16.msra.mxu0 0
      %460 = vmatprep.subr.bf16.mxu0 0
      %461 = vmatpush1.bf16.msra.mxu0 0
      %462 = vmatprep.subr.bf16.mxu0 0
      %463 = vmatpush1.bf16.msra.mxu0 0
      %464 = vmatprep.subr.bf16.mxu0 0
      %465 = vmatpush1.bf16.msra.mxu0 0
      %466 = vmatprep.mubr.bf16.mxu0 0
      %467 = vmatmul.mubr.bf16.gmra.mrb[0].mxu0 %v420
      %v468 = vpop.f32.mrb[0].mxu0
      %v469 = vadd.f32 %v369, %v468
      %v470 = vpop.f32.mrb[0].mxu0
      %v471 = vpop.f32.mrb[0].mxu0
      %v472 = vadd.f32 %v372, %v471
      %v473 = vpop.f32.mrb[0].mxu0
      %474 = vmatprep.mubr.bf16.mxu0 0
      %475 = vmatmul.mubr.bf16.gmra.mrb[0].mxu0 %v423
      %v476 = vpop.f32.mrb[0].mxu0
      %v477 = vadd.f32 %v377, %v476
      %v478 = vpop.f32.mrb[0].mxu0
      %v479 = vpop.f32.mrb[0].mxu0
      %v480 = vadd.f32 %v380, %v479
      %v481 = vpop.f32.mrb[0].mxu0
      %482 = vmatprep.mubr.bf16.mxu0 0
      %483 = vmatmul.mubr.bf16.gmra.mrb[0].mxu0 %v426
      %v484 = vpop.f32.mrb[0].mxu0
      %v485 = vadd.f32 %v385, %v484
      %v486 = vpop.f32.mrb[0].mxu0
      %v487 = vpop.f32.mrb[0].mxu0
      %v488 = vadd.f32 %v388, %v487
      %v489 = vpop.f32.mrb[0].mxu0
      %490 = vmatprep.mubr.bf16.mxu0 0
      %491 = vmatmul.mubr.bf16.gmra.mrb[0].mxu0 %v429
      %v492 = vpop.f32.mrb[0].mxu0
      %v493 = vadd.f32 %v393, %v492
      %v494 = vpop.f32.mrb[0].mxu0
      %v495 = vpop.f32.mrb[0].mxu0
      %v496 = vadd.f32 %v396, %v495
      %v497 = vpop.f32.mrb[0].mxu0
      %498 = vdwg.mxu0
      %v499 = vld [vmem:[%s163] sm:$0xe]
      %v500 = vld [vmem:[%s163 + $0x8] sm:$0xe]
      %v501 = vld [vmem:[%s163 + $0x10] sm:$0xe]
      %v502 = vld [vmem:[%s163 + $0x18] sm:$0xe]
      %v503 = vld [vmem:[%s163 + $0x20] sm:$0xe]
      %v504 = vld [vmem:[%s163 + $0x28] sm:$0xe]
      %v505 = vld [vmem:[%s163 + $0x30] sm:$0xe]
      %v506 = vld [vmem:[%s163 + $0x38] sm:$0xe]
      %vm523 = vcmask 1042432
      %vm524 = vcmask 1046532
      %vm525 = vmor %vm523, %vm524
      %v526 = vrot.slane %v499, 5
      %v527 = vrot.slane %v526, 4
      %v528 = vrot.slane %v180, 5
      %v529 = vsel %vm525, %v527, %v528
      %v530 = vrot.slane %v500, 5
      %v531 = vrot.slane %v530, 4
      %v532 = vrot.slane %v181, 5
      %v533 = vsel %vm525, %v531, %v532
      %v534 = vrot.slane %v501, 5
      %v535 = vrot.slane %v534, 4
      %v536 = vrot.slane %v182, 5
      %v537 = vsel %vm525, %v535, %v536
      %v538 = vrot.slane %v502, 5
      %v539 = vrot.slane %v538, 4
      %v540 = vrot.slane %v183, 5
      %v541 = vsel %vm525, %v539, %v540
      %v542 = vrot.slane %v503, 5
      %v543 = vrot.slane %v542, 4
      %v544 = vrot.slane %v184, 5
      %v545 = vsel %vm525, %v543, %v544
      %v546 = vrot.slane %v504, 5
      %v547 = vrot.slane %v546, 4
      %v548 = vrot.slane %v185, 5
      %v549 = vsel %vm525, %v547, %v548
      %v550 = vrot.slane %v505, 5
      %v551 = vrot.slane %v550, 4
      %v552 = vrot.slane %v186, 5
      %v553 = vsel %vm525, %v551, %v552
      %v554 = vrot.slane %v506, 5
      %v555 = vrot.slane %v554, 4
      %v556 = vrot.slane %v187, 5
      %v557 = vsel %vm525, %v555, %v556
      %s558 = scalar_lea.vmem %s1, 8
      %v559 = vld [vmem:[%s558] sm:$0xf]
      %v560 = vunpack.c.l.b16 %v529
      %v561 = vunpack.c.l.b16 %v533
      %v562 = vunpack.c.l.b16 %v537
      %v563 = vunpack.c.l.b16 %v541
      %v564 = vunpack.c.l.b16 %v545
      %v565 = vunpack.c.l.b16 %v549
      %v566 = vunpack.c.l.b16 %v553
      %v567 = vunpack.c.l.b16 %v557
      %v568 = vpack.c.b16 %v561, %v560
      %v569 = vpack.c.b16 %v563, %v562
      %v570 = vpack.c.b16 %v565, %v564
      %v571 = vpack.c.b16 %v567, %v566
      %v573 = vsel %vm317, %v568, 0
      %v576 = vsel %vm317, %v569, 0
      %v579 = vsel %vm317, %v570, 0
      %v582 = vsel %vm317, %v571, 0
      %v585 = vsel %vm330, %v559, 0
      %587 = vmatprep.subr.bf16.mxu0 0
      %588 = vmatpush1.bf16.msra.mxu0 %v585
      %589 = vmatprep.subr.bf16.mxu0 0
      %590 = vmatpush1.bf16.msra.mxu0 0
      %591 = vmatprep.subr.bf16.mxu0 0
      %592 = vmatpush1.bf16.msra.mxu0 0
      %593 = vmatprep.subr.bf16.mxu0 0
      %594 = vmatpush1.bf16.msra.mxu0 0
      %595 = vmatprep.subr.bf16.mxu0 0
      %596 = vmatpush1.bf16.msra.mxu0 0
      %597 = vmatprep.subr.bf16.mxu0 0
      %598 = vmatpush1.bf16.msra.mxu0 0
      %599 = vmatprep.subr.bf16.mxu0 0
      %600 = vmatpush1.bf16.msra.mxu0 0
      %601 = vmatprep.subr.bf16.mxu0 0
      %602 = vmatpush1.bf16.msra.mxu0 0
      %603 = vmatprep.subr.bf16.mxu0 0
      %604 = vmatpush1.bf16.msra.mxu0 0
      %605 = vmatprep.subr.bf16.mxu0 0
      %606 = vmatpush1.bf16.msra.mxu0 0
      %607 = vmatprep.subr.bf16.mxu0 0
      %608 = vmatpush1.bf16.msra.mxu0 0
      %609 = vmatprep.subr.bf16.mxu0 0
      %610 = vmatpush1.bf16.msra.mxu0 0
      %611 = vmatprep.subr.bf16.mxu0 0
      %612 = vmatpush1.bf16.msra.mxu0 0
      %613 = vmatprep.subr.bf16.mxu0 0
      %614 = vmatpush1.bf16.msra.mxu0 0
      %615 = vmatprep.subr.bf16.mxu0 0
      %616 = vmatpush1.bf16.msra.mxu0 0
      %617 = vmatprep.subr.bf16.mxu0 0
      %618 = vmatpush1.bf16.msra.mxu0 0
      %619 = vmatprep.mubr.bf16.mxu0 0
      %620 = vmatmul.mubr.bf16.gmra.mrb[0].mxu0 %v573
      %v621 = vpop.f32.mrb[0].mxu0
      %v622 = vadd.f32 0.0, %v621
      %v623 = vpop.f32.mrb[0].mxu0
      %v624 = vpop.f32.mrb[0].mxu0
      %v625 = vadd.f32 0.0, %v624
      %v626 = vpop.f32.mrb[0].mxu0
      %627 = vmatprep.mubr.bf16.mxu0 0
      %628 = vmatmul.mubr.bf16.gmra.mrb[0].mxu0 %v576
      %v629 = vpop.f32.mrb[0].mxu0
      %v630 = vadd.f32 0.0, %v629
      %v631 = vpop.f32.mrb[0].mxu0
      %v632 = vpop.f32.mrb[0].mxu0
      %v633 = vadd.f32 0.0, %v632
      %v634 = vpop.f32.mrb[0].mxu0
      %635 = vmatprep.mubr.bf16.mxu0 0
      %636 = vmatmul.mubr.bf16.gmra.mrb[0].mxu0 %v579
      %v637 = vpop.f32.mrb[0].mxu0
      %v638 = vadd.f32 0.0, %v637
      %v639 = vpop.f32.mrb[0].mxu0
      %v640 = vpop.f32.mrb[0].mxu0
      %v641 = vadd.f32 0.0, %v640
      %v642 = vpop.f32.mrb[0].mxu0
      %643 = vmatprep.mubr.bf16.mxu0 0
      %644 = vmatmul.mubr.bf16.gmra.mrb[0].mxu0 %v582
      %v645 = vpop.f32.mrb[0].mxu0
      %v646 = vadd.f32 0.0, %v645
      %v647 = vpop.f32.mrb[0].mxu0
      %v648 = vpop.f32.mrb[0].mxu0
      %v649 = vadd.f32 0.0, %v648
      %v650 = vpop.f32.mrb[0].mxu0
      %651 = vdwg.mxu0
      %v652 = vadd.f32 %v469, %v622
      %v653 = vadd.f32 %v472, %v625
      %v654 = vadd.f32 %v477, %v630
      %v655 = vadd.f32 %v480, %v633
      %v656 = vadd.f32 %v485, %v638
      %v657 = vadd.f32 %v488, %v641
      %v658 = vadd.f32 %v493, %v646
      %v659 = vadd.f32 %v496, %v649
      %s660 = scalar_lea.vmem %s163, 8
      %v661 = vld [vmem:[%s660] sm:$0xf]
      %v662 = vld [vmem:[%s660 + $0x8] sm:$0xf]
      %v663 = vld [vmem:[%s660 + $0x10] sm:$0xf]
      %v664 = vld [vmem:[%s660 + $0x18] sm:$0xf]
      %v665 = vld [vmem:[%s660 + $0x20] sm:$0xf]
      %v666 = vld [vmem:[%s660 + $0x28] sm:$0xf]
      %v667 = vld [vmem:[%s660 + $0x30] sm:$0xf]
      %v668 = vld [vmem:[%s660 + $0x38] sm:$0xf]
      %s669 = scalar_lea.vmem %s1, 12
      %v670 = vld [vmem:[%s669] sm:$0xf]
      %v679 = vunpack.c.l.b16 %v661
      %v680 = vunpack.c.l.b16 %v662
      %v681 = vunpack.c.l.b16 %v663
      %v682 = vunpack.c.l.b16 %v664
      %v683 = vunpack.c.l.b16 %v665
      %v684 = vunpack.c.l.b16 %v666
      %v685 = vunpack.c.l.b16 %v667
      %v686 = vunpack.c.l.b16 %v668
      %v687 = vpack.c.b16 %v680, %v679
      %v688 = vpack.c.b16 %v682, %v681
      %v689 = vpack.c.b16 %v684, %v683
      %v690 = vpack.c.b16 %v686, %v685
      %v692 = vsel %vm317, %v687, 0
      %v695 = vsel %vm317, %v688, 0
      %v698 = vsel %vm317, %v689, 0
      %v701 = vsel %vm317, %v690, 0
      %v704 = vsel %vm330, %v670, 0
      %706 = vmatprep.subr.bf16.mxu0 0
      %707 = vmatpush1.bf16.msra.mxu0 %v704
      %708 = vmatprep.subr.bf16.mxu0 0
      %709 = vmatpush1.bf16.msra.mxu0 0
      %710 = vmatprep.subr.bf16.mxu0 0
      %711 = vmatpush1.bf16.msra.mxu0 0
      %712 = vmatprep.subr.bf16.mxu0 0
      %713 = vmatpush1.bf16.msra.mxu0 0
      %714 = vmatprep.subr.bf16.mxu0 0
      %715 = vmatpush1.bf16.msra.mxu0 0
      %716 = vmatprep.subr.bf16.mxu0 0
      %717 = vmatpush1.bf16.msra.mxu0 0
      %718 = vmatprep.subr.bf16.mxu0 0
      %719 = vmatpush1.bf16.msra.mxu0 0
      %720 = vmatprep.subr.bf16.mxu0 0
      %721 = vmatpush1.bf16.msra.mxu0 0
      %722 = vmatprep.subr.bf16.mxu0 0
      %723 = vmatpush1.bf16.msra.mxu0 0
      %724 = vmatprep.subr.bf16.mxu0 0
      %725 = vmatpush1.bf16.msra.mxu0 0
      %726 = vmatprep.subr.bf16.mxu0 0
      %727 = vmatpush1.bf16.msra.mxu0 0
      %728 = vmatprep.subr.bf16.mxu0 0
      %729 = vmatpush1.bf16.msra.mxu0 0
      %730 = vmatprep.subr.bf16.mxu0 0
      %731 = vmatpush1.bf16.msra.mxu0 0
      %732 = vmatprep.subr.bf16.mxu0 0
      %733 = vmatpush1.bf16.msra.mxu0 0
      %734 = vmatprep.subr.bf16.mxu0 0
      %735 = vmatpush1.bf16.msra.mxu0 0
      %736 = vmatprep.subr.bf16.mxu0 0
      %737 = vmatpush1.bf16.msra.mxu0 0
      %738 = vmatprep.mubr.bf16.mxu0 0
      %739 = vmatmul.mubr.bf16.gmra.mrb[0].mxu0 %v692
      %v740 = vpop.f32.mrb[0].mxu0
      %v741 = vadd.f32 0.0, %v740
      %v742 = vpop.f32.mrb[0].mxu0
      %v743 = vpop.f32.mrb[0].mxu0
      %v744 = vadd.f32 0.0, %v743
      %v745 = vpop.f32.mrb[0].mxu0
      %746 = vmatprep.mubr.bf16.mxu0 0
      %747 = vmatmul.mubr.bf16.gmra.mrb[0].mxu0 %v695
      %v748 = vpop.f32.mrb[0].mxu0
      %v749 = vadd.f32 0.0, %v748
      %v750 = vpop.f32.mrb[0].mxu0
      %v751 = vpop.f32.mrb[0].mxu0
      %v752 = vadd.f32 0.0, %v751
      %v753 = vpop.f32.mrb[0].mxu0
      %754 = vmatprep.mubr.bf16.mxu0 0
      %755 = vmatmul.mubr.bf16.gmra.mrb[0].mxu0 %v698
      %v756 = vpop.f32.mrb[0].mxu0
      %v757 = vadd.f32 0.0, %v756
      %v758 = vpop.f32.mrb[0].mxu0
      %v759 = vpop.f32.mrb[0].mxu0
      %v760 = vadd.f32 0.0, %v759
      %v761 = vpop.f32.mrb[0].mxu0
      %762 = vmatprep.mubr.bf16.mxu0 0
      %763 = vmatmul.mubr.bf16.gmra.mrb[0].mxu0 %v701
      %v764 = vpop.f32.mrb[0].mxu0
      %v765 = vadd.f32 0.0, %v764
      %v766 = vpop.f32.mrb[0].mxu0
      %v767 = vpop.f32.mrb[0].mxu0
      %v768 = vadd.f32 0.0, %v767
      %v769 = vpop.f32.mrb[0].mxu0
      %770 = vdwg.mxu0
      %v771 = vadd.f32 %v652, %v741
      %v772 = vadd.f32 %v653, %v744
      %v773 = vadd.f32 %v654, %v749
      %v774 = vadd.f32 %v655, %v752
      %v775 = vadd.f32 %v656, %v757
      %v776 = vadd.f32 %v657, %v760
      %v777 = vadd.f32 %v658, %v765
      %v778 = vadd.f32 %v659, %v768
      %v779 = vld [vmem:[%s660] sm:$0xf]
      %v780 = vld [vmem:[%s660 + $0x4] sm:$0x1]
      %v781 = vld [vmem:[%s660 + $0x8] sm:$0xf]
      %v782 = vld [vmem:[%s660 + $0xc] sm:$0x1]
      %v783 = vld [vmem:[%s660 + $0x10] sm:$0xf]
      %v784 = vld [vmem:[%s660 + $0x14] sm:$0x1]
      %v785 = vld [vmem:[%s660 + $0x18] sm:$0xf]
      %v786 = vld [vmem:[%s660 + $0x1c] sm:$0x1]
      %v787 = vld [vmem:[%s660 + $0x20] sm:$0xf]
      %v788 = vld [vmem:[%s660 + $0x24] sm:$0x1]
      %v789 = vld [vmem:[%s660 + $0x28] sm:$0xf]
      %v790 = vld [vmem:[%s660 + $0x2c] sm:$0x1]
      %v791 = vld [vmem:[%s660 + $0x30] sm:$0xf]
      %v792 = vld [vmem:[%s660 + $0x34] sm:$0x1]
      %v793 = vld [vmem:[%s660 + $0x38] sm:$0xf]
      %v794 = vld [vmem:[%s660 + $0x3c] sm:$0x1]
      %v796 = vshrl.u32 %v779, 16
      %v798 = vrot.slane %v796, 4
      %v799 = vshll.u32 %v779, 16
      %v801 = vrot.slane %v799, 5
      %v802 = vor.u32 %v798, %v801
      %v803 = vrot.slane %v802, 4
      %v805 = vshll.u32 %v780, 16
      %v807 = vrot.slane %v805, 5
      %v808 = vsel %vm190, %v803, %v807
      %v810 = vshrl.u32 %v781, 16
      %v812 = vrot.slane %v810, 4
      %v813 = vshll.u32 %v781, 16
      %v815 = vrot.slane %v813, 5
      %v816 = vor.u32 %v812, %v815
      %v817 = vrot.slane %v816, 4
      %v819 = vshll.u32 %v782, 16
      %v821 = vrot.slane %v819, 5
      %v822 = vsel %vm190, %v817, %v821
      %v824 = vshrl.u32 %v783, 16
      %v826 = vrot.slane %v824, 4
      %v827 = vshll.u32 %v783, 16
      %v829 = vrot.slane %v827, 5
      %v830 = vor.u32 %v826, %v829
      %v831 = vrot.slane %v830, 4
      %v833 = vshll.u32 %v784, 16
      %v835 = vrot.slane %v833, 5
      %v836 = vsel %vm190, %v831, %v835
      %v838 = vshrl.u32 %v785, 16
      %v840 = vrot.slane %v838, 4
      %v841 = vshll.u32 %v785, 16
      %v843 = vrot.slane %v841, 5
      %v844 = vor.u32 %v840, %v843
      %v845 = vrot.slane %v844, 4
      %v847 = vshll.u32 %v786, 16
      %v849 = vrot.slane %v847, 5
      %v850 = vsel %vm190, %v845, %v849
      %v852 = vshrl.u32 %v787, 16
      %v854 = vrot.slane %v852, 4
      %v855 = vshll.u32 %v787, 16
      %v857 = vrot.slane %v855, 5
      %v858 = vor.u32 %v854, %v857
      %v859 = vrot.slane %v858, 4
      %v861 = vshll.u32 %v788, 16
      %v863 = vrot.slane %v861, 5
      %v864 = vsel %vm190, %v859, %v863
      %v866 = vshrl.u32 %v789, 16
      %v868 = vrot.slane %v866, 4
      %v869 = vshll.u32 %v789, 16
      %v871 = vrot.slane %v869, 5
      %v872 = vor.u32 %v868, %v871
      %v873 = vrot.slane %v872, 4
      %v875 = vshll.u32 %v790, 16
      %v877 = vrot.slane %v875, 5
      %v878 = vsel %vm190, %v873, %v877
      %v880 = vshrl.u32 %v791, 16
      %v882 = vrot.slane %v880, 4
      %v883 = vshll.u32 %v791, 16
      %v885 = vrot.slane %v883, 5
      %v886 = vor.u32 %v882, %v885
      %v887 = vrot.slane %v886, 4
      %v889 = vshll.u32 %v792, 16
      %v891 = vrot.slane %v889, 5
      %v892 = vsel %vm190, %v887, %v891
      %v894 = vshrl.u32 %v793, 16
      %v896 = vrot.slane %v894, 4
      %v897 = vshll.u32 %v793, 16
      %v899 = vrot.slane %v897, 5
      %v900 = vor.u32 %v896, %v899
      %v901 = vrot.slane %v900, 4
      %v903 = vshll.u32 %v794, 16
      %v905 = vrot.slane %v903, 5
      %v906 = vsel %vm190, %v901, %v905
      %s907 = scalar_lea.vmem %s1, 16
      %v908 = vld [vmem:[%s907] sm:$0xf]
      %v909 = vunpack.c.l.b16 %v808
      %v910 = vunpack.c.l.b16 %v822
      %v911 = vunpack.c.l.b16 %v836
      %v912 = vunpack.c.l.b16 %v850
      %v913 = vunpack.c.l.b16 %v864
      %v914 = vunpack.c.l.b16 %v878
      %v915 = vunpack.c.l.b16 %v892
      %v916 = vunpack.c.l.b16 %v906
      %v917 = vpack.c.b16 %v910, %v909
      %v918 = vpack.c.b16 %v912, %v911
      %v919 = vpack.c.b16 %v914, %v913
      %v920 = vpack.c.b16 %v916, %v915
      %v922 = vsel %vm317, %v917, 0
      %v925 = vsel %vm317, %v918, 0
      %v928 = vsel %vm317, %v919, 0
      %v931 = vsel %vm317, %v920, 0
      %v934 = vsel %vm330, %v908, 0
      %936 = vmatprep.subr.bf16.mxu0 0
      %937 = vmatpush1.bf16.msra.mxu0 %v934
      %938 = vmatprep.subr.bf16.mxu0 0
      %939 = vmatpush1.bf16.msra.mxu0 0
      %940 = vmatprep.subr.bf16.mxu0 0
      %941 = vmatpush1.bf16.msra.mxu0 0
      %942 = vmatprep.subr.bf16.mxu0 0
      %943 = vmatpush1.bf16.msra.mxu0 0
      %944 = vmatprep.subr.bf16.mxu0 0
      %945 = vmatpush1.bf16.msra.mxu0 0
      %946 = vmatprep.subr.bf16.mxu0 0
      %947 = vmatpush1.bf16.msra.mxu0 0
      %948 = vmatprep.subr.bf16.mxu0 0
      %949 = vmatpush1.bf16.msra.mxu0 0
      %950 = vmatprep.subr.bf16.mxu0 0
      %951 = vmatpush1.bf16.msra.mxu0 0
      %952 = vmatprep.subr.bf16.mxu0 0
      %953 = vmatpush1.bf16.msra.mxu0 0
      %954 = vmatprep.subr.bf16.mxu0 0
      %955 = vmatpush1.bf16.msra.mxu0 0
      %956 = vmatprep.subr.bf16.mxu0 0
      %957 = vmatpush1.bf16.msra.mxu0 0
      %958 = vmatprep.subr.bf16.mxu0 0
      %959 = vmatpush1.bf16.msra.mxu0 0
      %960 = vmatprep.subr.bf16.mxu0 0
      %961 = vmatpush1.bf16.msra.mxu0 0
      %962 = vmatprep.subr.bf16.mxu0 0
      %963 = vmatpush1.bf16.msra.mxu0 0
      %964 = vmatprep.subr.bf16.mxu0 0
      %965 = vmatpush1.bf16.msra.mxu0 0
      %966 = vmatprep.subr.bf16.mxu0 0
      %967 = vmatpush1.bf16.msra.mxu0 0
      %968 = vmatprep.mubr.bf16.mxu0 0
      %969 = vmatmul.mubr.bf16.gmra.mrb[0].mxu0 %v922
      %v970 = vpop.f32.mrb[0].mxu0
      %v971 = vadd.f32 0.0, %v970
      %v972 = vpop.f32.mrb[0].mxu0
      %v973 = vpop.f32.mrb[0].mxu0
      %v974 = vadd.f32 0.0, %v973
      %v975 = vpop.f32.mrb[0].mxu0
      %976 = vmatprep.mubr.bf16.mxu0 0
      %977 = vmatmul.mubr.bf16.gmra.mrb[0].mxu0 %v925
      %v978 = vpop.f32.mrb[0].mxu0
      %v979 = vadd.f32 0.0, %v978
      %v980 = vpop.f32.mrb[0].mxu0
      %v981 = vpop.f32.mrb[0].mxu0
      %v982 = vadd.f32 0.0, %v981
      %v983 = vpop.f32.mrb[0].mxu0
      %984 = vmatprep.mubr.bf16.mxu0 0
      %985 = vmatmul.mubr.bf16.gmra.mrb[0].mxu0 %v928
      %v986 = vpop.f32.mrb[0].mxu0
      %v987 = vadd.f32 0.0, %v986
      %v988 = vpop.f32.mrb[0].mxu0
      %v989 = vpop.f32.mrb[0].mxu0
      %v990 = vadd.f32 0.0, %v989
      %v991 = vpop.f32.mrb[0].mxu0
      %992 = vmatprep.mubr.bf16.mxu0 0
      %993 = vmatmul.mubr.bf16.gmra.mrb[0].mxu0 %v931
      %v994 = vpop.f32.mrb[0].mxu0
      %v995 = vadd.f32 0.0, %v994
      %v996 = vpop.f32.mrb[0].mxu0
      %v997 = vpop.f32.mrb[0].mxu0
      %v998 = vadd.f32 0.0, %v997
      %v999 = vpop.f32.mrb[0].mxu0
      %1000 = vdwg.mxu0
      %v1001 = vadd.f32 %v771, %v971
      %v1002 = vadd.f32 %v772, %v974
      %v1003 = vadd.f32 %v773, %v979
      %v1004 = vadd.f32 %v774, %v982
      %v1005 = vadd.f32 %v775, %v987
      %v1006 = vadd.f32 %v776, %v990
      %v1007 = vadd.f32 %v777, %v995
      %v1008 = vadd.f32 %v778, %v998
      %v1009 = vld [vmem:[%s660] sm:$0xe]
      %v1010 = vld [vmem:[%s660 + $0x8] sm:$0xe]
      %v1011 = vld [vmem:[%s660 + $0x10] sm:$0xe]
      %v1012 = vld [vmem:[%s660 + $0x18] sm:$0xe]
      %v1013 = vld [vmem:[%s660 + $0x20] sm:$0xe]
      %v1014 = vld [vmem:[%s660 + $0x28] sm:$0xe]
      %v1015 = vld [vmem:[%s660 + $0x30] sm:$0xe]
      %v1016 = vld [vmem:[%s660 + $0x38] sm:$0xe]
      %v1033 = vrot.slane %v1009, 5
      %v1034 = vrot.slane %v1033, 4
      %v1035 = vrot.slane %v780, 5
      %v1036 = vsel %vm525, %v1034, %v1035
      %v1037 = vrot.slane %v1010, 5
      %v1038 = vrot.slane %v1037, 4
      %v1039 = vrot.slane %v782, 5
      %v1040 = vsel %vm525, %v1038, %v1039
      %v1041 = vrot.slane %v1011, 5
      %v1042 = vrot.slane %v1041, 4
      %v1043 = vrot.slane %v784, 5
      %v1044 = vsel %vm525, %v1042, %v1043
      %v1045 = vrot.slane %v1012, 5
      %v1046 = vrot.slane %v1045, 4
      %v1047 = vrot.slane %v786, 5
      %v1048 = vsel %vm525, %v1046, %v1047
      %v1049 = vrot.slane %v1013, 5
      %v1050 = vrot.slane %v1049, 4
      %v1051 = vrot.slane %v788, 5
      %v1052 = vsel %vm525, %v1050, %v1051
      %v1053 = vrot.slane %v1014, 5
      %v1054 = vrot.slane %v1053, 4
      %v1055 = vrot.slane %v790, 5
      %v1056 = vsel %vm525, %v1054, %v1055
      %v1057 = vrot.slane %v1015, 5
      %v1058 = vrot.slane %v1057, 4
      %v1059 = vrot.slane %v792, 5
      %v1060 = vsel %vm525, %v1058, %v1059
      %v1061 = vrot.slane %v1016, 5
      %v1062 = vrot.slane %v1061, 4
      %v1063 = vrot.slane %v794, 5
      %v1064 = vsel %vm525, %v1062, %v1063
      %s1065 = scalar_lea.vmem %s1, 20
      %v1066 = vld [vmem:[%s1065] sm:$0xf]
      %v1067 = vunpack.c.l.b16 %v1036
      %v1068 = vunpack.c.l.b16 %v1040
      %v1069 = vunpack.c.l.b16 %v1044
      %v1070 = vunpack.c.l.b16 %v1048
      %v1071 = vunpack.c.l.b16 %v1052
      %v1072 = vunpack.c.l.b16 %v1056
      %v1073 = vunpack.c.l.b16 %v1060
      %v1074 = vunpack.c.l.b16 %v1064
      %v1075 = vpack.c.b16 %v1068, %v1067
      %v1076 = vpack.c.b16 %v1070, %v1069
      %v1077 = vpack.c.b16 %v1072, %v1071
      %v1078 = vpack.c.b16 %v1074, %v1073
      %v1080 = vsel %vm317, %v1075, 0
      %v1083 = vsel %vm317, %v1076, 0
      %v1086 = vsel %vm317, %v1077, 0
      %v1089 = vsel %vm317, %v1078, 0
      %v1092 = vsel %vm330, %v1066, 0
      %1094 = vmatprep.subr.bf16.mxu0 0
      %1095 = vmatpush1.bf16.msra.mxu0 %v1092
      %1096 = vmatprep.subr.bf16.mxu0 0
      %1097 = vmatpush1.bf16.msra.mxu0 0
      %1098 = vmatprep.subr.bf16.mxu0 0
      %1099 = vmatpush1.bf16.msra.mxu0 0
      %1100 = vmatprep.subr.bf16.mxu0 0
      %1101 = vmatpush1.bf16.msra.mxu0 0
      %1102 = vmatprep.subr.bf16.mxu0 0
      %1103 = vmatpush1.bf16.msra.mxu0 0
      %1104 = vmatprep.subr.bf16.mxu0 0
      %1105 = vmatpush1.bf16.msra.mxu0 0
      %1106 = vmatprep.subr.bf16.mxu0 0
      %1107 = vmatpush1.bf16.msra.mxu0 0
      %1108 = vmatprep.subr.bf16.mxu0 0
      %1109 = vmatpush1.bf16.msra.mxu0 0
      %1110 = vmatprep.subr.bf16.mxu0 0
      %1111 = vmatpush1.bf16.msra.mxu0 0
      %1112 = vmatprep.subr.bf16.mxu0 0
      %1113 = vmatpush1.bf16.msra.mxu0 0
      %1114 = vmatprep.subr.bf16.mxu0 0
      %1115 = vmatpush1.bf16.msra.mxu0 0
      %1116 = vmatprep.subr.bf16.mxu0 0
      %1117 = vmatpush1.bf16.msra.mxu0 0
      %1118 = vmatprep.subr.bf16.mxu0 0
      %1119 = vmatpush1.bf16.msra.mxu0 0
      %1120 = vmatprep.subr.bf16.mxu0 0
      %1121 = vmatpush1.bf16.msra.mxu0 0
      %1122 = vmatprep.subr.bf16.mxu0 0
      %1123 = vmatpush1.bf16.msra.mxu0 0
      %1124 = vmatprep.subr.bf16.mxu0 0
      %1125 = vmatpush1.bf16.msra.mxu0 0
      %1126 = vmatprep.mubr.bf16.mxu0 0
      %1127 = vmatmul.mubr.bf16.gmra.mrb[0].mxu0 %v1080
      %v1128 = vpop.f32.mrb[0].mxu0
      %v1129 = vadd.f32 0.0, %v1128
      %v1130 = vpop.f32.mrb[0].mxu0
      %v1131 = vpop.f32.mrb[0].mxu0
      %v1132 = vadd.f32 0.0, %v1131
      %v1133 = vpop.f32.mrb[0].mxu0
      %1134 = vmatprep.mubr.bf16.mxu0 0
      %1135 = vmatmul.mubr.bf16.gmra.mrb[0].mxu0 %v1083
      %v1136 = vpop.f32.mrb[0].mxu0
      %v1137 = vadd.f32 0.0, %v1136
      %v1138 = vpop.f32.mrb[0].mxu0
      %v1139 = vpop.f32.mrb[0].mxu0
      %v1140 = vadd.f32 0.0, %v1139
      %v1141 = vpop.f32.mrb[0].mxu0
      %1142 = vmatprep.mubr.bf16.mxu0 0
      %1143 = vmatmul.mubr.bf16.gmra.mrb[0].mxu0 %v1086
      %v1144 = vpop.f32.mrb[0].mxu0
      %v1145 = vadd.f32 0.0, %v1144
      %v1146 = vpop.f32.mrb[0].mxu0
      %v1147 = vpop.f32.mrb[0].mxu0
      %v1148 = vadd.f32 0.0, %v1147
      %v1149 = vpop.f32.mrb[0].mxu0
      %1150 = vmatprep.mubr.bf16.mxu0 0
      %1151 = vmatmul.mubr.bf16.gmra.mrb[0].mxu0 %v1089
      %v1152 = vpop.f32.mrb[0].mxu0
      %v1153 = vadd.f32 0.0, %v1152
      %v1154 = vpop.f32.mrb[0].mxu0
      %v1155 = vpop.f32.mrb[0].mxu0
      %v1156 = vadd.f32 0.0, %v1155
      %v1157 = vpop.f32.mrb[0].mxu0
      %1158 = vdwg.mxu0
      %v1159 = vadd.f32 %v1001, %v1129
      %v1160 = vadd.f32 %v1002, %v1132
      %v1161 = vadd.f32 %v1003, %v1137
      %v1162 = vadd.f32 %v1004, %v1140
      %v1163 = vadd.f32 %v1005, %v1145
      %v1164 = vadd.f32 %v1006, %v1148
      %v1165 = vadd.f32 %v1007, %v1153
      %v1166 = vadd.f32 %v1008, %v1156
      %s1167 = scalar_lea.vmem %s163, 16
      %v1168 = vld [vmem:[%s1167] sm:$0xf]
      %v1169 = vld [vmem:[%s1167 + $0x8] sm:$0xf]
      %v1170 = vld [vmem:[%s1167 + $0x10] sm:$0xf]
      %v1171 = vld [vmem:[%s1167 + $0x18] sm:$0xf]
      %v1172 = vld [vmem:[%s1167 + $0x20] sm:$0xf]
      %v1173 = vld [vmem:[%s1167 + $0x28] sm:$0xf]
      %v1174 = vld [vmem:[%s1167 + $0x30] sm:$0xf]
      %v1175 = vld [vmem:[%s1167 + $0x38] sm:$0xf]
      %s1176 = scalar_lea.vmem %s1, 24
      %v1177 = vld [vmem:[%s1176] sm:$0xf]
      %v1186 = vunpack.c.l.b16 %v1168
      %v1187 = vunpack.c.l.b16 %v1169
      %v1188 = vunpack.c.l.b16 %v1170
      %v1189 = vunpack.c.l.b16 %v1171
      %v1190 = vunpack.c.l.b16 %v1172
      %v1191 = vunpack.c.l.b16 %v1173
      %v1192 = vunpack.c.l.b16 %v1174
      %v1193 = vunpack.c.l.b16 %v1175
      %v1194 = vpack.c.b16 %v1187, %v1186
      %v1195 = vpack.c.b16 %v1189, %v1188
      %v1196 = vpack.c.b16 %v1191, %v1190
      %v1197 = vpack.c.b16 %v1193, %v1192
      %v1199 = vsel %vm317, %v1194, 0
      %v1202 = vsel %vm317, %v1195, 0
      %v1205 = vsel %vm317, %v1196, 0
      %v1208 = vsel %vm317, %v1197, 0
      %v1211 = vsel %vm330, %v1177, 0
      %1213 = vmatprep.subr.bf16.mxu0 0
      %1214 = vmatpush1.bf16.msra.mxu0 %v1211
      %1215 = vmatprep.subr.bf16.mxu0 0
      %1216 = vmatpush1.bf16.msra.mxu0 0
      %1217 = vmatprep.subr.bf16.mxu0 0
      %1218 = vmatpush1.bf16.msra.mxu0 0
      %1219 = vmatprep.subr.bf16.mxu0 0
      %1220 = vmatpush1.bf16.msra.mxu0 0
      %1221 = vmatprep.subr.bf16.mxu0 0
      %1222 = vmatpush1.bf16.msra.mxu0 0
      %1223 = vmatprep.subr.bf16.mxu0 0
      %1224 = vmatpush1.bf16.msra.mxu0 0
      %1225 = vmatprep.subr.bf16.mxu0 0
      %1226 = vmatpush1.bf16.msra.mxu0 0
      %1227 = vmatprep.subr.bf16.mxu0 0
      %1228 = vmatpush1.bf16.msra.mxu0 0
      %1229 = vmatprep.subr.bf16.mxu0 0
      %1230 = vmatpush1.bf16.msra.mxu0 0
      %1231 = vmatprep.subr.bf16.mxu0 0
      %1232 = vmatpush1.bf16.msra.mxu0 0
      %1233 = vmatprep.subr.bf16.mxu0 0
      %1234 = vmatpush1.bf16.msra.mxu0 0
      %1235 = vmatprep.subr.bf16.mxu0 0
      %1236 = vmatpush1.bf16.msra.mxu0 0
      %1237 = vmatprep.subr.bf16.mxu0 0
      %1238 = vmatpush1.bf16.msra.mxu0 0
      %1239 = vmatprep.subr.bf16.mxu0 0
      %1240 = vmatpush1.bf16.msra.mxu0 0
      %1241 = vmatprep.subr.bf16.mxu0 0
      %1242 = vmatpush1.bf16.msra.mxu0 0
      %1243 = vmatprep.subr.bf16.mxu0 0
      %1244 = vmatpush1.bf16.msra.mxu0 0
      %1245 = vmatprep.mubr.bf16.mxu0 0
      %1246 = vmatmul.mubr.bf16.gmra.mrb[0].mxu0 %v1199
      %v1247 = vpop.f32.mrb[0].mxu0
      %v1248 = vadd.f32 0.0, %v1247
      %v1249 = vpop.f32.mrb[0].mxu0
      %v1250 = vpop.f32.mrb[0].mxu0
      %v1251 = vadd.f32 0.0, %v1250
      %v1252 = vpop.f32.mrb[0].mxu0
      %1253 = vmatprep.mubr.bf16.mxu0 0
      %1254 = vmatmul.mubr.bf16.gmra.mrb[0].mxu0 %v1202
      %v1255 = vpop.f32.mrb[0].mxu0
      %v1256 = vadd.f32 0.0, %v1255
      %v1257 = vpop.f32.mrb[0].mxu0
      %v1258 = vpop.f32.mrb[0].mxu0
      %v1259 = vadd.f32 0.0, %v1258
      %v1260 = vpop.f32.mrb[0].mxu0
      %1261 = vmatprep.mubr.bf16.mxu0 0
      %1262 = vmatmul.mubr.bf16.gmra.mrb[0].mxu0 %v1205
      %v1263 = vpop.f32.mrb[0].mxu0
      %v1264 = vadd.f32 0.0, %v1263
      %v1265 = vpop.f32.mrb[0].mxu0
      %v1266 = vpop.f32.mrb[0].mxu0
      %v1267 = vadd.f32 0.0, %v1266
      %v1268 = vpop.f32.mrb[0].mxu0
      %1269 = vmatprep.mubr.bf16.mxu0 0
      %1270 = vmatmul.mubr.bf16.gmra.mrb[0].mxu0 %v1208
      %v1271 = vpop.f32.mrb[0].mxu0
      %v1272 = vadd.f32 0.0, %v1271
      %v1273 = vpop.f32.mrb[0].mxu0
      %v1274 = vpop.f32.mrb[0].mxu0
      %v1275 = vadd.f32 0.0, %v1274
      %v1276 = vpop.f32.mrb[0].mxu0
      %1277 = vdwg.mxu0
      %v1278 = vadd.f32 %v1159, %v1248
      %v1279 = vadd.f32 %v1160, %v1251
      %v1280 = vadd.f32 %v1161, %v1256
      %v1281 = vadd.f32 %v1162, %v1259
      %v1282 = vadd.f32 %v1163, %v1264
      %v1283 = vadd.f32 %v1164, %v1267
      %v1284 = vadd.f32 %v1165, %v1272
      %v1285 = vadd.f32 %v1166, %v1275
      %v1286 = vld [vmem:[%s1167] sm:$0xf]
      %v1287 = vld [vmem:[%s1167 + $0x4] sm:$0x1]
      %v1288 = vld [vmem:[%s1167 + $0x8] sm:$0xf]
      %v1289 = vld [vmem:[%s1167 + $0xc] sm:$0x1]
      %v1290 = vld [vmem:[%s1167 + $0x10] sm:$0xf]
      %v1291 = vld [vmem:[%s1167 + $0x14] sm:$0x1]
      %v1292 = vld [vmem:[%s1167 + $0x18] sm:$0xf]
      %v1293 = vld [vmem:[%s1167 + $0x1c] sm:$0x1]
      %v1294 = vld [vmem:[%s1167 + $0x20] sm:$0xf]
      %v1295 = vld [vmem:[%s1167 + $0x24] sm:$0x1]
      %v1296 = vld [vmem:[%s1167 + $0x28] sm:$0xf]
      %v1297 = vld [vmem:[%s1167 + $0x2c] sm:$0x1]
      %v1298 = vld [vmem:[%s1167 + $0x30] sm:$0xf]
      %v1299 = vld [vmem:[%s1167 + $0x34] sm:$0x1]
      %v1300 = vld [vmem:[%s1167 + $0x38] sm:$0xf]
      %v1301 = vld [vmem:[%s1167 + $0x3c] sm:$0x1]
      %v1303 = vshrl.u32 %v1286, 16
      %v1305 = vrot.slane %v1303, 4
      %v1306 = vshll.u32 %v1286, 16
      %v1308 = vrot.slane %v1306, 5
      %v1309 = vor.u32 %v1305, %v1308
      %v1310 = vrot.slane %v1309, 4
      %v1312 = vshll.u32 %v1287, 16
      %v1314 = vrot.slane %v1312, 5
      %v1315 = vsel %vm190, %v1310, %v1314
      %v1317 = vshrl.u32 %v1288, 16
      %v1319 = vrot.slane %v1317, 4
      %v1320 = vshll.u32 %v1288, 16
      %v1322 = vrot.slane %v1320, 5
      %v1323 = vor.u32 %v1319, %v1322
      %v1324 = vrot.slane %v1323, 4
      %v1326 = vshll.u32 %v1289, 16
      %v1328 = vrot.slane %v1326, 5
      %v1329 = vsel %vm190, %v1324, %v1328
      %v1331 = vshrl.u32 %v1290, 16
      %v1333 = vrot.slane %v1331, 4
      %v1334 = vshll.u32 %v1290, 16
      %v1336 = vrot.slane %v1334, 5
      %v1337 = vor.u32 %v1333, %v1336
      %v1338 = vrot.slane %v1337, 4
      %v1340 = vshll.u32 %v1291, 16
      %v1342 = vrot.slane %v1340, 5
      %v1343 = vsel %vm190, %v1338, %v1342
      %v1345 = vshrl.u32 %v1292, 16
      %v1347 = vrot.slane %v1345, 4
      %v1348 = vshll.u32 %v1292, 16
      %v1350 = vrot.slane %v1348, 5
      %v1351 = vor.u32 %v1347, %v1350
      %v1352 = vrot.slane %v1351, 4
      %v1354 = vshll.u32 %v1293, 16
      %v1356 = vrot.slane %v1354, 5
      %v1357 = vsel %vm190, %v1352, %v1356
      %v1359 = vshrl.u32 %v1294, 16
      %v1361 = vrot.slane %v1359, 4
      %v1362 = vshll.u32 %v1294, 16
      %v1364 = vrot.slane %v1362, 5
      %v1365 = vor.u32 %v1361, %v1364
      %v1366 = vrot.slane %v1365, 4
      %v1368 = vshll.u32 %v1295, 16
      %v1370 = vrot.slane %v1368, 5
      %v1371 = vsel %vm190, %v1366, %v1370
      %v1373 = vshrl.u32 %v1296, 16
      %v1375 = vrot.slane %v1373, 4
      %v1376 = vshll.u32 %v1296, 16
      %v1378 = vrot.slane %v1376, 5
      %v1379 = vor.u32 %v1375, %v1378
      %v1380 = vrot.slane %v1379, 4
      %v1382 = vshll.u32 %v1297, 16
      %v1384 = vrot.slane %v1382, 5
      %v1385 = vsel %vm190, %v1380, %v1384
      %v1387 = vshrl.u32 %v1298, 16
      %v1389 = vrot.slane %v1387, 4
      %v1390 = vshll.u32 %v1298, 16
      %v1392 = vrot.slane %v1390, 5
      %v1393 = vor.u32 %v1389, %v1392
      %v1394 = vrot.slane %v1393, 4
      %v1396 = vshll.u32 %v1299, 16
      %v1398 = vrot.slane %v1396, 5
      %v1399 = vsel %vm190, %v1394, %v1398
      %v1401 = vshrl.u32 %v1300, 16
      %v1403 = vrot.slane %v1401, 4
      %v1404 = vshll.u32 %v1300, 16
      %v1406 = vrot.slane %v1404, 5
      %v1407 = vor.u32 %v1403, %v1406
      %v1408 = vrot.slane %v1407, 4
      %v1410 = vshll.u32 %v1301, 16
      %v1412 = vrot.slane %v1410, 5
      %v1413 = vsel %vm190, %v1408, %v1412
      %s1414 = scalar_lea.vmem %s1, 28
      %v1415 = vld [vmem:[%s1414] sm:$0xf]
      %v1416 = vunpack.c.l.b16 %v1315
      %v1417 = vunpack.c.l.b16 %v1329
      %v1418 = vunpack.c.l.b16 %v1343
      %v1419 = vunpack.c.l.b16 %v1357
      %v1420 = vunpack.c.l.b16 %v1371
      %v1421 = vunpack.c.l.b16 %v1385
      %v1422 = vunpack.c.l.b16 %v1399
      %v1423 = vunpack.c.l.b16 %v1413
      %v1424 = vpack.c.b16 %v1417, %v1416
      %v1425 = vpack.c.b16 %v1419, %v1418
      %v1426 = vpack.c.b16 %v1421, %v1420
      %v1427 = vpack.c.b16 %v1423, %v1422
      %v1429 = vsel %vm317, %v1424, 0
      %v1432 = vsel %vm317, %v1425, 0
      %v1435 = vsel %vm317, %v1426, 0
      %v1438 = vsel %vm317, %v1427, 0
      %v1441 = vsel %vm330, %v1415, 0
      %1443 = vmatprep.subr.bf16.mxu0 0
      %1444 = vmatpush1.bf16.msra.mxu0 %v1441
      %1445 = vmatprep.subr.bf16.mxu0 0
      %1446 = vmatpush1.bf16.msra.mxu0 0
      %1447 = vmatprep.subr.bf16.mxu0 0
      %1448 = vmatpush1.bf16.msra.mxu0 0
      %1449 = vmatprep.subr.bf16.mxu0 0
      %1450 = vmatpush1.bf16.msra.mxu0 0
      %1451 = vmatprep.subr.bf16.mxu0 0
      %1452 = vmatpush1.bf16.msra.mxu0 0
      %1453 = vmatprep.subr.bf16.mxu0 0
      %1454 = vmatpush1.bf16.msra.mxu0 0
      %1455 = vmatprep.subr.bf16.mxu0 0
      %1456 = vmatpush1.bf16.msra.mxu0 0
      %1457 = vmatprep.subr.bf16.mxu0 0
      %1458 = vmatpush1.bf16.msra.mxu0 0
      %1459 = vmatprep.subr.bf16.mxu0 0
      %1460 = vmatpush1.bf16.msra.mxu0 0
      %1461 = vmatprep.subr.bf16.mxu0 0
      %1462 = vmatpush1.bf16.msra.mxu0 0
      %1463 = vmatprep.subr.bf16.mxu0 0
      %1464 = vmatpush1.bf16.msra.mxu0 0
      %1465 = vmatprep.subr.bf16.mxu0 0
      %1466 = vmatpush1.bf16.msra.mxu0 0
      %1467 = vmatprep.subr.bf16.mxu0 0
      %1468 = vmatpush1.bf16.msra.mxu0 0
      %1469 = vmatprep.subr.bf16.mxu0 0
      %1470 = vmatpush1.bf16.msra.mxu0 0
      %1471 = vmatprep.subr.bf16.mxu0 0
      %1472 = vmatpush1.bf16.msra.mxu0 0
      %1473 = vmatprep.subr.bf16.mxu0 0
      %1474 = vmatpush1.bf16.msra.mxu0 0
      %1475 = vmatprep.mubr.bf16.mxu0 0
      %1476 = vmatmul.mubr.bf16.gmra.mrb[0].mxu0 %v1429
      %v1477 = vpop.f32.mrb[0].mxu0
      %v1478 = vadd.f32 0.0, %v1477
      %v1479 = vpop.f32.mrb[0].mxu0
      %v1480 = vpop.f32.mrb[0].mxu0
      %v1481 = vadd.f32 0.0, %v1480
      %v1482 = vpop.f32.mrb[0].mxu0
      %1483 = vmatprep.mubr.bf16.mxu0 0
      %1484 = vmatmul.mubr.bf16.gmra.mrb[0].mxu0 %v1432
      %v1485 = vpop.f32.mrb[0].mxu0
      %v1486 = vadd.f32 0.0, %v1485
      %v1487 = vpop.f32.mrb[0].mxu0
      %v1488 = vpop.f32.mrb[0].mxu0
      %v1489 = vadd.f32 0.0, %v1488
      %v1490 = vpop.f32.mrb[0].mxu0
      %1491 = vmatprep.mubr.bf16.mxu0 0
      %1492 = vmatmul.mubr.bf16.gmra.mrb[0].mxu0 %v1435
      %v1493 = vpop.f32.mrb[0].mxu0
      %v1494 = vadd.f32 0.0, %v1493
      %v1495 = vpop.f32.mrb[0].mxu0
      %v1496 = vpop.f32.mrb[0].mxu0
      %v1497 = vadd.f32 0.0, %v1496
      %v1498 = vpop.f32.mrb[0].mxu0
      %1499 = vmatprep.mubr.bf16.mxu0 0
      %1500 = vmatmul.mubr.bf16.gmra.mrb[0].mxu0 %v1438
      %v1501 = vpop.f32.mrb[0].mxu0
      %v1502 = vadd.f32 0.0, %v1501
      %v1503 = vpop.f32.mrb[0].mxu0
      %v1504 = vpop.f32.mrb[0].mxu0
      %v1505 = vadd.f32 0.0, %v1504
      %v1506 = vpop.f32.mrb[0].mxu0
      %1507 = vdwg.mxu0
      %v1508 = vadd.f32 %v1278, %v1478
      %v1509 = vadd.f32 %v1279, %v1481
      %v1510 = vadd.f32 %v1280, %v1486
      %v1511 = vadd.f32 %v1281, %v1489
      %v1512 = vadd.f32 %v1282, %v1494
      %v1513 = vadd.f32 %v1283, %v1497
      %v1514 = vadd.f32 %v1284, %v1502
      %v1515 = vadd.f32 %v1285, %v1505
      %v1516 = vld [vmem:[%s1167] sm:$0xe]
      %v1517 = vld [vmem:[%s1167 + $0x8] sm:$0xe]
      %v1518 = vld [vmem:[%s1167 + $0x10] sm:$0xe]
      %v1519 = vld [vmem:[%s1167 + $0x18] sm:$0xe]
      %v1520 = vld [vmem:[%s1167 + $0x20] sm:$0xe]
      %v1521 = vld [vmem:[%s1167 + $0x28] sm:$0xe]
      %v1522 = vld [vmem:[%s1167 + $0x30] sm:$0xe]
      %v1523 = vld [vmem:[%s1167 + $0x38] sm:$0xe]
      %v1540 = vrot.slane %v1516, 5
      %v1541 = vrot.slane %v1540, 4
      %v1542 = vrot.slane %v1287, 5
      %v1543 = vsel %vm525, %v1541, %v1542
      %v1544 = vrot.slane %v1517, 5
      %v1545 = vrot.slane %v1544, 4
      %v1546 = vrot.slane %v1289, 5
      %v1547 = vsel %vm525, %v1545, %v1546
      %v1548 = vrot.slane %v1518, 5
      %v1549 = vrot.slane %v1548, 4
      %v1550 = vrot.slane %v1291, 5
      %v1551 = vsel %vm525, %v1549, %v1550
      %v1552 = vrot.slane %v1519, 5
      %v1553 = vrot.slane %v1552, 4
      %v1554 = vrot.slane %v1293, 5
      %v1555 = vsel %vm525, %v1553, %v1554
      %v1556 = vrot.slane %v1520, 5
      %v1557 = vrot.slane %v1556, 4
      %v1558 = vrot.slane %v1295, 5
      %v1559 = vsel %vm525, %v1557, %v1558
      %v1560 = vrot.slane %v1521, 5
      %v1561 = vrot.slane %v1560, 4
      %v1562 = vrot.slane %v1297, 5
      %v1563 = vsel %vm525, %v1561, %v1562
      %v1564 = vrot.slane %v1522, 5
      %v1565 = vrot.slane %v1564, 4
      %v1566 = vrot.slane %v1299, 5
      %v1567 = vsel %vm525, %v1565, %v1566
      %v1568 = vrot.slane %v1523, 5
      %v1569 = vrot.slane %v1568, 4
      %v1570 = vrot.slane %v1301, 5
      %v1571 = vsel %vm525, %v1569, %v1570
      %s1572 = scalar_lea.vmem %s1, 32
      %v1573 = vld [vmem:[%s1572] sm:$0xf]
      %v1574 = vunpack.c.l.b16 %v1543
      %v1575 = vunpack.c.l.b16 %v1547
      %v1576 = vunpack.c.l.b16 %v1551
      %v1577 = vunpack.c.l.b16 %v1555
      %v1578 = vunpack.c.l.b16 %v1559
      %v1579 = vunpack.c.l.b16 %v1563
      %v1580 = vunpack.c.l.b16 %v1567
      %v1581 = vunpack.c.l.b16 %v1571
      %v1582 = vpack.c.b16 %v1575, %v1574
      %v1583 = vpack.c.b16 %v1577, %v1576
      %v1584 = vpack.c.b16 %v1579, %v1578
      %v1585 = vpack.c.b16 %v1581, %v1580
      %v1587 = vsel %vm317, %v1582, 0
      %v1590 = vsel %vm317, %v1583, 0
      %v1593 = vsel %vm317, %v1584, 0
      %v1596 = vsel %vm317, %v1585, 0
      %v1599 = vsel %vm330, %v1573, 0
      %1601 = vmatprep.subr.bf16.mxu0 0
      %1602 = vmatpush1.bf16.msra.mxu0 %v1599
      %1603 = vmatprep.subr.bf16.mxu0 0
      %1604 = vmatpush1.bf16.msra.mxu0 0
      %1605 = vmatprep.subr.bf16.mxu0 0
      %1606 = vmatpush1.bf16.msra.mxu0 0
      %1607 = vmatprep.subr.bf16.mxu0 0
      %1608 = vmatpush1.bf16.msra.mxu0 0
      %1609 = vmatprep.subr.bf16.mxu0 0
      %1610 = vmatpush1.bf16.msra.mxu0 0
      %1611 = vmatprep.subr.bf16.mxu0 0
      %1612 = vmatpush1.bf16.msra.mxu0 0
      %1613 = vmatprep.subr.bf16.mxu0 0
      %1614 = vmatpush1.bf16.msra.mxu0 0
      %1615 = vmatprep.subr.bf16.mxu0 0
      %1616 = vmatpush1.bf16.msra.mxu0 0
      %1617 = vmatprep.subr.bf16.mxu0 0
      %1618 = vmatpush1.bf16.msra.mxu0 0
      %1619 = vmatprep.subr.bf16.mxu0 0
      %1620 = vmatpush1.bf16.msra.mxu0 0
      %1621 = vmatprep.subr.bf16.mxu0 0
      %1622 = vmatpush1.bf16.msra.mxu0 0
      %1623 = vmatprep.subr.bf16.mxu0 0
      %1624 = vmatpush1.bf16.msra.mxu0 0
      %1625 = vmatprep.subr.bf16.mxu0 0
      %1626 = vmatpush1.bf16.msra.mxu0 0
      %1627 = vmatprep.subr.bf16.mxu0 0
      %1628 = vmatpush1.bf16.msra.mxu0 0
      %1629 = vmatprep.subr.bf16.mxu0 0
      %1630 = vmatpush1.bf16.msra.mxu0 0
      %1631 = vmatprep.subr.bf16.mxu0 0
      %1632 = vmatpush1.bf16.msra.mxu0 0
      %1633 = vmatprep.mubr.bf16.mxu0 0
      %1634 = vmatmul.mubr.bf16.gmra.mrb[0].mxu0 %v1587
      %v1635 = vpop.f32.mrb[0].mxu0
      %v1636 = vadd.f32 0.0, %v1635
      %v1637 = vpop.f32.mrb[0].mxu0
      %v1638 = vpop.f32.mrb[0].mxu0
      %v1639 = vadd.f32 0.0, %v1638
      %v1640 = vpop.f32.mrb[0].mxu0
      %1641 = vmatprep.mubr.bf16.mxu0 0
      %1642 = vmatmul.mubr.bf16.gmra.mrb[0].mxu0 %v1590
      %v1643 = vpop.f32.mrb[0].mxu0
      %v1644 = vadd.f32 0.0, %v1643
      %v1645 = vpop.f32.mrb[0].mxu0
      %v1646 = vpop.f32.mrb[0].mxu0
      %v1647 = vadd.f32 0.0, %v1646
      %v1648 = vpop.f32.mrb[0].mxu0
      %1649 = vmatprep.mubr.bf16.mxu0 0
      %1650 = vmatmul.mubr.bf16.gmra.mrb[0].mxu0 %v1593
      %v1651 = vpop.f32.mrb[0].mxu0
      %v1652 = vadd.f32 0.0, %v1651
      %v1653 = vpop.f32.mrb[0].mxu0
      %v1654 = vpop.f32.mrb[0].mxu0
      %v1655 = vadd.f32 0.0, %v1654
      %v1656 = vpop.f32.mrb[0].mxu0
      %1657 = vmatprep.mubr.bf16.mxu0 0
      %1658 = vmatmul.mubr.bf16.gmra.mrb[0].mxu0 %v1596
      %v1659 = vpop.f32.mrb[0].mxu0
      %v1660 = vadd.f32 0.0, %v1659
      %v1661 = vpop.f32.mrb[0].mxu0
      %v1662 = vpop.f32.mrb[0].mxu0
      %v1663 = vadd.f32 0.0, %v1662
      %v1664 = vpop.f32.mrb[0].mxu0
      %1665 = vdwg.mxu0
      %v1666 = vadd.f32 %v1508, %v1636
      %v1667 = vadd.f32 %v1509, %v1639
      %v1668 = vadd.f32 %v1510, %v1644
      %v1669 = vadd.f32 %v1511, %v1647
      %v1670 = vadd.f32 %v1512, %v1652
      %v1671 = vadd.f32 %v1513, %v1655
      %v1672 = vadd.f32 %v1514, %v1660
      %v1673 = vadd.f32 %v1515, %v1663
      %v1674 = vpack.c.bf16 %v1667, %v1666
      %v1675 = vpack.c.bf16 %v1669, %v1668
      %v1676 = vpack.c.bf16 %v1671, %v1670
      %v1677 = vpack.c.bf16 %v1673, %v1672
      %v1682 = vunpack.c.l.b16 %v1674
      %v1683 = vunpack.c.h.b16 %v1674
      %v1684 = vunpack.c.l.b16 %v1675
      %v1685 = vunpack.c.h.b16 %v1675
      %v1686 = vunpack.c.l.b16 %v1676
      %v1687 = vunpack.c.h.b16 %v1676
      %v1688 = vunpack.c.l.b16 %v1677
      %v1689 = vunpack.c.h.b16 %v1677
      %v1690 = vpack.c.b16 %v1682, %v1682
      %v1691 = vpack.c.b16 %v1683, %v1683
      %v1692 = vpack.c.b16 %v1684, %v1684
      %v1693 = vpack.c.b16 %v1685, %v1685
      %v1694 = vpack.c.b16 %v1686, %v1686
      %v1695 = vpack.c.b16 %v1687, %v1687
      %v1696 = vpack.c.b16 %v1688, %v1688
      %v1697 = vpack.c.b16 %v1689, %v1689
      %vm1706 = vcmask 60416
      %1707 = vst.msk [vmem:[%s168] sm:$0xf] %vm1706, %v1690
      %1708 = vst.msk [vmem:[%s168 + $0x4] sm:$0xf] %vm1706, %v1691
      %1709 = vst.msk [vmem:[%s168 + $0x8] sm:$0xf] %vm1706, %v1692
      %1710 = vst.msk [vmem:[%s168 + $0xc] sm:$0xf] %vm1706, %v1693
      %1711 = vst.msk [vmem:[%s168 + $0x10] sm:$0xf] %vm1706, %v1694
      %1712 = vst.msk [vmem:[%s168 + $0x14] sm:$0xf] %vm1706, %v1695
      %1713 = vst.msk [vmem:[%s168 + $0x18] sm:$0xf] %vm1706, %v1696
      %1714 = vst.msk [vmem:[%s168 + $0x1c] sm:$0xf] %vm1706, %v1697
      %p1715 = scmp.eq.s32.totalorder %s15, 0
      // Predicated region
      $region29: #{wy_block.10} parent=27 // pred_check
        %p1716 = pneg %p1715
      $region30: #{wy_block.10} parent=27 // pred_check_branch
        %1718 = sbr.rel (%p1716) target = $region32
      $region31: #{wy_block.10} parent=27 // pred_region
        %vm1719 = vcmask 58368
        %1720 = vst.msk [vmem:[%s3] sm:$0x3] %vm1719, 0.0
      $region32: #{wy_block.10} parent=27 // pred_fallthru
        _
      %v1721 = vld [vmem:[%s3] sm:$0x1]
      %v1722 = vsel %vm317, %v1666, 0.0
      %v1723 = vsel %vm317, %v1667, 0.0
      %v1724 = vadd.f32 %v1722, %v1723
      %v1725 = vsel %vm317, %v1668, 0.0
      %v1726 = vadd.f32 %v1724, %v1725
      %v1727 = vsel %vm317, %v1669, 0.0
      %v1728 = vadd.f32 %v1726, %v1727
      %v1729 = vsel %vm317, %v1670, 0.0
      %v1730 = vadd.f32 %v1728, %v1729
      %v1731 = vsel %vm317, %v1671, 0.0
      %v1732 = vadd.f32 %v1730, %v1731
      %v1733 = vsel %vm317, %v1672, 0.0
      %v1734 = vadd.f32 %v1732, %v1733
      %v1735 = vsel %vm317, %v1673, 0.0
      %v1736 = vadd.f32 %v1734, %v1735
      %v1737 = vrot.slane %v1736, 4
      %v1738 = vadd.f32 %v1736, %v1737
      %v1739 = vrot.slane %v1738, 2
      %v1740 = vadd.f32 %v1738, %v1739
      %v1741 = vrot.slane %v1740, 1
      %v1742 = vadd.f32 %v1740, %v1741
      %v1743 = vadd.f32 %v1721, %v1742
      %vm1744 = vcmask 57344
      %1745 = vst.msk [vmem:[%s3] sm:$0x1] %vm1744, %v1743
      %v1746 = vld [vmem:[%s3 + $0x1] sm:$0x1]
      %v1747 = vmul.f32 %v1666, %v1666
      %v1748 = vmul.f32 %v1667, %v1667
      %v1749 = vmul.f32 %v1668, %v1668
      %v1750 = vmul.f32 %v1669, %v1669
      %v1751 = vmul.f32 %v1670, %v1670
      %v1752 = vmul.f32 %v1671, %v1671
      %v1753 = vmul.f32 %v1672, %v1672
      %v1754 = vmul.f32 %v1673, %v1673
      %v1755 = vsel %vm317, %v1747, 0.0
      %v1756 = vsel %vm317, %v1748, 0.0
      %v1757 = vadd.f32 %v1755, %v1756
      %v1758 = vsel %vm317, %v1749, 0.0
      %v1759 = vadd.f32 %v1757, %v1758
      %v1760 = vsel %vm317, %v1750, 0.0
      %v1761 = vadd.f32 %v1759, %v1760
      %v1762 = vsel %vm317, %v1751, 0.0
      %v1763 = vadd.f32 %v1761, %v1762
      %v1764 = vsel %vm317, %v1752, 0.0
      %v1765 = vadd.f32 %v1763, %v1764
      %v1766 = vsel %vm317, %v1753, 0.0
      %v1767 = vadd.f32 %v1765, %v1766
      %v1768 = vsel %vm317, %v1754, 0.0
      %v1769 = vadd.f32 %v1767, %v1768
      %v1770 = vrot.slane %v1769, 4
      %v1771 = vadd.f32 %v1769, %v1770
      %v1772 = vrot.slane %v1771, 2
      %v1773 = vadd.f32 %v1771, %v1772
      %v1774 = vrot.slane %v1773, 1
      %v1775 = vadd.f32 %v1773, %v1774
      %v1776 = vadd.f32 %v1746, %v1775
      %1777 = vst.msk [vmem:[%s3 + $0x1] sm:$0x1] %vm1744, %v1776
      %s1778 = smul.u32 8, %s15
      %p1779 = scmp.lt.s32.totalorder %s1778, 15
      %s1780 = scalar_select %p1779, %s1778, 15
      %s1781 = smul.addr %s1780, 4
      %s1782 = scalar_lea.vmem %s2, %s1781
      // Predicated region
      $region33: #{wy_block.10} parent=27 // pred_check
        %p1783 = pneg %p80
      $region34: #{wy_block.10} parent=27 // pred_check_branch
        %1785 = sbr.rel (%p1783) target = $region36
      $region35: #{wy_block.10} parent=27 // pred_region
        %s1786 = smul.u32 8, %s15
      $region36: #{wy_block.10} parent=27 // pred_fallthru
        _
      // Predicated region
      $region37: #{wy_block.10} parent=27 // pred_check
        %p1787 = pneg %p101
      $region38: #{wy_block.10} parent=27 // pred_check_branch
        %1789 = sbr.rel (%p1787) target = $region40
      $region39: #{wy_block.10} parent=27 // pred_region
        _
      $region40: #{wy_block.10} parent=27 // pred_fallthru
        _
      // Predicated region
      $region41: #{wy_block.10} parent=27 // pred_check
        %p1790 = pneg %p101
      $region42: #{wy_block.10} parent=27 // pred_check_branch
        %1792 = sbr.rel (%p1790) target = $region44
      $region43: #{wy_block.10} parent=27 // pred_region
        _
      $region44: #{wy_block.10} parent=27 // pred_fallthru
        _
    $region28: #{wy_block.10} parent=5 // pred_fallthru
      _
    %p1793 = scmp.le.s32.totalorder 2, %s10
    // Predicated region
    $region45: #{wy_block.10} parent=5 // pred_check
      %p1794 = pneg %p1793
    $region46: #{wy_block.10} parent=5 // pred_check_branch
      %1796 = sbr.rel (%p1794) target = $region48
    $region47: #{wy_block.10} parent=5 // pred_region
      %s1797 = ssub.s32 %s10, 2
      // Predicated region
      $region49: #{wy_block.10} parent=47 // pred_check
        %p1798 = pneg %p86
      $region50: #{wy_block.10} parent=47 // pred_check_branch
        %1800 = sbr.rel (%p1798) target = $region52
      $region51: #{wy_block.10} parent=47 // pred_region
        %s1801 = smul.u32 8, %s16
        %p1802 = scmp.lt.s32.totalorder %s1801, 15
        %s1803 = scalar_select %p1802, %s1801, 15
        %s1804 = smul.addr %s1803, 4
        %s1805 = scalar_lea.vmem %s2, %s1804
      $region52: #{wy_block.10} parent=47 // pred_fallthru
        _
    $region48: #{wy_block.10} parent=5 // pred_fallthru
      _
  $region6: #{wy_block.10} parent=0 // loop_footer
    %s14 = sadd.s32 1, %s10
  $region7: #{wy_block.10} parent=0 // loop_footer_branch
    %9 = sbr.rel target = $region3
  $region8: #{wy_block.10} parent=0 // loop_exit
    _

// kernel: wy_block.11
$region0: #{wy_block.11}
  #allocation0 [shape = 'u32[]', space=smem, size = 0x4, offset = 0x4, fixed_abs, tag = 'smem constant byte address 0x4 - core index']
  #allocation1 [shape = 'u32[144,128]{1,0:T(1,128)}', space=vmem, size = 0x12000, scoped, tag = 'internal scratch']
  %s0 = inlined_call_operand.vmem [shape: bf16[8,128], index: 0, kind: input, shape index: {}]
  %s1 = inlined_call_operand.vmem [shape: f32[2,128], index: 1, kind: input, shape index: {}]
  %s2 = inlined_call_operand.vmem [shape: bf16[8,64], index: 2, kind: input, shape index: {}]
  %s3 = inlined_call_operand.vmem [shape: bf16[64,128], index: 3, kind: input, shape index: {}]
  %s4 = inlined_call_operand.vmem [shape: bf16[8,128], index: 4, kind: output, shape index: {}]
  %s5 = sld [smem:[#allocation0]]
  $region26: #{wy_block.11} parent=0
    _
  %s7 = ssub.s32 1, %s5
  %s8 = scalar_select 0, %s7, %s5
  // Predicated region
  $region2: #{wy_block.11} parent=0 // pred_check
    _
  $region3: #{wy_block.11} parent=0 // pred_check_branch
    %10 = sbr.rel (0) target = $region5
  $region4: #{wy_block.11} parent=0 // pred_region
    _
  $region5: #{wy_block.11} parent=0 // pred_fallthru
    _
  // Predicated region
  $region6: #{wy_block.11} parent=0 // pred_check
    _
  $region7: #{wy_block.11} parent=0 // pred_check_branch
    %12 = sbr.rel (0) target = $region9
  $region8: #{wy_block.11} parent=0 // pred_region
    _
  $region9: #{wy_block.11} parent=0 // pred_fallthru
    _
  // Predicated region
  $region10: #{wy_block.11} parent=0 // pred_check
    _
  $region11: #{wy_block.11} parent=0 // pred_check_branch
    %14 = sbr.rel (0) target = $region13
  $region12: #{wy_block.11} parent=0 // pred_region
    _
  $region13: #{wy_block.11} parent=0 // pred_fallthru
    _
  // Predicated region
  $region14: #{wy_block.11} parent=0 // pred_check
    _
  $region15: #{wy_block.11} parent=0 // pred_check_branch
    %16 = sbr.rel (0) target = $region17
  $region16: #{wy_block.11} parent=0 // pred_region
    _
  $region17: #{wy_block.11} parent=0 // pred_fallthru
    _
  %v18 = vld [vmem:[%s0] sm:$0xf]
  %v19 = vunpack.c.l.bf16 %v18
  %v20 = vld [vmem:[%s2] sm:$0xf]
  %v21 = vld [vmem:[%s3] sm:$0xf]
  %v22 = vld [vmem:[%s3 + $0x4] sm:$0xf]
  %v23 = vld [vmem:[%s3 + $0x8] sm:$0xf]
  %v24 = vld [vmem:[%s3 + $0xc] sm:$0xf]
  %v25 = vld [vmem:[%s3 + $0x10] sm:$0xf]
  %v26 = vld [vmem:[%s3 + $0x14] sm:$0xf]
  %v27 = vld [vmem:[%s3 + $0x18] sm:$0xf]
  %v28 = vld [vmem:[%s3 + $0x1c] sm:$0xf]
  %v37 = vunpack.c.l.b16 %v21
  %v38 = vunpack.c.l.b16 %v22
  %v39 = vunpack.c.l.b16 %v23
  %v40 = vunpack.c.l.b16 %v24
  %v41 = vunpack.c.l.b16 %v25
  %v42 = vunpack.c.l.b16 %v26
  %v43 = vunpack.c.l.b16 %v27
  %v44 = vunpack.c.l.b16 %v28
  %v45 = vpack.c.b16 %v38, %v37
  %v46 = vpack.c.b16 %v40, %v39
  %v47 = vpack.c.b16 %v42, %v41
  %v48 = vpack.c.b16 %v44, %v43
  %vm53 = vcmask 523264
  %v55 = vsel %vm53, %v20, 0
  %57 = vmatprep.subr.bf16.mxu0 0
  %58 = vmatpush1.bf16.msra.mxu0 %v45
  %59 = vmatprep.subr.bf16.mxu0 0
  %60 = vmatpush1.bf16.msra.mxu0 %v46
  %61 = vmatprep.subr.bf16.mxu0 0
  %62 = vmatpush1.bf16.msra.mxu0 %v47
  %63 = vmatprep.subr.bf16.mxu0 0
  %64 = vmatpush1.bf16.msra.mxu0 %v48
  %65 = vmatprep.subr.bf16.mxu0 0
  %66 = vmatpush1.bf16.msra.mxu0 0
  %67 = vmatprep.subr.bf16.mxu0 0
  %68 = vmatpush1.bf16.msra.mxu0 0
  %69 = vmatprep.subr.bf16.mxu0 0
  %70 = vmatpush1.bf16.msra.mxu0 0
  %71 = vmatprep.subr.bf16.mxu0 0
  %72 = vmatpush1.bf16.msra.mxu0 0
  %73 = vmatprep.subr.bf16.mxu0 0
  %74 = vmatpush1.bf16.msra.mxu0 0
  %75 = vmatprep.subr.bf16.mxu0 0
  %76 = vmatpush1.bf16.msra.mxu0 0
  %77 = vmatprep.subr.bf16.mxu0 0
  %78 = vmatpush1.bf16.msra.mxu0 0
  %79 = vmatprep.subr.bf16.mxu0 0
  %80 = vmatpush1.bf16.msra.mxu0 0
  %81 = vmatprep.subr.bf16.mxu0 0
  %82 = vmatpush1.bf16.msra.mxu0 0
  %83 = vmatprep.subr.bf16.mxu0 0
  %84 = vmatpush1.bf16.msra.mxu0 0
  %85 = vmatprep.subr.bf16.mxu0 0
  %86 = vmatpush1.bf16.msra.mxu0 0
  %87 = vmatprep.subr.bf16.mxu0 0
  %88 = vmatpush1.bf16.msra.mxu0 0
  %89 = vmatprep.mubr.bf16.mxu0 0
  %90 = vmatmul.mubr.bf16.gmra.mrb[0].mxu0 %v55
  %v91 = vpop.f32.mrb[0].mxu0
  %v92 = vadd.f32 0.0, %v91
  %v93 = vpop.f32.mrb[0].mxu0
  %v94 = vpop.f32.mrb[0].mxu0
  %v95 = vpop.f32.mrb[0].mxu0
  %96 = vdwg.mxu0
  %v97 = vld [vmem:[%s1] sm:$0x1]
  %v98 = vlaneseq
  %v99 = vshrl.u32 %v98, 7
  %v100 = vsub.s32 0, %v99
  %v101 = vrot.slane %v97, %v100
  %v102 = vmul.f32 %v19, %v101
  %v103 = vld [vmem:[%s1 + $0x1] sm:$0x1]
  %v104 = vlaneseq
  %v105 = vshrl.u32 %v104, 7
  %v106 = vsub.s32 0, %v105
  %v107 = vrot.slane %v103, %v106
  %v108 = vadd.f32 %v102, %v107
  %v109 = vadd.f32 %v108, %v92
  %v110 = vmax.f32 %v109, 0.0
  %v111 = vpack.c.bf16 %v110, %v110
  %112 = vst [vmem:[%s4] sm:$0xf] %v111
  // Predicated region
  $region18: #{wy_block.11} parent=0 // pred_check
    _
  $region19: #{wy_block.11} parent=0 // pred_check_branch
    %114 = sbr.rel (0) target = $region21
  $region20: #{wy_block.11} parent=0 // pred_region
    _
  $region21: #{wy_block.11} parent=0 // pred_fallthru
    _
  // Predicated region
  $region22: #{wy_block.11} parent=0 // pred_check
    _
  $region23: #{wy_block.11} parent=0 // pred_check_branch
    %116 = sbr.rel (0) target = $region25
  $region24: #{wy_block.11} parent=0 // pred_region
    _
  $region25: #{wy_block.11} parent=0 // pred_fallthru
    _

// kernel: wy_block.15
$region0: #{wy_block.15}
  #allocation0 [shape = 'u32[]', space=smem, size = 0x4, offset = 0x4, fixed_abs, tag = 'smem constant byte address 0x4 - core index']
  #allocation1 [shape = 'u32[144,128]{1,0:T(1,128)}', space=vmem, size = 0x12000, scoped, tag = 'internal scratch']
  %s0 = inlined_call_operand.vmem [shape: bf16[8,128], index: 0, kind: input, shape index: {}]
  %s1 = inlined_call_operand.vmem [shape: f32[2,128], index: 1, kind: input, shape index: {}]
  %s2 = inlined_call_operand.vmem [shape: bf16[8,128], index: 2, kind: input, shape index: {}]
  %s3 = inlined_call_operand.vmem [shape: bf16[128,128], index: 3, kind: input, shape index: {}]
  %s4 = inlined_call_operand.vmem [shape: f32[8,128], index: 4, kind: output, shape index: {}]
  %s5 = sld [smem:[#allocation0]]
  $region26: #{wy_block.15} parent=0
    _
  %s7 = ssub.s32 1, %s5
  %s8 = scalar_select 0, %s7, %s5
  // Predicated region
  $region2: #{wy_block.15} parent=0 // pred_check
    _
  $region3: #{wy_block.15} parent=0 // pred_check_branch
    %10 = sbr.rel (0) target = $region5
  $region4: #{wy_block.15} parent=0 // pred_region
    _
  $region5: #{wy_block.15} parent=0 // pred_fallthru
    _
  // Predicated region
  $region6: #{wy_block.15} parent=0 // pred_check
    _
  $region7: #{wy_block.15} parent=0 // pred_check_branch
    %12 = sbr.rel (0) target = $region9
  $region8: #{wy_block.15} parent=0 // pred_region
    _
  $region9: #{wy_block.15} parent=0 // pred_fallthru
    _
  // Predicated region
  $region10: #{wy_block.15} parent=0 // pred_check
    _
  $region11: #{wy_block.15} parent=0 // pred_check_branch
    %14 = sbr.rel (0) target = $region13
  $region12: #{wy_block.15} parent=0 // pred_region
    _
  $region13: #{wy_block.15} parent=0 // pred_fallthru
    _
  // Predicated region
  $region14: #{wy_block.15} parent=0 // pred_check
    _
  $region15: #{wy_block.15} parent=0 // pred_check_branch
    %16 = sbr.rel (0) target = $region17
  $region16: #{wy_block.15} parent=0 // pred_region
    _
  $region17: #{wy_block.15} parent=0 // pred_fallthru
    _
  %v18 = vld [vmem:[%s0] sm:$0xf]
  %v19 = vunpack.c.l.bf16 %v18
  %v20 = vld [vmem:[%s2] sm:$0xf]
  %v21 = vld [vmem:[%s3] sm:$0xf]
  %v22 = vld [vmem:[%s3 + $0x4] sm:$0xf]
  %v23 = vld [vmem:[%s3 + $0x8] sm:$0xf]
  %v24 = vld [vmem:[%s3 + $0xc] sm:$0xf]
  %v25 = vld [vmem:[%s3 + $0x10] sm:$0xf]
  %v26 = vld [vmem:[%s3 + $0x14] sm:$0xf]
  %v27 = vld [vmem:[%s3 + $0x18] sm:$0xf]
  %v28 = vld [vmem:[%s3 + $0x1c] sm:$0xf]
  %v29 = vld [vmem:[%s3 + $0x20] sm:$0xf]
  %v30 = vld [vmem:[%s3 + $0x24] sm:$0xf]
  %v31 = vld [vmem:[%s3 + $0x28] sm:$0xf]
  %v32 = vld [vmem:[%s3 + $0x2c] sm:$0xf]
  %v33 = vld [vmem:[%s3 + $0x30] sm:$0xf]
  %v34 = vld [vmem:[%s3 + $0x34] sm:$0xf]
  %v35 = vld [vmem:[%s3 + $0x38] sm:$0xf]
  %v36 = vld [vmem:[%s3 + $0x3c] sm:$0xf]
  %v53 = vunpack.c.l.b16 %v21
  %v54 = vunpack.c.l.b16 %v22
  %v55 = vunpack.c.l.b16 %v23
  %v56 = vunpack.c.l.b16 %v24
  %v57 = vunpack.c.l.b16 %v25
  %v58 = vunpack.c.l.b16 %v26
  %v59 = vunpack.c.l.b16 %v27
  %v60 = vunpack.c.l.b16 %v28
  %v61 = vunpack.c.l.b16 %v29
  %v62 = vunpack.c.l.b16 %v30
  %v63 = vunpack.c.l.b16 %v31
  %v64 = vunpack.c.l.b16 %v32
  %v65 = vunpack.c.l.b16 %v33
  %v66 = vunpack.c.l.b16 %v34
  %v67 = vunpack.c.l.b16 %v35
  %v68 = vunpack.c.l.b16 %v36
  %v69 = vpack.c.b16 %v54, %v53
  %v70 = vpack.c.b16 %v56, %v55
  %v71 = vpack.c.b16 %v58, %v57
  %v72 = vpack.c.b16 %v60, %v59
  %v73 = vpack.c.b16 %v62, %v61
  %v74 = vpack.c.b16 %v64, %v63
  %v75 = vpack.c.b16 %v66, %v65
  %v76 = vpack.c.b16 %v68, %v67
  %85 = vmatprep.subr.bf16.mxu0 0
  %86 = vmatpush1.bf16.msra.mxu0 %v69
  %87 = vmatprep.subr.bf16.mxu0 0
  %88 = vmatpush1.bf16.msra.mxu0 %v70
  %89 = vmatprep.subr.bf16.mxu0 0
  %90 = vmatpush1.bf16.msra.mxu0 %v71
  %91 = vmatprep.subr.bf16.mxu0 0
  %92 = vmatpush1.bf16.msra.mxu0 %v72
  %93 = vmatprep.subr.bf16.mxu0 0
  %94 = vmatpush1.bf16.msra.mxu0 %v73
  %95 = vmatprep.subr.bf16.mxu0 0
  %96 = vmatpush1.bf16.msra.mxu0 %v74
  %97 = vmatprep.subr.bf16.mxu0 0
  %98 = vmatpush1.bf16.msra.mxu0 %v75
  %99 = vmatprep.subr.bf16.mxu0 0
  %100 = vmatpush1.bf16.msra.mxu0 %v76
  %101 = vmatprep.subr.bf16.mxu0 0
  %102 = vmatpush1.bf16.msra.mxu0 0
  %103 = vmatprep.subr.bf16.mxu0 0
  %104 = vmatpush1.bf16.msra.mxu0 0
  %105 = vmatprep.subr.bf16.mxu0 0
  %106 = vmatpush1.bf16.msra.mxu0 0
  %107 = vmatprep.subr.bf16.mxu0 0
  %108 = vmatpush1.bf16.msra.mxu0 0
  %109 = vmatprep.subr.bf16.mxu0 0
  %110 = vmatpush1.bf16.msra.mxu0 0
  %111 = vmatprep.subr.bf16.mxu0 0
  %112 = vmatpush1.bf16.msra.mxu0 0
  %113 = vmatprep.subr.bf16.mxu0 0
  %114 = vmatpush1.bf16.msra.mxu0 0
  %115 = vmatprep.subr.bf16.mxu0 0
  %116 = vmatpush1.bf16.msra.mxu0 0
  %117 = vmatprep.mubr.bf16.mxu0 0
  %118 = vmatmul.mubr.bf16.gmra.mrb[0].mxu0 %v20
  %v119 = vpop.f32.mrb[0].mxu0
  %v120 = vadd.f32 0.0, %v119
  %v121 = vpop.f32.mrb[0].mxu0
  %v122 = vpop.f32.mrb[0].mxu0
  %v123 = vpop.f32.mrb[0].mxu0
  %124 = vdwg.mxu0
  %v125 = vld [vmem:[%s1] sm:$0x1]
  %v126 = vlaneseq
  %v127 = vshrl.u32 %v126, 7
  %v128 = vsub.s32 0, %v127
  %v129 = vrot.slane %v125, %v128
  %v130 = vmul.f32 %v19, %v129
  %v131 = vld [vmem:[%s1 + $0x1] sm:$0x1]
  %v132 = vlaneseq
  %v133 = vshrl.u32 %v132, 7
  %v134 = vsub.s32 0, %v133
  %v135 = vrot.slane %v131, %v134
  %v136 = vadd.f32 %v130, %v135
  %v137 = vadd.f32 %v136, %v120
  %v138 = vmax.f32 %v137, 0.0
  %139 = vst [vmem:[%s4] sm:$0xff] %v138
  // Predicated region
  $region18: #{wy_block.15} parent=0 // pred_check
    _
  $region19: #{wy_block.15} parent=0 // pred_check_branch
    %141 = sbr.rel (0) target = $region21
  $region20: #{wy_block.15} parent=0 // pred_region
    _
  $region21: #{wy_block.15} parent=0 // pred_fallthru
    _
  // Predicated region
  $region22: #{wy_block.15} parent=0 // pred_check
    _
  $region23: #{wy_block.15} parent=0 // pred_check_branch
    %143 = sbr.rel (0) target = $region25
  $region24: #{wy_block.15} parent=0 // pred_region
    _
  $region25: #{wy_block.15} parent=0 // pred_fallthru
    _

</llo_original>
